<compile_context>
chip_gen: v6e
topology: v6e:2x2x1
jax: 0.10.0
libtpu: 0.0.40
codegen_flags: <defaults>
</compile_context>

<pallas_src>
import jax
import jax.numpy as jnp
from jax.experimental import pallas as pl
from jax.experimental.pallas import tpu as pltpu

_MAX_BT = 32  # batch tile; can be raised to 64-128 on v5e/v6e (128 MiB VMEM)


# --------------------------------------------------------------------------
# fused kernel: conv1 + ReLU + pool -> conv2 + ReLU + pool -> Linear
# --------------------------------------------------------------------------
def _cnn_kernel(x_ref, w1_ref, b1_ref, w2_ref, b2_ref, wo_ref, bo_ref, out_ref,
                patch1_ref, pad2_ref, patch2_ref, feat_ref):
    # x_ref:      [BT, 32, 32]   bf16  (input, already zero-padded by 2 in H and W)
    # w1_ref:     [160, 448]     bf16  banded conv1 weight, K = kh*32 + w'
    # b1_ref:     [1, 448]       f32
    # w2_ref:     [1440, 448]    bf16  banded conv2 weight, K = kh*288 + s*16 + ci
    # b2_ref:     [1, 448]       f32
    # wo_ref:     [1568, 128]    bf16  final Linear (torch flatten order baked in, N padded)
    # bo_ref:     [1, 128]       f32
    # out_ref:    [BT, 128]      f32
    BT = x_ref.shape[0]
    f32 = jnp.float32
    bf16 = jnp.bfloat16

    # ---------------- conv1 as ONE GEMM over a row-wise patch matrix ----------------
    # patch1[b, h, kh*32 + w'] = xpad[b, h + kh, w']     (rows 28..31 are unused junk)
    for kh in range(5):
        patch1_ref[:, 0:28, kh * 32:(kh + 1) * 32] = x_ref[:, kh:kh + 28, :]

    c1 = jnp.dot(patch1_ref[...].reshape(BT * 32, 160), w1_ref[...],
                 preferred_element_type=f32)                       # [BT*32, 448]
    c1 = jnp.maximum(c1 + b1_ref[...], 0.0).reshape(BT, 32, 448)   # bias + ReLU

    # ---------------- 2x2 max pool #1 + zero-padded (pad=2) staging -----------------
    # conv1 output lane order is (w%2)*224 + (w//2)*16 + c, so the W-pool is a halves-max.
    p1 = jnp.maximum(c1[:, :, 0:224], c1[:, :, 224:448])            # [BT, 32, 224]

    # zero only the pad-2 halo, every step (cheap; safe when the batch axis is split
    # across TensorCores -- interior is fully rewritten below).
    pad2_ref[:, 0:2, :] = jnp.zeros((BT, 2, 288), bf16)
    pad2_ref[:, 16:18, :] = jnp.zeros((BT, 2, 288), bf16)
    pad2_ref[:, 2:16, 0:32] = jnp.zeros((BT, 14, 32), bf16)
    pad2_ref[:, 2:16, 256:288] = jnp.zeros((BT, 14, 32), bf16)
    for i in range(14):                                             # H-pool, rows 2i / 2i+1
        pad2_ref[:, 2 + i, 32:256] = jnp.maximum(
            p1[:, 2 * i, :], p1[:, 2 * i + 1, :]).astype(bf16)

    # ---------------- conv2 as ONE GEMM over a row-wise patch matrix ----------------
    # patch2[b, h, kh*288 + s*16 + ci] = pad2[b, h + kh, s*16 + ci]  (rows 14..15 junk)
    for kh in range(5):
        patch2_ref[:, 0:14, kh * 288:(kh + 1) * 288] = pad2_ref[:, kh:kh + 14, :]

    c2 = jnp.dot(patch2_ref[...].reshape(BT * 16, 1440), w2_ref[...],
                 preferred_element_type=f32)                        # [BT*16, 448]
    c2 = jnp.maximum(c2 + b2_ref[...], 0.0).reshape(BT, 16, 448)    # bias + ReLU

    # ---------------- 2x2 max pool #2 + flatten for the Linear ----------------------
    p2 = jnp.maximum(c2[:, :, 0:224], c2[:, :, 224:448])            # [BT, 16, 224]
    for i in range(7):
        feat_ref[:, i * 224:(i + 1) * 224] = jnp.maximum(
            p2[:, 2 * i, :], p2[:, 2 * i + 1, :]).astype(bf16)

    # ---------------- fused final Linear (one K=1568 GEMM, lane-dense store) --------
    logits = jnp.dot(feat_ref[...], wo_ref[...], preferred_element_type=f32)  # [BT,128]
    out_ref[...] = logits + bo_ref[...]


# --------------------------------------------------------------------------
# wrapper: weight repacking + pallas_call
# --------------------------------------------------------------------------
def cnn_forward(x_nchw, params):
    """Forward pass of the PyTorch CNN. x_nchw: [B,1,28,28] f32 -> [B,10] f32."""
    B, C, H, W = x_nchw.shape
    assert (C, H, W) == (1, 28, 28), "CNN expects MNIST-shaped input [B, 1, 28, 28]"
    f32, bf16 = jnp.float32, jnp.bfloat16

    BT = min(_MAX_BT, B)
    Bp = pl.cdiv(B, BT) * BT

    # ---- input: squeeze channel, zero-pad (padding=2), pad batch, cast bf16 once ----
    x = x_nchw.reshape(B, 28, 28).astype(f32)
    xpad = jnp.pad(x, ((0, Bp - B), (2, 2), (2, 2))).astype(bf16)    # [Bp, 32, 32]

    # ---- conv weights -> banded row-GEMM weights (built in XLA, tiny) ---------------
    # Output lane order L(w, c) = (w % 2)*224 + (w // 2)*C + c so the kernel's 2x2
    # W-pool is max(lanes[:224], lanes[224:]).
    kwv = jnp.arange(5).reshape(5, 1, 1)

    # conv1: W1[kh*32 + w', L(w,c)] = w1[c,0,kh,w'-w] for 0 <= w'-w <= 4
    w1t = jnp.transpose(params['w1'][:, 0], (1, 2, 0)).astype(f32)           # [kh, kw, c]
    ind1 = (jnp.arange(32).reshape(1, 32, 1)
            - jnp.arange(28).reshape(1, 1, 28) == kwv).astype(f32)           # [kw, w', w]
    W1 = jnp.einsum('kxc,xsw->kswc', w1t, ind1)                              # [5,32,28,16]
    W1 = jnp.transpose(W1.reshape(5, 32, 14, 2, 16), (0, 1, 3, 2, 4))        # [kh,w',par,w2,c]
    w1b = W1.reshape(160, 448).astype(bf16)
    b1b = jnp.broadcast_to(params['b1'].reshape(1, 1, 16), (2, 14, 16)
                           ).reshape(1, 448).astype(f32)

    # conv2: W2[kh*288 + s*16 + ci, L(w,co)] = w2[co,ci,kh,s-w] for 0 <= s-w <= 4
    w2t = jnp.transpose(params['w2'], (2, 3, 1, 0)).astype(f32)              # [kh,kw,ci,co]
    ind2 = (jnp.arange(18).reshape(1, 18, 1)
            - jnp.arange(14).reshape(1, 1, 14) == kwv).astype(f32)           # [kw, s, w]
    W2 = jnp.einsum('kxic,xsw->ksiwc', w2t, ind2)                            # [5,18,16,14,32]
    W2 = jnp.transpose(W2.reshape(5, 18, 16, 7, 2, 32), (0, 1, 2, 4, 3, 5))  # [kh,s,ci,par,w2,co]
    w2b = W2.reshape(1440, 448).astype(bf16)
    b2b = jnp.broadcast_to(params['b2'].reshape(1, 1, 32), (2, 7, 32)
                           ).reshape(1, 448).astype(f32)

    # final Linear: feat lane k = i*224 + w2*32 + co  <->  torch flat index co*49 + i*7 + w2
    wo = jnp.transpose(params['w_out'].reshape(10, 32, 7, 7), (2, 3, 1, 0))  # [i, w2, co, n]
    wob = jnp.pad(wo.reshape(1568, 10), ((0, 0), (0, 118))).astype(bf16)     # [1568, 128]
    bob = jnp.pad(params['b_out'], (0, 118)).reshape(1, 128).astype(f32)

    out = pl.pallas_call(
        _cnn_kernel,
        out_shape=jax.ShapeDtypeStruct((Bp, 128), f32),
        grid=(Bp // BT,),
        in_specs=[
            pl.BlockSpec((BT, 32, 32), lambda i: (i, 0, 0)),
            pl.BlockSpec((160, 448), lambda i: (0, 0)),
            pl.BlockSpec((1, 448), lambda i: (0, 0)),
            pl.BlockSpec((1440, 448), lambda i: (0, 0)),
            pl.BlockSpec((1, 448), lambda i: (0, 0)),
            pl.BlockSpec((1568, 128), lambda i: (0, 0)),
            pl.BlockSpec((1, 128), lambda i: (0, 0)),
        ],
        out_specs=pl.BlockSpec((BT, 128), lambda i: (i, 0)),
        scratch_shapes=[
            pltpu.VMEM((BT, 32, 160), bf16),    # conv1 im2row patch matrix
            pltpu.VMEM((BT, 18, 288), bf16),    # pooled conv1, zero pad-2 halo
            pltpu.VMEM((BT, 16, 1440), bf16),   # conv2 im2row patch matrix
            pltpu.VMEM((BT, 1568), bf16),       # pooled conv2, flattened for the Linear
        ],
        compiler_params=pltpu.CompilerParams(
            dimension_semantics=("parallel",),
            vmem_limit_bytes=48 * 1024 * 1024,
        ),
    )(xpad, w1b, b1b, w2b, b2b, wob, bob)

    return out[:B, :10]


def init_params(key):
    k1, k2, k3, k4, k5, k6 = jax.random.split(key, 6)
    return dict(
        w1=jax.random.normal(k1, (16, 1, 5, 5), jnp.float32) * 0.1,
        b1=jax.random.normal(k2, (16,), jnp.float32) * 0.01,
        w2=jax.random.normal(k3, (32, 16, 5, 5), jnp.float32) * 0.05,
        b2=jax.random.normal(k4, (32,), jnp.float32) * 0.01,
        w_out=jax.random.normal(k5, (10, 32 * 7 * 7), jnp.float32) * 0.02,
        b_out=jax.random.normal(k6, (10,), jnp.float32) * 0.01,
    )


if __name__ == "__main__":
    key = jax.random.PRNGKey(0)
    kx, kp = jax.random.split(key)
    # MNIST-shaped input implied by the module (28x28 -> 7x7 after two 2x pools).
    x = jax.random.normal(kx, (2, 1, 28, 28), jnp.float32)
    params = init_params(kp)

    out = jax.jit(cnn_forward)(x, params)
    jax.block_until_ready(out)
    assert out.shape == (2, 10) and out.dtype == jnp.float32
    print("KERNEL_OK")
</pallas_src>

<mosaic_0001>
module attributes {stable_mosaic.version = 11 : i64} {
  func.func @_cnn_kernel(%arg0: i32, %arg1: memref<2x32x32xbf16, #tpu.memory_space<vmem>>, %arg2: memref<160x448xbf16, #tpu.memory_space<vmem>>, %arg3: memref<1x448xf32, #tpu.memory_space<vmem>>, %arg4: memref<1440x448xbf16, #tpu.memory_space<vmem>>, %arg5: memref<1x448xf32, #tpu.memory_space<vmem>>, %arg6: memref<1568x128xbf16, #tpu.memory_space<vmem>>, %arg7: memref<1x128xf32, #tpu.memory_space<vmem>>, %arg8: memref<2x128xf32, #tpu.memory_space<vmem>>, %arg9: memref<2x32x160xbf16, #tpu.memory_space<vmem>>, %arg10: memref<2x18x288xbf16, #tpu.memory_space<vmem>>, %arg11: memref<2x16x1440xbf16, #tpu.memory_space<vmem>>, %arg12: memref<2x1568xbf16, #tpu.memory_space<vmem>>) attributes {dimension_semantics = [#tpu.dimension_semantics<parallel>], iteration_bounds = array<i64: 1>, scalar_prefetch = 0 : i64, scratch_operands = 4 : i64, tpu.core_type = #tpu.core_type<tc>, window_params = [{transform_indices = @transform_0, window_bounds = array<i64: 2, 32, 32>}, {pipeline_mode = #tpu.pipeline_mode<synchronous>, transform_indices = @transform_1, window_bounds = array<i64: 160, 448>}, {pipeline_mode = #tpu.pipeline_mode<synchronous>, transform_indices = @transform_2, window_bounds = array<i64: 1, 448>}, {pipeline_mode = #tpu.pipeline_mode<synchronous>, transform_indices = @transform_3, window_bounds = array<i64: 1440, 448>}, {pipeline_mode = #tpu.pipeline_mode<synchronous>, transform_indices = @transform_4, window_bounds = array<i64: 1, 448>}, {pipeline_mode = #tpu.pipeline_mode<synchronous>, transform_indices = @transform_5, window_bounds = array<i64: 1568, 128>}, {pipeline_mode = #tpu.pipeline_mode<synchronous>, transform_indices = @transform_6, window_bounds = array<i64: 1, 128>}, {transform_indices = @transform_7, window_bounds = array<i64: 2, 128>}]} {
    %c0 = arith.constant 0 : index
    %c0_0 = arith.constant 0 : index
    %c0_1 = arith.constant 0 : index
    %0 = vector.load %arg1[%c0, %c0_0, %c0_1] : memref<2x32x32xbf16, #tpu.memory_space<vmem>>, vector<2x28x32xbf16>
    %c0_2 = arith.constant 0 : index
    %c0_3 = arith.constant 0 : index
    %c0_4 = arith.constant 0 : index
    %1 = vector.load %arg9[%c0_2, %c0_3, %c0_4] : memref<2x32x160xbf16, #tpu.memory_space<vmem>>, vector<2x28x32xbf16>
    tpu.vector_store %arg9[%c0_2, %c0_3, %c0_4], %0 {strides = array<i32>} : memref<2x32x160xbf16, #tpu.memory_space<vmem>>, vector<2x28x32xbf16>,
    %c0_5 = arith.constant 0 : index
    %c1 = arith.constant 1 : index
    %c0_6 = arith.constant 0 : index
    %2 = vector.load %arg1[%c0_5, %c1, %c0_6] : memref<2x32x32xbf16, #tpu.memory_space<vmem>>, vector<2x28x32xbf16>
    %c0_7 = arith.constant 0 : index
    %c0_8 = arith.constant 0 : index
    %c32 = arith.constant 32 : index
    %3 = vector.load %arg9[%c0_7, %c0_8, %c32] : memref<2x32x160xbf16, #tpu.memory_space<vmem>>, vector<2x28x32xbf16>
    tpu.vector_store %arg9[%c0_7, %c0_8, %c32], %2 {strides = array<i32>} : memref<2x32x160xbf16, #tpu.memory_space<vmem>>, vector<2x28x32xbf16>,
    %c0_9 = arith.constant 0 : index
    %c2 = arith.constant 2 : index
    %c0_10 = arith.constant 0 : index
    %4 = vector.load %arg1[%c0_9, %c2, %c0_10] : memref<2x32x32xbf16, #tpu.memory_space<vmem>>, vector<2x28x32xbf16>
    %c0_11 = arith.constant 0 : index
    %c0_12 = arith.constant 0 : index
    %c64 = arith.constant 64 : index
    %5 = vector.load %arg9[%c0_11, %c0_12, %c64] : memref<2x32x160xbf16, #tpu.memory_space<vmem>>, vector<2x28x32xbf16>
    tpu.vector_store %arg9[%c0_11, %c0_12, %c64], %4 {strides = array<i32>} : memref<2x32x160xbf16, #tpu.memory_space<vmem>>, vector<2x28x32xbf16>,
    %c0_13 = arith.constant 0 : index
    %c3 = arith.constant 3 : index
    %c0_14 = arith.constant 0 : index
    %6 = vector.load %arg1[%c0_13, %c3, %c0_14] : memref<2x32x32xbf16, #tpu.memory_space<vmem>>, vector<2x28x32xbf16>
    %c0_15 = arith.constant 0 : index
    %c0_16 = arith.constant 0 : index
    %c96 = arith.constant 96 : index
    %7 = vector.load %arg9[%c0_15, %c0_16, %c96] : memref<2x32x160xbf16, #tpu.memory_space<vmem>>, vector<2x28x32xbf16>
    tpu.vector_store %arg9[%c0_15, %c0_16, %c96], %6 {strides = array<i32>} : memref<2x32x160xbf16, #tpu.memory_space<vmem>>, vector<2x28x32xbf16>,
    %c0_17 = arith.constant 0 : index
    %c4 = arith.constant 4 : index
    %c0_18 = arith.constant 0 : index
    %8 = vector.load %arg1[%c0_17, %c4, %c0_18] : memref<2x32x32xbf16, #tpu.memory_space<vmem>>, vector<2x28x32xbf16>
    %c0_19 = arith.constant 0 : index
    %c0_20 = arith.constant 0 : index
    %c128 = arith.constant 128 : index
    %9 = vector.load %arg9[%c0_19, %c0_20, %c128] : memref<2x32x160xbf16, #tpu.memory_space<vmem>>, vector<2x28x32xbf16>
    tpu.vector_store %arg9[%c0_19, %c0_20, %c128], %8 {strides = array<i32>} : memref<2x32x160xbf16, #tpu.memory_space<vmem>>, vector<2x28x32xbf16>,
    %c0_21 = arith.constant 0 : index
    %c0_22 = arith.constant 0 : index
    %c0_23 = arith.constant 0 : index
    %10 = vector.load %arg9[%c0_21, %c0_22, %c0_23] : memref<2x32x160xbf16, #tpu.memory_space<vmem>>, vector<2x32x160xbf16>
    %11 = vector.shape_cast %10 : vector<2x32x160xbf16> to vector<64x160xbf16>
    %c0_24 = arith.constant 0 : index
    %c0_25 = arith.constant 0 : index
    %12 = vector.load %arg2[%c0_24, %c0_25] : memref<160x448xbf16, #tpu.memory_space<vmem>>, vector<160x448xbf16>
    %cst = arith.constant dense<0.000000e+00> : vector<64x448xf32>
    %13 = tpu.matmul %11, %12, %cst {dimension_numbers = #tpu.dot_dimension_numbers<[1], [0], [0], [1], [0, 0, 1, 1], [], []>} : vector<64x160xbf16>, vector<160x448xbf16>, vector<64x448xf32> -> vector<64x448xf32>
    %c0_26 = arith.constant 0 : index
    %c0_27 = arith.constant 0 : index
    %14 = vector.load %arg3[%c0_26, %c0_27] : memref<1x448xf32, #tpu.memory_space<vmem>>, vector<1x448xf32>
    %15 = vector.broadcast %14 : vector<1x448xf32> to vector<64x448xf32>
    %16 = arith.addf %13, %15 : vector<64x448xf32>
    %cst_28 = arith.constant 0.000000e+00 : f32
    %17 = vector.broadcast %cst_28 : f32 to vector<64x448xf32>
    %18 = arith.maximumf %16, %17 : vector<64x448xf32>
    %19 = vector.shape_cast %18 : vector<64x448xf32> to vector<2x32x448xf32>
    %20 = vector.extract_strided_slice %19 {offsets = [0, 0, 0], sizes = [2, 32, 224], strides = [1, 1, 1]} : vector<2x32x448xf32> to vector<2x32x224xf32>
    %21 = vector.extract_strided_slice %19 {offsets = [0, 0, 224], sizes = [2, 32, 224], strides = [1, 1, 1]} : vector<2x32x448xf32> to vector<2x32x224xf32>
    %22 = arith.maximumf %20, %21 : vector<2x32x224xf32>
    %cst_29 = arith.constant 0.000000e+00 : bf16
    %23 = vector.broadcast %cst_29 : bf16 to vector<2x2x288xbf16>
    %c0_30 = arith.constant 0 : index
    %c0_31 = arith.constant 0 : index
    %c0_32 = arith.constant 0 : index
    %24 = vector.load %arg10[%c0_30, %c0_31, %c0_32] : memref<2x18x288xbf16, #tpu.memory_space<vmem>>, vector<2x2x288xbf16>
    tpu.vector_store %arg10[%c0_30, %c0_31, %c0_32], %23 {strides = array<i32>} : memref<2x18x288xbf16, #tpu.memory_space<vmem>>, vector<2x2x288xbf16>,
    %cst_33 = arith.constant 0.000000e+00 : bf16
    %25 = vector.broadcast %cst_33 : bf16 to vector<2x2x288xbf16>
    %c0_34 = arith.constant 0 : index
    %c16 = arith.constant 16 : index
    %c0_35 = arith.constant 0 : index
    %26 = vector.load %arg10[%c0_34, %c16, %c0_35] : memref<2x18x288xbf16, #tpu.memory_space<vmem>>, vector<2x2x288xbf16>
    tpu.vector_store %arg10[%c0_34, %c16, %c0_35], %25 {strides = array<i32>} : memref<2x18x288xbf16, #tpu.memory_space<vmem>>, vector<2x2x288xbf16>,
    %cst_36 = arith.constant 0.000000e+00 : bf16
    %27 = vector.broadcast %cst_36 : bf16 to vector<2x14x32xbf16>
    %c0_37 = arith.constant 0 : index
    %c2_38 = arith.constant 2 : index
    %c0_39 = arith.constant 0 : index
    %28 = vector.load %arg10[%c0_37, %c2_38, %c0_39] : memref<2x18x288xbf16, #tpu.memory_space<vmem>>, vector<2x14x32xbf16>
    tpu.vector_store %arg10[%c0_37, %c2_38, %c0_39], %27 {strides = array<i32>} : memref<2x18x288xbf16, #tpu.memory_space<vmem>>, vector<2x14x32xbf16>,
    %cst_40 = arith.constant 0.000000e+00 : bf16
    %29 = vector.broadcast %cst_40 : bf16 to vector<2x14x32xbf16>
    %c0_41 = arith.constant 0 : index
    %c2_42 = arith.constant 2 : index
    %c256 = arith.constant 256 : index
    %30 = vector.load %arg10[%c0_41, %c2_42, %c256] : memref<2x18x288xbf16, #tpu.memory_space<vmem>>, vector<2x14x32xbf16>
    tpu.vector_store %arg10[%c0_41, %c2_42, %c256], %29 {strides = array<i32>} : memref<2x18x288xbf16, #tpu.memory_space<vmem>>, vector<2x14x32xbf16>,
    %31 = vector.extract_strided_slice %22 {offsets = [0, 0, 0], sizes = [2, 1, 224], strides = [1, 1, 1]} : vector<2x32x224xf32> to vector<2x1x224xf32>
    %32 = vector.shape_cast %31 : vector<2x1x224xf32> to vector<2x224xf32>
    %33 = vector.extract_strided_slice %22 {offsets = [0, 1, 0], sizes = [2, 1, 224], strides = [1, 1, 1]} : vector<2x32x224xf32> to vector<2x1x224xf32>
    %34 = vector.shape_cast %33 : vector<2x1x224xf32> to vector<2x224xf32>
    %35 = arith.maximumf %32, %34 : vector<2x224xf32>
    %36 = arith.truncf %35 : vector<2x224xf32> to vector<2x224xbf16>
    %c0_43 = arith.constant 0 : index
    %c2_44 = arith.constant 2 : index
    %c32_45 = arith.constant 32 : index
    %37 = vector.load %arg10[%c0_43, %c2_44, %c32_45] : memref<2x18x288xbf16, #tpu.memory_space<vmem>>, vector<2x1x224xbf16>
    %38 = vector.shape_cast %37 : vector<2x1x224xbf16> to vector<2x224xbf16>
    %39 = vector.shape_cast %36 : vector<2x224xbf16> to vector<2x1x224xbf16>
    tpu.vector_store %arg10[%c0_43, %c2_44, %c32_45], %39 {strides = array<i32>} : memref<2x18x288xbf16, #tpu.memory_space<vmem>>, vector<2x1x224xbf16>,
    %40 = vector.extract_strided_slice %22 {offsets = [0, 2, 0], sizes = [2, 1, 224], strides = [1, 1, 1]} : vector<2x32x224xf32> to vector<2x1x224xf32>
    %41 = vector.shape_cast %40 : vector<2x1x224xf32> to vector<2x224xf32>
    %42 = vector.extract_strided_slice %22 {offsets = [0, 3, 0], sizes = [2, 1, 224], strides = [1, 1, 1]} : vector<2x32x224xf32> to vector<2x1x224xf32>
    %43 = vector.shape_cast %42 : vector<2x1x224xf32> to vector<2x224xf32>
    %44 = arith.maximumf %41, %43 : vector<2x224xf32>
    %45 = arith.truncf %44 : vector<2x224xf32> to vector<2x224xbf16>
    %c0_46 = arith.constant 0 : index
    %c3_47 = arith.constant 3 : index
    %c32_48 = arith.constant 32 : index
    %46 = vector.load %arg10[%c0_46, %c3_47, %c32_48] : memref<2x18x288xbf16, #tpu.memory_space<vmem>>, vector<2x1x224xbf16>
    %47 = vector.shape_cast %46 : vector<2x1x224xbf16> to vector<2x224xbf16>
    %48 = vector.shape_cast %45 : vector<2x224xbf16> to vector<2x1x224xbf16>
    tpu.vector_store %arg10[%c0_46, %c3_47, %c32_48], %48 {strides = array<i32>} : memref<2x18x288xbf16, #tpu.memory_space<vmem>>, vector<2x1x224xbf16>,
    %49 = vector.extract_strided_slice %22 {offsets = [0, 4, 0], sizes = [2, 1, 224], strides = [1, 1, 1]} : vector<2x32x224xf32> to vector<2x1x224xf32>
    %50 = vector.shape_cast %49 : vector<2x1x224xf32> to vector<2x224xf32>
    %51 = vector.extract_strided_slice %22 {offsets = [0, 5, 0], sizes = [2, 1, 224], strides = [1, 1, 1]} : vector<2x32x224xf32> to vector<2x1x224xf32>
    %52 = vector.shape_cast %51 : vector<2x1x224xf32> to vector<2x224xf32>
    %53 = arith.maximumf %50, %52 : vector<2x224xf32>
    %54 = arith.truncf %53 : vector<2x224xf32> to vector<2x224xbf16>
    %c0_49 = arith.constant 0 : index
    %c4_50 = arith.constant 4 : index
    %c32_51 = arith.constant 32 : index
    %55 = vector.load %arg10[%c0_49, %c4_50, %c32_51] : memref<2x18x288xbf16, #tpu.memory_space<vmem>>, vector<2x1x224xbf16>
    %56 = vector.shape_cast %55 : vector<2x1x224xbf16> to vector<2x224xbf16>
    %57 = vector.shape_cast %54 : vector<2x224xbf16> to vector<2x1x224xbf16>
    tpu.vector_store %arg10[%c0_49, %c4_50, %c32_51], %57 {strides = array<i32>} : memref<2x18x288xbf16, #tpu.memory_space<vmem>>, vector<2x1x224xbf16>,
    %58 = vector.extract_strided_slice %22 {offsets = [0, 6, 0], sizes = [2, 1, 224], strides = [1, 1, 1]} : vector<2x32x224xf32> to vector<2x1x224xf32>
    %59 = vector.shape_cast %58 : vector<2x1x224xf32> to vector<2x224xf32>
    %60 = vector.extract_strided_slice %22 {offsets = [0, 7, 0], sizes = [2, 1, 224], strides = [1, 1, 1]} : vector<2x32x224xf32> to vector<2x1x224xf32>
    %61 = vector.shape_cast %60 : vector<2x1x224xf32> to vector<2x224xf32>
    %62 = arith.maximumf %59, %61 : vector<2x224xf32>
    %63 = arith.truncf %62 : vector<2x224xf32> to vector<2x224xbf16>
    %c0_52 = arith.constant 0 : index
    %c5 = arith.constant 5 : index
    %c32_53 = arith.constant 32 : index
    %64 = vector.load %arg10[%c0_52, %c5, %c32_53] : memref<2x18x288xbf16, #tpu.memory_space<vmem>>, vector<2x1x224xbf16>
    %65 = vector.shape_cast %64 : vector<2x1x224xbf16> to vector<2x224xbf16>
    %66 = vector.shape_cast %63 : vector<2x224xbf16> to vector<2x1x224xbf16>
    tpu.vector_store %arg10[%c0_52, %c5, %c32_53], %66 {strides = array<i32>} : memref<2x18x288xbf16, #tpu.memory_space<vmem>>, vector<2x1x224xbf16>,
    %67 = vector.extract_strided_slice %22 {offsets = [0, 8, 0], sizes = [2, 1, 224], strides = [1, 1, 1]} : vector<2x32x224xf32> to vector<2x1x224xf32>
    %68 = vector.shape_cast %67 : vector<2x1x224xf32> to vector<2x224xf32>
    %69 = vector.extract_strided_slice %22 {offsets = [0, 9, 0], sizes = [2, 1, 224], strides = [1, 1, 1]} : vector<2x32x224xf32> to vector<2x1x224xf32>
    %70 = vector.shape_cast %69 : vector<2x1x224xf32> to vector<2x224xf32>
    %71 = arith.maximumf %68, %70 : vector<2x224xf32>
    %72 = arith.truncf %71 : vector<2x224xf32> to vector<2x224xbf16>
    %c0_54 = arith.constant 0 : index
    %c6 = arith.constant 6 : index
    %c32_55 = arith.constant 32 : index
    %73 = vector.load %arg10[%c0_54, %c6, %c32_55] : memref<2x18x288xbf16, #tpu.memory_space<vmem>>, vector<2x1x224xbf16>
    %74 = vector.shape_cast %73 : vector<2x1x224xbf16> to vector<2x224xbf16>
    %75 = vector.shape_cast %72 : vector<2x224xbf16> to vector<2x1x224xbf16>
    tpu.vector_store %arg10[%c0_54, %c6, %c32_55], %75 {strides = array<i32>} : memref<2x18x288xbf16, #tpu.memory_space<vmem>>, vector<2x1x224xbf16>,
    %76 = vector.extract_strided_slice %22 {offsets = [0, 10, 0], sizes = [2, 1, 224], strides = [1, 1, 1]} : vector<2x32x224xf32> to vector<2x1x224xf32>
    %77 = vector.shape_cast %76 : vector<2x1x224xf32> to vector<2x224xf32>
    %78 = vector.extract_strided_slice %22 {offsets = [0, 11, 0], sizes = [2, 1, 224], strides = [1, 1, 1]} : vector<2x32x224xf32> to vector<2x1x224xf32>
    %79 = vector.shape_cast %78 : vector<2x1x224xf32> to vector<2x224xf32>
    %80 = arith.maximumf %77, %79 : vector<2x224xf32>
    %81 = arith.truncf %80 : vector<2x224xf32> to vector<2x224xbf16>
    %c0_56 = arith.constant 0 : index
    %c7 = arith.constant 7 : index
    %c32_57 = arith.constant 32 : index
    %82 = vector.load %arg10[%c0_56, %c7, %c32_57] : memref<2x18x288xbf16, #tpu.memory_space<vmem>>, vector<2x1x224xbf16>
    %83 = vector.shape_cast %82 : vector<2x1x224xbf16> to vector<2x224xbf16>
    %84 = vector.shape_cast %81 : vector<2x224xbf16> to vector<2x1x224xbf16>
    tpu.vector_store %arg10[%c0_56, %c7, %c32_57], %84 {strides = array<i32>} : memref<2x18x288xbf16, #tpu.memory_space<vmem>>, vector<2x1x224xbf16>,
    %85 = vector.extract_strided_slice %22 {offsets = [0, 12, 0], sizes = [2, 1, 224], strides = [1, 1, 1]} : vector<2x32x224xf32> to vector<2x1x224xf32>
    %86 = vector.shape_cast %85 : vector<2x1x224xf32> to vector<2x224xf32>
    %87 = vector.extract_strided_slice %22 {offsets = [0, 13, 0], sizes = [2, 1, 224], strides = [1, 1, 1]} : vector<2x32x224xf32> to vector<2x1x224xf32>
    %88 = vector.shape_cast %87 : vector<2x1x224xf32> to vector<2x224xf32>
    %89 = arith.maximumf %86, %88 : vector<2x224xf32>
    %90 = arith.truncf %89 : vector<2x224xf32> to vector<2x224xbf16>
    %c0_58 = arith.constant 0 : index
    %c8 = arith.constant 8 : index
    %c32_59 = arith.constant 32 : index
    %91 = vector.load %arg10[%c0_58, %c8, %c32_59] : memref<2x18x288xbf16, #tpu.memory_space<vmem>>, vector<2x1x224xbf16>
    %92 = vector.shape_cast %91 : vector<2x1x224xbf16> to vector<2x224xbf16>
    %93 = vector.shape_cast %90 : vector<2x224xbf16> to vector<2x1x224xbf16>
    tpu.vector_store %arg10[%c0_58, %c8, %c32_59], %93 {strides = array<i32>} : memref<2x18x288xbf16, #tpu.memory_space<vmem>>, vector<2x1x224xbf16>,
    %94 = vector.extract_strided_slice %22 {offsets = [0, 14, 0], sizes = [2, 1, 224], strides = [1, 1, 1]} : vector<2x32x224xf32> to vector<2x1x224xf32>
    %95 = vector.shape_cast %94 : vector<2x1x224xf32> to vector<2x224xf32>
    %96 = vector.extract_strided_slice %22 {offsets = [0, 15, 0], sizes = [2, 1, 224], strides = [1, 1, 1]} : vector<2x32x224xf32> to vector<2x1x224xf32>
    %97 = vector.shape_cast %96 : vector<2x1x224xf32> to vector<2x224xf32>
    %98 = arith.maximumf %95, %97 : vector<2x224xf32>
    %99 = arith.truncf %98 : vector<2x224xf32> to vector<2x224xbf16>
    %c0_60 = arith.constant 0 : index
    %c9 = arith.constant 9 : index
    %c32_61 = arith.constant 32 : index
    %100 = vector.load %arg10[%c0_60, %c9, %c32_61] : memref<2x18x288xbf16, #tpu.memory_space<vmem>>, vector<2x1x224xbf16>
    %101 = vector.shape_cast %100 : vector<2x1x224xbf16> to vector<2x224xbf16>
    %102 = vector.shape_cast %99 : vector<2x224xbf16> to vector<2x1x224xbf16>
    tpu.vector_store %arg10[%c0_60, %c9, %c32_61], %102 {strides = array<i32>} : memref<2x18x288xbf16, #tpu.memory_space<vmem>>, vector<2x1x224xbf16>,
    %103 = vector.extract_strided_slice %22 {offsets = [0, 16, 0], sizes = [2, 1, 224], strides = [1, 1, 1]} : vector<2x32x224xf32> to vector<2x1x224xf32>
    %104 = vector.shape_cast %103 : vector<2x1x224xf32> to vector<2x224xf32>
    %105 = vector.extract_strided_slice %22 {offsets = [0, 17, 0], sizes = [2, 1, 224], strides = [1, 1, 1]} : vector<2x32x224xf32> to vector<2x1x224xf32>
    %106 = vector.shape_cast %105 : vector<2x1x224xf32> to vector<2x224xf32>
    %107 = arith.maximumf %104, %106 : vector<2x224xf32>
    %108 = arith.truncf %107 : vector<2x224xf32> to vector<2x224xbf16>
    %c0_62 = arith.constant 0 : index
    %c10 = arith.constant 10 : index
    %c32_63 = arith.constant 32 : index
    %109 = vector.load %arg10[%c0_62, %c10, %c32_63] : memref<2x18x288xbf16, #tpu.memory_space<vmem>>, vector<2x1x224xbf16>
    %110 = vector.shape_cast %109 : vector<2x1x224xbf16> to vector<2x224xbf16>
    %111 = vector.shape_cast %108 : vector<2x224xbf16> to vector<2x1x224xbf16>
    tpu.vector_store %arg10[%c0_62, %c10, %c32_63], %111 {strides = array<i32>} : memref<2x18x288xbf16, #tpu.memory_space<vmem>>, vector<2x1x224xbf16>,
    %112 = vector.extract_strided_slice %22 {offsets = [0, 18, 0], sizes = [2, 1, 224], strides = [1, 1, 1]} : vector<2x32x224xf32> to vector<2x1x224xf32>
    %113 = vector.shape_cast %112 : vector<2x1x224xf32> to vector<2x224xf32>
    %114 = vector.extract_strided_slice %22 {offsets = [0, 19, 0], sizes = [2, 1, 224], strides = [1, 1, 1]} : vector<2x32x224xf32> to vector<2x1x224xf32>
    %115 = vector.shape_cast %114 : vector<2x1x224xf32> to vector<2x224xf32>
    %116 = arith.maximumf %113, %115 : vector<2x224xf32>
    %117 = arith.truncf %116 : vector<2x224xf32> to vector<2x224xbf16>
    %c0_64 = arith.constant 0 : index
    %c11 = arith.constant 11 : index
    %c32_65 = arith.constant 32 : index
    %118 = vector.load %arg10[%c0_64, %c11, %c32_65] : memref<2x18x288xbf16, #tpu.memory_space<vmem>>, vector<2x1x224xbf16>
    %119 = vector.shape_cast %118 : vector<2x1x224xbf16> to vector<2x224xbf16>
    %120 = vector.shape_cast %117 : vector<2x224xbf16> to vector<2x1x224xbf16>
    tpu.vector_store %arg10[%c0_64, %c11, %c32_65], %120 {strides = array<i32>} : memref<2x18x288xbf16, #tpu.memory_space<vmem>>, vector<2x1x224xbf16>,
    %121 = vector.extract_strided_slice %22 {offsets = [0, 20, 0], sizes = [2, 1, 224], strides = [1, 1, 1]} : vector<2x32x224xf32> to vector<2x1x224xf32>
    %122 = vector.shape_cast %121 : vector<2x1x224xf32> to vector<2x224xf32>
    %123 = vector.extract_strided_slice %22 {offsets = [0, 21, 0], sizes = [2, 1, 224], strides = [1, 1, 1]} : vector<2x32x224xf32> to vector<2x1x224xf32>
    %124 = vector.shape_cast %123 : vector<2x1x224xf32> to vector<2x224xf32>
    %125 = arith.maximumf %122, %124 : vector<2x224xf32>
    %126 = arith.truncf %125 : vector<2x224xf32> to vector<2x224xbf16>
    %c0_66 = arith.constant 0 : index
    %c12 = arith.constant 12 : index
    %c32_67 = arith.constant 32 : index
    %127 = vector.load %arg10[%c0_66, %c12, %c32_67] : memref<2x18x288xbf16, #tpu.memory_space<vmem>>, vector<2x1x224xbf16>
    %128 = vector.shape_cast %127 : vector<2x1x224xbf16> to vector<2x224xbf16>
    %129 = vector.shape_cast %126 : vector<2x224xbf16> to vector<2x1x224xbf16>
    tpu.vector_store %arg10[%c0_66, %c12, %c32_67], %129 {strides = array<i32>} : memref<2x18x288xbf16, #tpu.memory_space<vmem>>, vector<2x1x224xbf16>,
    %130 = vector.extract_strided_slice %22 {offsets = [0, 22, 0], sizes = [2, 1, 224], strides = [1, 1, 1]} : vector<2x32x224xf32> to vector<2x1x224xf32>
    %131 = vector.shape_cast %130 : vector<2x1x224xf32> to vector<2x224xf32>
    %132 = vector.extract_strided_slice %22 {offsets = [0, 23, 0], sizes = [2, 1, 224], strides = [1, 1, 1]} : vector<2x32x224xf32> to vector<2x1x224xf32>
    %133 = vector.shape_cast %132 : vector<2x1x224xf32> to vector<2x224xf32>
    %134 = arith.maximumf %131, %133 : vector<2x224xf32>
    %135 = arith.truncf %134 : vector<2x224xf32> to vector<2x224xbf16>
    %c0_68 = arith.constant 0 : index
    %c13 = arith.constant 13 : index
    %c32_69 = arith.constant 32 : index
    %136 = vector.load %arg10[%c0_68, %c13, %c32_69] : memref<2x18x288xbf16, #tpu.memory_space<vmem>>, vector<2x1x224xbf16>
    %137 = vector.shape_cast %136 : vector<2x1x224xbf16> to vector<2x224xbf16>
    %138 = vector.shape_cast %135 : vector<2x224xbf16> to vector<2x1x224xbf16>
    tpu.vector_store %arg10[%c0_68, %c13, %c32_69], %138 {strides = array<i32>} : memref<2x18x288xbf16, #tpu.memory_space<vmem>>, vector<2x1x224xbf16>,
    %139 = vector.extract_strided_slice %22 {offsets = [0, 24, 0], sizes = [2, 1, 224], strides = [1, 1, 1]} : vector<2x32x224xf32> to vector<2x1x224xf32>
    %140 = vector.shape_cast %139 : vector<2x1x224xf32> to vector<2x224xf32>
    %141 = vector.extract_strided_slice %22 {offsets = [0, 25, 0], sizes = [2, 1, 224], strides = [1, 1, 1]} : vector<2x32x224xf32> to vector<2x1x224xf32>
    %142 = vector.shape_cast %141 : vector<2x1x224xf32> to vector<2x224xf32>
    %143 = arith.maximumf %140, %142 : vector<2x224xf32>
    %144 = arith.truncf %143 : vector<2x224xf32> to vector<2x224xbf16>
    %c0_70 = arith.constant 0 : index
    %c14 = arith.constant 14 : index
    %c32_71 = arith.constant 32 : index
    %145 = vector.load %arg10[%c0_70, %c14, %c32_71] : memref<2x18x288xbf16, #tpu.memory_space<vmem>>, vector<2x1x224xbf16>
    %146 = vector.shape_cast %145 : vector<2x1x224xbf16> to vector<2x224xbf16>
    %147 = vector.shape_cast %144 : vector<2x224xbf16> to vector<2x1x224xbf16>
    tpu.vector_store %arg10[%c0_70, %c14, %c32_71], %147 {strides = array<i32>} : memref<2x18x288xbf16, #tpu.memory_space<vmem>>, vector<2x1x224xbf16>,
    %148 = vector.extract_strided_slice %22 {offsets = [0, 26, 0], sizes = [2, 1, 224], strides = [1, 1, 1]} : vector<2x32x224xf32> to vector<2x1x224xf32>
    %149 = vector.shape_cast %148 : vector<2x1x224xf32> to vector<2x224xf32>
    %150 = vector.extract_strided_slice %22 {offsets = [0, 27, 0], sizes = [2, 1, 224], strides = [1, 1, 1]} : vector<2x32x224xf32> to vector<2x1x224xf32>
    %151 = vector.shape_cast %150 : vector<2x1x224xf32> to vector<2x224xf32>
    %152 = arith.maximumf %149, %151 : vector<2x224xf32>
    %153 = arith.truncf %152 : vector<2x224xf32> to vector<2x224xbf16>
    %c0_72 = arith.constant 0 : index
    %c15 = arith.constant 15 : index
    %c32_73 = arith.constant 32 : index
    %154 = vector.load %arg10[%c0_72, %c15, %c32_73] : memref<2x18x288xbf16, #tpu.memory_space<vmem>>, vector<2x1x224xbf16>
    %155 = vector.shape_cast %154 : vector<2x1x224xbf16> to vector<2x224xbf16>
    %156 = vector.shape_cast %153 : vector<2x224xbf16> to vector<2x1x224xbf16>
    tpu.vector_store %arg10[%c0_72, %c15, %c32_73], %156 {strides = array<i32>} : memref<2x18x288xbf16, #tpu.memory_space<vmem>>, vector<2x1x224xbf16>,
    %c0_74 = arith.constant 0 : index
    %c0_75 = arith.constant 0 : index
    %c0_76 = arith.constant 0 : index
    %157 = vector.load %arg10[%c0_74, %c0_75, %c0_76] : memref<2x18x288xbf16, #tpu.memory_space<vmem>>, vector<2x14x288xbf16>
    %c0_77 = arith.constant 0 : index
    %c0_78 = arith.constant 0 : index
    %c0_79 = arith.constant 0 : index
    %158 = vector.load %arg11[%c0_77, %c0_78, %c0_79] : memref<2x16x1440xbf16, #tpu.memory_space<vmem>>, vector<2x14x288xbf16>
    tpu.vector_store %arg11[%c0_77, %c0_78, %c0_79], %157 {strides = array<i32>} : memref<2x16x1440xbf16, #tpu.memory_space<vmem>>, vector<2x14x288xbf16>,
    %c0_80 = arith.constant 0 : index
    %c1_81 = arith.constant 1 : index
    %c0_82 = arith.constant 0 : index
    %159 = vector.load %arg10[%c0_80, %c1_81, %c0_82] : memref<2x18x288xbf16, #tpu.memory_space<vmem>>, vector<2x14x288xbf16>
    %c0_83 = arith.constant 0 : index
    %c0_84 = arith.constant 0 : index
    %c288 = arith.constant 288 : index
    %160 = vector.load %arg11[%c0_83, %c0_84, %c288] : memref<2x16x1440xbf16, #tpu.memory_space<vmem>>, vector<2x14x288xbf16>
    tpu.vector_store %arg11[%c0_83, %c0_84, %c288], %159 {strides = array<i32>} : memref<2x16x1440xbf16, #tpu.memory_space<vmem>>, vector<2x14x288xbf16>,
    %c0_85 = arith.constant 0 : index
    %c2_86 = arith.constant 2 : index
    %c0_87 = arith.constant 0 : index
    %161 = vector.load %arg10[%c0_85, %c2_86, %c0_87] : memref<2x18x288xbf16, #tpu.memory_space<vmem>>, vector<2x14x288xbf16>
    %c0_88 = arith.constant 0 : index
    %c0_89 = arith.constant 0 : index
    %c576 = arith.constant 576 : index
    %162 = vector.load %arg11[%c0_88, %c0_89, %c576] : memref<2x16x1440xbf16, #tpu.memory_space<vmem>>, vector<2x14x288xbf16>
    tpu.vector_store %arg11[%c0_88, %c0_89, %c576], %161 {strides = array<i32>} : memref<2x16x1440xbf16, #tpu.memory_space<vmem>>, vector<2x14x288xbf16>,
    %c0_90 = arith.constant 0 : index
    %c3_91 = arith.constant 3 : index
    %c0_92 = arith.constant 0 : index
    %163 = vector.load %arg10[%c0_90, %c3_91, %c0_92] : memref<2x18x288xbf16, #tpu.memory_space<vmem>>, vector<2x14x288xbf16>
    %c0_93 = arith.constant 0 : index
    %c0_94 = arith.constant 0 : index
    %c864 = arith.constant 864 : index
    %164 = vector.load %arg11[%c0_93, %c0_94, %c864] : memref<2x16x1440xbf16, #tpu.memory_space<vmem>>, vector<2x14x288xbf16>
    tpu.vector_store %arg11[%c0_93, %c0_94, %c864], %163 {strides = array<i32>} : memref<2x16x1440xbf16, #tpu.memory_space<vmem>>, vector<2x14x288xbf16>,
    %c0_95 = arith.constant 0 : index
    %c4_96 = arith.constant 4 : index
    %c0_97 = arith.constant 0 : index
    %165 = vector.load %arg10[%c0_95, %c4_96, %c0_97] : memref<2x18x288xbf16, #tpu.memory_space<vmem>>, vector<2x14x288xbf16>
    %c0_98 = arith.constant 0 : index
    %c0_99 = arith.constant 0 : index
    %c1152 = arith.constant 1152 : index
    %166 = vector.load %arg11[%c0_98, %c0_99, %c1152] : memref<2x16x1440xbf16, #tpu.memory_space<vmem>>, vector<2x14x288xbf16>
    tpu.vector_store %arg11[%c0_98, %c0_99, %c1152], %165 {strides = array<i32>} : memref<2x16x1440xbf16, #tpu.memory_space<vmem>>, vector<2x14x288xbf16>,
    %c0_100 = arith.constant 0 : index
    %c0_101 = arith.constant 0 : index
    %c0_102 = arith.constant 0 : index
    %167 = vector.load %arg11[%c0_100, %c0_101, %c0_102] : memref<2x16x1440xbf16, #tpu.memory_space<vmem>>, vector<2x16x1440xbf16>
    %168 = vector.shape_cast %167 : vector<2x16x1440xbf16> to vector<32x1440xbf16>
    %c0_103 = arith.constant 0 : index
    %c0_104 = arith.constant 0 : index
    %169 = vector.load %arg4[%c0_103, %c0_104] : memref<1440x448xbf16, #tpu.memory_space<vmem>>, vector<1440x448xbf16>
    %cst_105 = arith.constant dense<0.000000e+00> : vector<32x448xf32>
    %170 = tpu.matmul %168, %169, %cst_105 {dimension_numbers = #tpu.dot_dimension_numbers<[1], [0], [0], [1], [0, 0, 1, 1], [], []>} : vector<32x1440xbf16>, vector<1440x448xbf16>, vector<32x448xf32> -> vector<32x448xf32>
    %c0_106 = arith.constant 0 : index
    %c0_107 = arith.constant 0 : index
    %171 = vector.load %arg5[%c0_106, %c0_107] : memref<1x448xf32, #tpu.memory_space<vmem>>, vector<1x448xf32>
    %172 = vector.broadcast %171 : vector<1x448xf32> to vector<32x448xf32>
    %173 = arith.addf %170, %172 : vector<32x448xf32>
    %cst_108 = arith.constant 0.000000e+00 : f32
    %174 = vector.broadcast %cst_108 : f32 to vector<32x448xf32>
    %175 = arith.maximumf %173, %174 : vector<32x448xf32>
    %176 = vector.shape_cast %175 : vector<32x448xf32> to vector<2x16x448xf32>
    %177 = vector.extract_strided_slice %176 {offsets = [0, 0, 0], sizes = [2, 16, 224], strides = [1, 1, 1]} : vector<2x16x448xf32> to vector<2x16x224xf32>
    %178 = vector.extract_strided_slice %176 {offsets = [0, 0, 224], sizes = [2, 16, 224], strides = [1, 1, 1]} : vector<2x16x448xf32> to vector<2x16x224xf32>
    %179 = arith.maximumf %177, %178 : vector<2x16x224xf32>
    %180 = vector.extract_strided_slice %179 {offsets = [0, 0, 0], sizes = [2, 1, 224], strides = [1, 1, 1]} : vector<2x16x224xf32> to vector<2x1x224xf32>
    %181 = vector.shape_cast %180 : vector<2x1x224xf32> to vector<2x224xf32>
    %182 = vector.extract_strided_slice %179 {offsets = [0, 1, 0], sizes = [2, 1, 224], strides = [1, 1, 1]} : vector<2x16x224xf32> to vector<2x1x224xf32>
    %183 = vector.shape_cast %182 : vector<2x1x224xf32> to vector<2x224xf32>
    %184 = arith.maximumf %181, %183 : vector<2x224xf32>
    %185 = arith.truncf %184 : vector<2x224xf32> to vector<2x224xbf16>
    %c0_109 = arith.constant 0 : index
    %c0_110 = arith.constant 0 : index
    %186 = vector.load %arg12[%c0_109, %c0_110] : memref<2x1568xbf16, #tpu.memory_space<vmem>>, vector<2x224xbf16>
    tpu.vector_store %arg12[%c0_109, %c0_110], %185 {strides = array<i32>} : memref<2x1568xbf16, #tpu.memory_space<vmem>>, vector<2x224xbf16>,
    %187 = vector.extract_strided_slice %179 {offsets = [0, 2, 0], sizes = [2, 1, 224], strides = [1, 1, 1]} : vector<2x16x224xf32> to vector<2x1x224xf32>
    %188 = vector.shape_cast %187 : vector<2x1x224xf32> to vector<2x224xf32>
    %189 = vector.extract_strided_slice %179 {offsets = [0, 3, 0], sizes = [2, 1, 224], strides = [1, 1, 1]} : vector<2x16x224xf32> to vector<2x1x224xf32>
    %190 = vector.shape_cast %189 : vector<2x1x224xf32> to vector<2x224xf32>
    %191 = arith.maximumf %188, %190 : vector<2x224xf32>
    %192 = arith.truncf %191 : vector<2x224xf32> to vector<2x224xbf16>
    %c0_111 = arith.constant 0 : index
    %c224 = arith.constant 224 : index
    %193 = vector.load %arg12[%c0_111, %c224] : memref<2x1568xbf16, #tpu.memory_space<vmem>>, vector<2x224xbf16>
    tpu.vector_store %arg12[%c0_111, %c224], %192 {strides = array<i32>} : memref<2x1568xbf16, #tpu.memory_space<vmem>>, vector<2x224xbf16>,
    %194 = vector.extract_strided_slice %179 {offsets = [0, 4, 0], sizes = [2, 1, 224], strides = [1, 1, 1]} : vector<2x16x224xf32> to vector<2x1x224xf32>
    %195 = vector.shape_cast %194 : vector<2x1x224xf32> to vector<2x224xf32>
    %196 = vector.extract_strided_slice %179 {offsets = [0, 5, 0], sizes = [2, 1, 224], strides = [1, 1, 1]} : vector<2x16x224xf32> to vector<2x1x224xf32>
    %197 = vector.shape_cast %196 : vector<2x1x224xf32> to vector<2x224xf32>
    %198 = arith.maximumf %195, %197 : vector<2x224xf32>
    %199 = arith.truncf %198 : vector<2x224xf32> to vector<2x224xbf16>
    %c0_112 = arith.constant 0 : index
    %c448 = arith.constant 448 : index
    %200 = vector.load %arg12[%c0_112, %c448] : memref<2x1568xbf16, #tpu.memory_space<vmem>>, vector<2x224xbf16>
    tpu.vector_store %arg12[%c0_112, %c448], %199 {strides = array<i32>} : memref<2x1568xbf16, #tpu.memory_space<vmem>>, vector<2x224xbf16>,
    %201 = vector.extract_strided_slice %179 {offsets = [0, 6, 0], sizes = [2, 1, 224], strides = [1, 1, 1]} : vector<2x16x224xf32> to vector<2x1x224xf32>
    %202 = vector.shape_cast %201 : vector<2x1x224xf32> to vector<2x224xf32>
    %203 = vector.extract_strided_slice %179 {offsets = [0, 7, 0], sizes = [2, 1, 224], strides = [1, 1, 1]} : vector<2x16x224xf32> to vector<2x1x224xf32>
    %204 = vector.shape_cast %203 : vector<2x1x224xf32> to vector<2x224xf32>
    %205 = arith.maximumf %202, %204 : vector<2x224xf32>
    %206 = arith.truncf %205 : vector<2x224xf32> to vector<2x224xbf16>
    %c0_113 = arith.constant 0 : index
    %c672 = arith.constant 672 : index
    %207 = vector.load %arg12[%c0_113, %c672] : memref<2x1568xbf16, #tpu.memory_space<vmem>>, vector<2x224xbf16>
    tpu.vector_store %arg12[%c0_113, %c672], %206 {strides = array<i32>} : memref<2x1568xbf16, #tpu.memory_space<vmem>>, vector<2x224xbf16>,
    %208 = vector.extract_strided_slice %179 {offsets = [0, 8, 0], sizes = [2, 1, 224], strides = [1, 1, 1]} : vector<2x16x224xf32> to vector<2x1x224xf32>
    %209 = vector.shape_cast %208 : vector<2x1x224xf32> to vector<2x224xf32>
    %210 = vector.extract_strided_slice %179 {offsets = [0, 9, 0], sizes = [2, 1, 224], strides = [1, 1, 1]} : vector<2x16x224xf32> to vector<2x1x224xf32>
    %211 = vector.shape_cast %210 : vector<2x1x224xf32> to vector<2x224xf32>
    %212 = arith.maximumf %209, %211 : vector<2x224xf32>
    %213 = arith.truncf %212 : vector<2x224xf32> to vector<2x224xbf16>
    %c0_114 = arith.constant 0 : index
    %c896 = arith.constant 896 : index
    %214 = vector.load %arg12[%c0_114, %c896] : memref<2x1568xbf16, #tpu.memory_space<vmem>>, vector<2x224xbf16>
    tpu.vector_store %arg12[%c0_114, %c896], %213 {strides = array<i32>} : memref<2x1568xbf16, #tpu.memory_space<vmem>>, vector<2x224xbf16>,
    %215 = vector.extract_strided_slice %179 {offsets = [0, 10, 0], sizes = [2, 1, 224], strides = [1, 1, 1]} : vector<2x16x224xf32> to vector<2x1x224xf32>
    %216 = vector.shape_cast %215 : vector<2x1x224xf32> to vector<2x224xf32>
    %217 = vector.extract_strided_slice %179 {offsets = [0, 11, 0], sizes = [2, 1, 224], strides = [1, 1, 1]} : vector<2x16x224xf32> to vector<2x1x224xf32>
    %218 = vector.shape_cast %217 : vector<2x1x224xf32> to vector<2x224xf32>
    %219 = arith.maximumf %216, %218 : vector<2x224xf32>
    %220 = arith.truncf %219 : vector<2x224xf32> to vector<2x224xbf16>
    %c0_115 = arith.constant 0 : index
    %c1120 = arith.constant 1120 : index
    %221 = vector.load %arg12[%c0_115, %c1120] : memref<2x1568xbf16, #tpu.memory_space<vmem>>, vector<2x224xbf16>
    tpu.vector_store %arg12[%c0_115, %c1120], %220 {strides = array<i32>} : memref<2x1568xbf16, #tpu.memory_space<vmem>>, vector<2x224xbf16>,
    %222 = vector.extract_strided_slice %179 {offsets = [0, 12, 0], sizes = [2, 1, 224], strides = [1, 1, 1]} : vector<2x16x224xf32> to vector<2x1x224xf32>
    %223 = vector.shape_cast %222 : vector<2x1x224xf32> to vector<2x224xf32>
    %224 = vector.extract_strided_slice %179 {offsets = [0, 13, 0], sizes = [2, 1, 224], strides = [1, 1, 1]} : vector<2x16x224xf32> to vector<2x1x224xf32>
    %225 = vector.shape_cast %224 : vector<2x1x224xf32> to vector<2x224xf32>
    %226 = arith.maximumf %223, %225 : vector<2x224xf32>
    %227 = arith.truncf %226 : vector<2x224xf32> to vector<2x224xbf16>
    %c0_116 = arith.constant 0 : index
    %c1344 = arith.constant 1344 : index
    %228 = vector.load %arg12[%c0_116, %c1344] : memref<2x1568xbf16, #tpu.memory_space<vmem>>, vector<2x224xbf16>
    tpu.vector_store %arg12[%c0_116, %c1344], %227 {strides = array<i32>} : memref<2x1568xbf16, #tpu.memory_space<vmem>>, vector<2x224xbf16>,
    %c0_117 = arith.constant 0 : index
    %c0_118 = arith.constant 0 : index
    %229 = vector.load %arg12[%c0_117, %c0_118] : memref<2x1568xbf16, #tpu.memory_space<vmem>>, vector<2x1568xbf16>
    %c0_119 = arith.constant 0 : index
    %c0_120 = arith.constant 0 : index
    %230 = vector.load %arg6[%c0_119, %c0_120] : memref<1568x128xbf16, #tpu.memory_space<vmem>>, vector<1568x128xbf16>
    %cst_121 = arith.constant dense<0.000000e+00> : vector<2x128xf32>
    %231 = tpu.matmul %229, %230, %cst_121 {dimension_numbers = #tpu.dot_dimension_numbers<[1], [0], [0], [1], [0, 0, 1, 1], [], []>} : vector<2x1568xbf16>, vector<1568x128xbf16>, vector<2x128xf32> -> vector<2x128xf32>
    %c0_122 = arith.constant 0 : index
    %c0_123 = arith.constant 0 : index
    %232 = vector.load %arg7[%c0_122, %c0_123] : memref<1x128xf32, #tpu.memory_space<vmem>>, vector<1x128xf32>
    %233 = vector.broadcast %232 : vector<1x128xf32> to vector<2x128xf32>
    %234 = arith.addf %231, %233 : vector<2x128xf32>
    %c0_124 = arith.constant 0 : index
    %c0_125 = arith.constant 0 : index
    %235 = vector.load %arg8[%c0_124, %c0_125] : memref<2x128xf32, #tpu.memory_space<vmem>>, vector<2x128xf32>
    tpu.vector_store %arg8[%c0_124, %c0_125], %234 {strides = array<i32>} : memref<2x128xf32, #tpu.memory_space<vmem>>, vector<2x128xf32>,
    return
  }
  func.func @transform_0(%arg0: i32) -> (i32, i32, i32) {
    %c0_i32 = arith.constant 0 : i32
    %c0_i32_0 = arith.constant 0 : i32
    %c0_i32_1 = arith.constant 0 : i32
    return %arg0, %c0_i32, %c0_i32_0 : i32, i32, i32
  }
  func.func @transform_1(%arg0: i32) -> (i32, i32) {
    %c0_i32 = arith.constant 0 : i32
    %c0_i32_0 = arith.constant 0 : i32
    %c0_i32_1 = arith.constant 0 : i32
    return %c0_i32, %c0_i32_0 : i32, i32
  }
  func.func @transform_2(%arg0: i32) -> (i32, i32) {
    %c0_i32 = arith.constant 0 : i32
    %c0_i32_0 = arith.constant 0 : i32
    %c0_i32_1 = arith.constant 0 : i32
    return %c0_i32, %c0_i32_0 : i32, i32
  }
  func.func @transform_3(%arg0: i32) -> (i32, i32) {
    %c0_i32 = arith.constant 0 : i32
    %c0_i32_0 = arith.constant 0 : i32
    %c0_i32_1 = arith.constant 0 : i32
    return %c0_i32, %c0_i32_0 : i32, i32
  }
  func.func @transform_4(%arg0: i32) -> (i32, i32) {
    %c0_i32 = arith.constant 0 : i32
    %c0_i32_0 = arith.constant 0 : i32
    %c0_i32_1 = arith.constant 0 : i32
    return %c0_i32, %c0_i32_0 : i32, i32
  }
  func.func @transform_5(%arg0: i32) -> (i32, i32) {
    %c0_i32 = arith.constant 0 : i32
    %c0_i32_0 = arith.constant 0 : i32
    %c0_i32_1 = arith.constant 0 : i32
    return %c0_i32, %c0_i32_0 : i32, i32
  }
  func.func @transform_6(%arg0: i32) -> (i32, i32) {
    %c0_i32 = arith.constant 0 : i32
    %c0_i32_0 = arith.constant 0 : i32
    %c0_i32_1 = arith.constant 0 : i32
    return %c0_i32, %c0_i32_0 : i32, i32
  }
  func.func @transform_7(%arg0: i32) -> (i32, i32) {
    %c0_i32 = arith.constant 0 : i32
    %c0_i32_0 = arith.constant 0 : i32
    return %arg0, %c0_i32 : i32, i32
  }
}

</mosaic_0001>

<llo_original>
// kernel: cnn_forward.1
$region0: #{cnn_forward.1}
  #allocation0 [shape = 'u32[]', space=smem, size = 0x4, offset = 0x4, fixed_abs, tag = 'smem constant byte address 0x4 - core index']
  #allocation1 [shape = 'u32[144,128]{1,0:T(1,128)}', space=vmem, size = 0x12000, scoped, tag = 'internal scratch']
  #allocation2 [shape = 'bf16[2,32,160]{2,1,0:T(8,128)(2,1)}', space=vmem, size = 0x8000, scoped, tag = 'scratch operand']
  #allocation3 [shape = 'bf16[2,18,288]{2,1,0:T(8,128)(2,1)}', space=vmem, size = 0x9000, scoped, tag = 'scratch operand']
  #allocation4 [shape = 'bf16[2,16,1440]{2,1,0:T(8,128)(2,1)}', space=vmem, size = 0x18000, scoped, tag = 'scratch operand']
  #allocation5 [shape = 'bf16[2,1568]{1,0:T(2,128)(2,1)}', space=vmem, size = 0x1a00, scoped, tag = 'scratch operand']
  %s0 = inlined_call_operand.vmem [shape: bf16[2,32,32], index: 0, kind: input, shape index: {}]
  %s1 = inlined_call_operand.vmem [shape: bf16[160,448], index: 1, kind: input, shape index: {}]
  %s2 = inlined_call_operand.vmem [shape: f32[1,448], index: 2, kind: input, shape index: {}]
  %s3 = inlined_call_operand.vmem [shape: bf16[1440,448], index: 3, kind: input, shape index: {}]
  %s4 = inlined_call_operand.vmem [shape: f32[1,448], index: 4, kind: input, shape index: {}]
  %s5 = inlined_call_operand.vmem [shape: bf16[1568,128], index: 5, kind: input, shape index: {}]
  %s6 = inlined_call_operand.vmem [shape: f32[1,128], index: 6, kind: input, shape index: {}]
  %s7 = inlined_call_operand.hbm [shape: f32[2,128], index: 7, kind: output, shape index: {}]
  %s8 = sld [smem:[#allocation0]]
  $region38: #{cnn_forward.1} parent=0
    _
  %s10 = ssub.s32 1, %s8
  %s11 = scalar_select 0, %s10, %s8
  $region1: #{cnn_forward.1} parent=0
    #allocation6 [shape = 'u8[1024]{0}', space=vmem, size = 0x400, scoped, tag = 'output window, operand 0, single buffered']
    #allocation7 [shape = 's32[1]{0}', space=sflag, size = 0x4, scoped, tag = 'scoped memory for cnn_forward.1']
    %12 = vsyncpa [#allocation7], 0
    // Predicated region
    $region2: #{cnn_forward.1} parent=1 // pred_check
      _
    $region3: #{cnn_forward.1} parent=1 // pred_check_branch
      %14 = sbr.rel (0) target = $region5
    $region4: #{cnn_forward.1} parent=1 // pred_region
      _
    $region5: #{cnn_forward.1} parent=1 // pred_fallthru
      _
    // Predicated region
    $region6: #{cnn_forward.1} parent=1 // pred_check
      _
    $region7: #{cnn_forward.1} parent=1 // pred_check_branch
      %16 = sbr.rel (0) target = $region9
    $region8: #{cnn_forward.1} parent=1 // pred_region
      _
    $region9: #{cnn_forward.1} parent=1 // pred_fallthru
      _
    // Predicated region
    $region10: #{cnn_forward.1} parent=1 // pred_check
      _
    $region11: #{cnn_forward.1} parent=1 // pred_check_branch
      %18 = sbr.rel (0) target = $region13
    $region12: #{cnn_forward.1} parent=1 // pred_region
      _
    $region13: #{cnn_forward.1} parent=1 // pred_fallthru
      _
    // Predicated region
    $region14: #{cnn_forward.1} parent=1 // pred_check
      _
    $region15: #{cnn_forward.1} parent=1 // pred_check_branch
      %20 = sbr.rel (0) target = $region17
    $region16: #{cnn_forward.1} parent=1 // pred_region
      _
    $region17: #{cnn_forward.1} parent=1 // pred_fallthru
      _
    // Predicated region
    $region18: #{cnn_forward.1} parent=1 // pred_check
      _
    $region19: #{cnn_forward.1} parent=1 // pred_check_branch
      %22 = sbr.rel (0) target = $region21
    $region20: #{cnn_forward.1} parent=1 // pred_region
      _
    $region21: #{cnn_forward.1} parent=1 // pred_fallthru
      _
    // Predicated region
    $region22: #{cnn_forward.1} parent=1 // pred_check
      _
    $region23: #{cnn_forward.1} parent=1 // pred_check_branch
      %24 = sbr.rel (0) target = $region25
    $region24: #{cnn_forward.1} parent=1 // pred_region
      _
    $region25: #{cnn_forward.1} parent=1 // pred_fallthru
      _
    // Predicated region
    $region26: #{cnn_forward.1} parent=1 // pred_check
      _
    $region27: #{cnn_forward.1} parent=1 // pred_check_branch
      %26 = sbr.rel (0) target = $region29
    $region28: #{cnn_forward.1} parent=1 // pred_region
      _
    $region29: #{cnn_forward.1} parent=1 // pred_fallthru
      _
    %v28 = vld [vmem:[%s0] sm:$0xf]
    %v29 = vld [vmem:[%s0 + $0x4] sm:$0xf]
    %v30 = vld [vmem:[%s0 + $0x8] sm:$0xf]
    %v31 = vld [vmem:[%s0 + $0xc] sm:$0x3]
    %v32 = vld [vmem:[%s0 + $0x10] sm:$0xf]
    %v33 = vld [vmem:[%s0 + $0x14] sm:$0xf]
    %v34 = vld [vmem:[%s0 + $0x18] sm:$0xf]
    %v35 = vld [vmem:[%s0 + $0x1c] sm:$0x3]
    %vm36 = vcmask 257024
    %37 = vst.msk [vmem:[#allocation2] sm:$0xf] %vm36, %v28
    %38 = vst.msk [vmem:[#allocation2 + $0x8] sm:$0xf] %vm36, %v29
    %39 = vst.msk [vmem:[#allocation2 + $0x10] sm:$0xf] %vm36, %v30
    %vm40 = vcmask 254976
    %41 = vst.msk [vmem:[#allocation2 + $0x18] sm:$0x3] %vm40, %v31
    %42 = vst.msk [vmem:[#allocation2 + $0x20] sm:$0xf] %vm36, %v32
    %43 = vst.msk [vmem:[#allocation2 + $0x28] sm:$0xf] %vm36, %v33
    %44 = vst.msk [vmem:[#allocation2 + $0x30] sm:$0xf] %vm36, %v34
    %45 = vst.msk [vmem:[#allocation2 + $0x38] sm:$0x3] %vm40, %v35
    %v46 = vld [vmem:[%s0] sm:$0xf]
    %v47 = vld [vmem:[%s0 + $0x4] sm:$0xf]
    %v48 = vld [vmem:[%s0 + $0x8] sm:$0xf]
    %v49 = vld [vmem:[%s0 + $0xc] sm:$0x7]
    %v50 = vld [vmem:[%s0 + $0x10] sm:$0xf]
    %v51 = vld [vmem:[%s0 + $0x14] sm:$0xf]
    %v52 = vld [vmem:[%s0 + $0x18] sm:$0xf]
    %v53 = vld [vmem:[%s0 + $0x1c] sm:$0x7]
    %vm54 = vsmask.f32 3328
    %vm55 = vsmask.f32 7440
    %vm56 = vmor %vm54, %vm55
    %v58 = vshrl.u32 %v46, 16
    %v60 = vrot.slane %v58, 4
    %v61 = vshll.u32 %v46, 16
    %v63 = vrot.slane %v61, 5
    %v64 = vor.u32 %v60, %v63
    %v65 = vrot.slane %v64, 4
    %v67 = vshll.u32 %v47, 16
    %v69 = vrot.slane %v67, 5
    %v70 = vsel %vm56, %v65, %v69
    %v71 = vshrl.u32 %v47, 16
    %v73 = vrot.slane %v71, 4
    %v74 = vor.u32 %v73, %v69
    %v75 = vrot.slane %v74, 4
    %v77 = vshll.u32 %v48, 16
    %v79 = vrot.slane %v77, 5
    %v80 = vsel %vm56, %v75, %v79
    %v81 = vshrl.u32 %v48, 16
    %v83 = vrot.slane %v81, 4
    %v84 = vor.u32 %v83, %v79
    %v85 = vrot.slane %v84, 4
    %v87 = vshll.u32 %v49, 16
    %v89 = vrot.slane %v87, 5
    %v90 = vsel %vm56, %v85, %v89
    %v91 = vshrl.u32 %v49, 16
    %v93 = vrot.slane %v91, 4
    %v94 = vor.u32 %v93, %v89
    %v95 = vrot.slane %v94, 4
    %v97 = vshrl.u32 %v50, 16
    %v99 = vrot.slane %v97, 4
    %v100 = vshll.u32 %v50, 16
    %v102 = vrot.slane %v100, 5
    %v103 = vor.u32 %v99, %v102
    %v104 = vrot.slane %v103, 4
    %v106 = vshll.u32 %v51, 16
    %v108 = vrot.slane %v106, 5
    %v109 = vsel %vm56, %v104, %v108
    %v110 = vshrl.u32 %v51, 16
    %v112 = vrot.slane %v110, 4
    %v113 = vor.u32 %v112, %v108
    %v114 = vrot.slane %v113, 4
    %v116 = vshll.u32 %v52, 16
    %v118 = vrot.slane %v116, 5
    %v119 = vsel %vm56, %v114, %v118
    %v120 = vshrl.u32 %v52, 16
    %v122 = vrot.slane %v120, 4
    %v123 = vor.u32 %v122, %v118
    %v124 = vrot.slane %v123, 4
    %v126 = vshll.u32 %v53, 16
    %v128 = vrot.slane %v126, 5
    %v129 = vsel %vm56, %v124, %v128
    %v130 = vshrl.u32 %v53, 16
    %v132 = vrot.slane %v130, 4
    %v133 = vor.u32 %v132, %v128
    %v134 = vrot.slane %v133, 4
    %135 = vrot.lane.b32.xlu0 %v70, 32
    %v136 = vpop.permute.xlu0 %135
    %137 = vrot.lane.b32.xlu0 %v80, 32
    %v138 = vpop.permute.xlu0 %137
    %139 = vrot.lane.b32.xlu0 %v90, 32
    %v140 = vpop.permute.xlu0 %139
    %141 = vrot.lane.b32.xlu0 %v95, 32
    %v142 = vpop.permute.xlu0 %141
    %143 = vrot.lane.b32.xlu0 %v109, 32
    %v144 = vpop.permute.xlu0 %143
    %145 = vrot.lane.b32.xlu0 %v119, 32
    %v146 = vpop.permute.xlu0 %145
    %147 = vrot.lane.b32.xlu0 %v129, 32
    %v148 = vpop.permute.xlu0 %147
    %149 = vrot.lane.b32.xlu0 %v134, 32
    %v150 = vpop.permute.xlu0 %149
    %vm159 = vcmask 519424
    %160 = vst.msk [vmem:[#allocation2] sm:$0xf] %vm159, %v136
    %161 = vst.msk [vmem:[#allocation2 + $0x8] sm:$0xf] %vm159, %v138
    %162 = vst.msk [vmem:[#allocation2 + $0x10] sm:$0xf] %vm159, %v140
    %vm163 = vcmask 517376
    %164 = vst.msk [vmem:[#allocation2 + $0x18] sm:$0x3] %vm163, %v142
    %165 = vst.msk [vmem:[#allocation2 + $0x20] sm:$0xf] %vm159, %v144
    %166 = vst.msk [vmem:[#allocation2 + $0x28] sm:$0xf] %vm159, %v146
    %167 = vst.msk [vmem:[#allocation2 + $0x30] sm:$0xf] %vm159, %v148
    %168 = vst.msk [vmem:[#allocation2 + $0x38] sm:$0x3] %vm163, %v150
    %v169 = vld [vmem:[%s0] sm:$0xe]
    %v170 = vld [vmem:[%s0 + $0x4] sm:$0xf]
    %v171 = vld [vmem:[%s0 + $0x8] sm:$0xf]
    %v172 = vld [vmem:[%s0 + $0xc] sm:$0x7]
    %v173 = vld [vmem:[%s0 + $0x10] sm:$0xe]
    %v174 = vld [vmem:[%s0 + $0x14] sm:$0xf]
    %v175 = vld [vmem:[%s0 + $0x18] sm:$0xf]
    %v176 = vld [vmem:[%s0 + $0x1c] sm:$0x7]
    %vm185 = vcmask 1042432
    %vm186 = vcmask 1046532
    %vm187 = vmor %vm185, %vm186
    %v188 = vrot.slane %v169, 5
    %v189 = vrot.slane %v188, 4
    %v190 = vrot.slane %v170, 5
    %v191 = vsel %vm187, %v189, %v190
    %v192 = vrot.slane %v190, 4
    %v193 = vrot.slane %v171, 5
    %v194 = vsel %vm187, %v192, %v193
    %v195 = vrot.slane %v193, 4
    %v196 = vrot.slane %v172, 5
    %v197 = vsel %vm187, %v195, %v196
    %v198 = vrot.slane %v196, 4
    %v199 = vrot.slane %v173, 5
    %v200 = vrot.slane %v199, 4
    %v201 = vrot.slane %v174, 5
    %v202 = vsel %vm187, %v200, %v201
    %v203 = vrot.slane %v201, 4
    %v204 = vrot.slane %v175, 5
    %v205 = vsel %vm187, %v203, %v204
    %v206 = vrot.slane %v204, 4
    %v207 = vrot.slane %v176, 5
    %v208 = vsel %vm187, %v206, %v207
    %v209 = vrot.slane %v207, 4
    %210 = vrot.lane.b32.xlu0 %v191, 64
    %v211 = vpop.permute.xlu0 %210
    %212 = vrot.lane.b32.xlu0 %v194, 64
    %v213 = vpop.permute.xlu0 %212
    %214 = vrot.lane.b32.xlu0 %v197, 64
    %v215 = vpop.permute.xlu0 %214
    %216 = vrot.lane.b32.xlu0 %v198, 64
    %v217 = vpop.permute.xlu0 %216
    %218 = vrot.lane.b32.xlu0 %v202, 64
    %v219 = vpop.permute.xlu0 %218
    %220 = vrot.lane.b32.xlu0 %v205, 64
    %v221 = vpop.permute.xlu0 %220
    %222 = vrot.lane.b32.xlu0 %v208, 64
    %v223 = vpop.permute.xlu0 %222
    %224 = vrot.lane.b32.xlu0 %v209, 64
    %v225 = vpop.permute.xlu0 %224
    %vm234 = vcmask 781824
    %235 = vst.msk [vmem:[#allocation2] sm:$0xf] %vm234, %v211
    %236 = vst.msk [vmem:[#allocation2 + $0x8] sm:$0xf] %vm234, %v213
    %237 = vst.msk [vmem:[#allocation2 + $0x10] sm:$0xf] %vm234, %v215
    %vm238 = vcmask 779776
    %239 = vst.msk [vmem:[#allocation2 + $0x18] sm:$0x3] %vm238, %v217
    %240 = vst.msk [vmem:[#allocation2 + $0x20] sm:$0xf] %vm234, %v219
    %241 = vst.msk [vmem:[#allocation2 + $0x28] sm:$0xf] %vm234, %v221
    %242 = vst.msk [vmem:[#allocation2 + $0x30] sm:$0xf] %vm234, %v223
    %243 = vst.msk [vmem:[#allocation2 + $0x38] sm:$0x3] %vm238, %v225
    %v244 = vld [vmem:[%s0] sm:$0xe]
    %v245 = vld [vmem:[%s0 + $0x4] sm:$0xf]
    %v246 = vld [vmem:[%s0 + $0x8] sm:$0xf]
    %v247 = vld [vmem:[%s0 + $0xc] sm:$0xf]
    %v248 = vld [vmem:[%s0 + $0x10] sm:$0xe]
    %v249 = vld [vmem:[%s0 + $0x14] sm:$0xf]
    %v250 = vld [vmem:[%s0 + $0x18] sm:$0xf]
    %v251 = vld [vmem:[%s0 + $0x1c] sm:$0xf]
    %vm252 = vsmask.f32 2304
    %vm253 = vsmask.f32 6416
    %vm254 = vmor %vm252, %vm253
    %v256 = vshrl.u32 %v244, 16
    %v258 = vrot.slane %v256, 5
    %v259 = vshll.u32 %v244, 16
    %v261 = vrot.slane %v259, 6
    %v262 = vor.u32 %v258, %v261
    %v263 = vrot.slane %v262, 4
    %v265 = vshrl.u32 %v245, 16
    %v267 = vrot.slane %v265, 5
    %v268 = vshll.u32 %v245, 16
    %v270 = vrot.slane %v268, 6
    %v271 = vor.u32 %v267, %v270
    %v272 = vsel %vm254, %v263, %v271
    %v273 = vrot.slane %v271, 4
    %v275 = vshrl.u32 %v246, 16
    %v277 = vrot.slane %v275, 5
    %v278 = vshll.u32 %v246, 16
    %v280 = vrot.slane %v278, 6
    %v281 = vor.u32 %v277, %v280
    %v282 = vsel %vm254, %v273, %v281
    %v283 = vrot.slane %v281, 4
    %v285 = vshrl.u32 %v247, 16
    %v287 = vrot.slane %v285, 5
    %v288 = vshll.u32 %v247, 16
    %v290 = vrot.slane %v288, 6
    %v291 = vor.u32 %v287, %v290
    %v292 = vsel %vm254, %v283, %v291
    %v293 = vrot.slane %v291, 4
    %v295 = vshrl.u32 %v248, 16
    %v297 = vrot.slane %v295, 5
    %v298 = vshll.u32 %v248, 16
    %v300 = vrot.slane %v298, 6
    %v301 = vor.u32 %v297, %v300
    %v302 = vrot.slane %v301, 4
    %v304 = vshrl.u32 %v249, 16
    %v306 = vrot.slane %v304, 5
    %v307 = vshll.u32 %v249, 16
    %v309 = vrot.slane %v307, 6
    %v310 = vor.u32 %v306, %v309
    %v311 = vsel %vm254, %v302, %v310
    %v312 = vrot.slane %v310, 4
    %v314 = vshrl.u32 %v250, 16
    %v316 = vrot.slane %v314, 5
    %v317 = vshll.u32 %v250, 16
    %v319 = vrot.slane %v317, 6
    %v320 = vor.u32 %v316, %v319
    %v321 = vsel %vm254, %v312, %v320
    %v322 = vrot.slane %v320, 4
    %v324 = vshrl.u32 %v251, 16
    %v326 = vrot.slane %v324, 5
    %v327 = vshll.u32 %v251, 16
    %v329 = vrot.slane %v327, 6
    %v330 = vor.u32 %v326, %v329
    %v331 = vsel %vm254, %v322, %v330
    %v332 = vrot.slane %v330, 4
    %333 = vrot.lane.b32.xlu0 %v272, 96
    %v334 = vpop.permute.xlu0 %333
    %335 = vrot.lane.b32.xlu0 %v282, 96
    %v336 = vpop.permute.xlu0 %335
    %337 = vrot.lane.b32.xlu0 %v292, 96
    %v338 = vpop.permute.xlu0 %337
    %339 = vrot.lane.b32.xlu0 %v293, 96
    %v340 = vpop.permute.xlu0 %339
    %341 = vrot.lane.b32.xlu0 %v311, 96
    %v342 = vpop.permute.xlu0 %341
    %343 = vrot.lane.b32.xlu0 %v321, 96
    %v344 = vpop.permute.xlu0 %343
    %345 = vrot.lane.b32.xlu0 %v331, 96
    %v346 = vpop.permute.xlu0 %345
    %347 = vrot.lane.b32.xlu0 %v332, 96
    %v348 = vpop.permute.xlu0 %347
    %vm357 = vcmask 1044224
    %358 = vst.msk [vmem:[#allocation2] sm:$0xf] %vm357, %v334
    %359 = vst.msk [vmem:[#allocation2 + $0x8] sm:$0xf] %vm357, %v336
    %360 = vst.msk [vmem:[#allocation2 + $0x10] sm:$0xf] %vm357, %v338
    %vm361 = vcmask 1042176
    %362 = vst.msk [vmem:[#allocation2 + $0x18] sm:$0x3] %vm361, %v340
    %363 = vst.msk [vmem:[#allocation2 + $0x20] sm:$0xf] %vm357, %v342
    %364 = vst.msk [vmem:[#allocation2 + $0x28] sm:$0xf] %vm357, %v344
    %365 = vst.msk [vmem:[#allocation2 + $0x30] sm:$0xf] %vm357, %v346
    %366 = vst.msk [vmem:[#allocation2 + $0x38] sm:$0x3] %vm361, %v348
    %v367 = vld [vmem:[%s0] sm:$0xc]
    %v368 = vld [vmem:[%s0 + $0x4] sm:$0xf]
    %v369 = vld [vmem:[%s0 + $0x8] sm:$0xf]
    %v370 = vld [vmem:[%s0 + $0xc] sm:$0xf]
    %v371 = vld [vmem:[%s0 + $0x10] sm:$0xc]
    %v372 = vld [vmem:[%s0 + $0x14] sm:$0xf]
    %v373 = vld [vmem:[%s0 + $0x18] sm:$0xf]
    %v374 = vld [vmem:[%s0 + $0x1c] sm:$0xf]
    %vm383 = vcmask 1041408
    %vm384 = vcmask 1045508
    %vm385 = vmor %vm383, %vm384
    %v386 = vrot.slane %v367, 6
    %v387 = vrot.slane %v386, 4
    %v388 = vrot.slane %v368, 6
    %v389 = vsel %vm385, %v387, %v388
    %v390 = vrot.slane %v388, 4
    %v391 = vrot.slane %v369, 6
    %v392 = vsel %vm385, %v390, %v391
    %v393 = vrot.slane %v391, 4
    %v394 = vrot.slane %v370, 6
    %v395 = vsel %vm385, %v393, %v394
    %v396 = vrot.slane %v394, 4
    %v397 = vrot.slane %v371, 6
    %v398 = vrot.slane %v397, 4
    %v399 = vrot.slane %v372, 6
    %v400 = vsel %vm385, %v398, %v399
    %v401 = vrot.slane %v399, 4
    %v402 = vrot.slane %v373, 6
    %v403 = vsel %vm385, %v401, %v402
    %v404 = vrot.slane %v402, 4
    %v405 = vrot.slane %v374, 6
    %v406 = vsel %vm385, %v404, %v405
    %v407 = vrot.slane %v405, 4
    %416 = vst.msk [vmem:[#allocation2 + $0x4] sm:$0xf] %vm36, %v389
    %417 = vst.msk [vmem:[#allocation2 + $0xc] sm:$0xf] %vm36, %v392
    %418 = vst.msk [vmem:[#allocation2 + $0x14] sm:$0xf] %vm36, %v395
    %419 = vst.msk [vmem:[#allocation2 + $0x1c] sm:$0x3] %vm40, %v396
    %420 = vst.msk [vmem:[#allocation2 + $0x24] sm:$0xf] %vm36, %v400
    %421 = vst.msk [vmem:[#allocation2 + $0x2c] sm:$0xf] %vm36, %v403
    %422 = vst.msk [vmem:[#allocation2 + $0x34] sm:$0xf] %vm36, %v406
    %423 = vst.msk [vmem:[#allocation2 + $0x3c] sm:$0x3] %vm40, %v407
    %v424 = vld [vmem:[#allocation2] sm:$0xff]
    %v425 = vld [vmem:[#allocation2 + $0x8] sm:$0xff]
    %v426 = vld [vmem:[#allocation2 + $0x10] sm:$0xff]
    %v427 = vld [vmem:[#allocation2 + $0x18] sm:$0xff]
    %v428 = vld [vmem:[#allocation2 + $0x20] sm:$0xff]
    %v429 = vld [vmem:[#allocation2 + $0x28] sm:$0xff]
    %v430 = vld [vmem:[#allocation2 + $0x30] sm:$0xff]
    %v431 = vld [vmem:[#allocation2 + $0x38] sm:$0xff]
    %v432 = vld [vmem:[%s1] sm:$0xff]
    %v433 = vld [vmem:[%s1 + $0x8] sm:$0xff]
    %v434 = vld [vmem:[%s1 + $0x10] sm:$0xff]
    %v435 = vld [vmem:[%s1 + $0x18] sm:$0xff]
    %v436 = vld [vmem:[%s1 + $0x20] sm:$0xff]
    %v437 = vld [vmem:[%s1 + $0x28] sm:$0xff]
    %v438 = vld [vmem:[%s1 + $0x30] sm:$0xff]
    %v439 = vld [vmem:[%s1 + $0x38] sm:$0xff]
    %v440 = vld [vmem:[%s1 + $0x40] sm:$0xff]
    %v441 = vld [vmem:[%s1 + $0x48] sm:$0xff]
    %v442 = vld [vmem:[%s1 + $0x50] sm:$0xff]
    %v443 = vld [vmem:[%s1 + $0x58] sm:$0xff]
    %v444 = vld [vmem:[%s1 + $0x60] sm:$0xff]
    %v445 = vld [vmem:[%s1 + $0x68] sm:$0xff]
    %v446 = vld [vmem:[%s1 + $0x70] sm:$0xff]
    %v447 = vld [vmem:[%s1 + $0x78] sm:$0xff]
    %v448 = vld [vmem:[%s1 + $0x80] sm:$0xff]
    %v449 = vld [vmem:[%s1 + $0x88] sm:$0xff]
    %v450 = vld [vmem:[%s1 + $0x90] sm:$0xff]
    %v451 = vld [vmem:[%s1 + $0x98] sm:$0xff]
    %v452 = vld [vmem:[%s1 + $0xa0] sm:$0xff]
    %v453 = vld [vmem:[%s1 + $0xa8] sm:$0xff]
    %v454 = vld [vmem:[%s1 + $0xb0] sm:$0xff]
    %v455 = vld [vmem:[%s1 + $0xb8] sm:$0xff]
    %v456 = vld [vmem:[%s1 + $0xc0] sm:$0xff]
    %v457 = vld [vmem:[%s1 + $0xc8] sm:$0xff]
    %v458 = vld [vmem:[%s1 + $0xd0] sm:$0xff]
    %v459 = vld [vmem:[%s1 + $0xd8] sm:$0xff]
    %v460 = vld [vmem:[%s1 + $0xe0] sm:$0xff]
    %v461 = vld [vmem:[%s1 + $0xe8] sm:$0xff]
    %v462 = vld [vmem:[%s1 + $0xf0] sm:$0xff]
    %v463 = vld [vmem:[%s1 + $0xf8] sm:$0xff]
    %v464 = vld [vmem:[%s1 + $0x100] sm:$0xff]
    %v465 = vld [vmem:[%s1 + $0x108] sm:$0xff]
    %v466 = vld [vmem:[%s1 + $0x110] sm:$0xff]
    %v467 = vld [vmem:[%s1 + $0x118] sm:$0xff]
    %v468 = vld [vmem:[%s1 + $0x120] sm:$0xff]
    %v469 = vld [vmem:[%s1 + $0x128] sm:$0xff]
    %v470 = vld [vmem:[%s1 + $0x130] sm:$0xff]
    %v471 = vld [vmem:[%s1 + $0x138] sm:$0xff]
    %v472 = vld [vmem:[%s2] sm:$0xf]
    %v474 = vlaneseq
    %v475 = vshrl.u32 %v474, 7
    %v476 = vsub.s32 0, %v475
    %v477 = vrot.slane %v472, %v476
    %v478 = vlaneseq
    %v479 = vshrl.u32 %v478, 7
    %v480 = vsub.s32 1, %v479
    %v481 = vrot.slane %v472, %v480
    %v482 = vlaneseq
    %v483 = vshrl.u32 %v482, 7
    %v484 = vsub.s32 2, %v483
    %v485 = vrot.slane %v472, %v484
    %v486 = vlaneseq
    %v487 = vshrl.u32 %v486, 7
    %v488 = vsub.s32 3, %v487
    %v489 = vrot.slane %v472, %v488
    %v502 = vunpack.c.l.b16 %v424
    %v503 = vunpack.c.h.b16 %v424
    %v504 = vunpack.c.l.b16 %v425
    %v505 = vunpack.c.h.b16 %v425
    %v506 = vunpack.c.l.b16 %v426
    %v507 = vunpack.c.h.b16 %v426
    %v508 = vunpack.c.l.b16 %v427
    %v509 = vunpack.c.h.b16 %v427
    %v510 = vunpack.c.l.b16 %v428
    %v511 = vunpack.c.h.b16 %v428
    %v512 = vunpack.c.l.b16 %v429
    %v513 = vunpack.c.h.b16 %v429
    %v514 = vunpack.c.l.b16 %v430
    %v515 = vunpack.c.h.b16 %v430
    %v516 = vunpack.c.l.b16 %v431
    %v517 = vunpack.c.h.b16 %v431
    %v518 = vpack.c.b16 %v504, %v502
    %v519 = vpack.c.b16 %v505, %v503
    %v520 = vpack.c.b16 %v508, %v506
    %v521 = vpack.c.b16 %v509, %v507
    %v522 = vpack.c.b16 %v512, %v510
    %v523 = vpack.c.b16 %v513, %v511
    %v524 = vpack.c.b16 %v516, %v514
    %v525 = vpack.c.b16 %v517, %v515
    %v570 = vunpack.c.l.b16 %v432
    %v571 = vunpack.c.h.b16 %v432
    %v572 = vunpack.c.l.b16 %v433
    %v573 = vunpack.c.h.b16 %v433
    %v574 = vunpack.c.l.b16 %v434
    %v575 = vunpack.c.h.b16 %v434
    %v576 = vunpack.c.l.b16 %v435
    %v577 = vunpack.c.h.b16 %v435
    %v578 = vunpack.c.l.b16 %v436
    %v579 = vunpack.c.h.b16 %v436
    %v580 = vunpack.c.l.b16 %v437
    %v581 = vunpack.c.h.b16 %v437
    %v582 = vunpack.c.l.b16 %v438
    %v583 = vunpack.c.h.b16 %v438
    %v584 = vunpack.c.l.b16 %v439
    %v585 = vunpack.c.h.b16 %v439
    %v586 = vunpack.c.l.b16 %v440
    %v587 = vunpack.c.h.b16 %v440
    %v588 = vunpack.c.l.b16 %v441
    %v589 = vunpack.c.h.b16 %v441
    %v590 = vunpack.c.l.b16 %v442
    %v591 = vunpack.c.h.b16 %v442
    %v592 = vunpack.c.l.b16 %v443
    %v593 = vunpack.c.h.b16 %v443
    %v594 = vunpack.c.l.b16 %v444
    %v595 = vunpack.c.h.b16 %v444
    %v596 = vunpack.c.l.b16 %v445
    %v597 = vunpack.c.h.b16 %v445
    %v598 = vunpack.c.l.b16 %v446
    %v599 = vunpack.c.h.b16 %v446
    %v600 = vunpack.c.l.b16 %v447
    %v601 = vunpack.c.h.b16 %v447
    %v602 = vunpack.c.l.b16 %v448
    %v603 = vunpack.c.h.b16 %v448
    %v604 = vunpack.c.l.b16 %v449
    %v605 = vunpack.c.h.b16 %v449
    %v606 = vunpack.c.l.b16 %v450
    %v607 = vunpack.c.h.b16 %v450
    %v608 = vunpack.c.l.b16 %v451
    %v609 = vunpack.c.h.b16 %v451
    %v610 = vunpack.c.l.b16 %v452
    %v611 = vunpack.c.h.b16 %v452
    %v612 = vunpack.c.l.b16 %v453
    %v613 = vunpack.c.h.b16 %v453
    %v614 = vunpack.c.l.b16 %v454
    %v615 = vunpack.c.h.b16 %v454
    %v616 = vunpack.c.l.b16 %v455
    %v617 = vunpack.c.h.b16 %v455
    %v618 = vunpack.c.l.b16 %v456
    %v619 = vunpack.c.h.b16 %v456
    %v620 = vunpack.c.l.b16 %v457
    %v621 = vunpack.c.h.b16 %v457
    %v622 = vunpack.c.l.b16 %v458
    %v623 = vunpack.c.h.b16 %v458
    %v624 = vunpack.c.l.b16 %v459
    %v625 = vunpack.c.h.b16 %v459
    %v626 = vunpack.c.l.b16 %v460
    %v627 = vunpack.c.h.b16 %v460
    %v628 = vunpack.c.l.b16 %v461
    %v629 = vunpack.c.h.b16 %v461
    %v630 = vunpack.c.l.b16 %v462
    %v631 = vunpack.c.h.b16 %v462
    %v632 = vunpack.c.l.b16 %v463
    %v633 = vunpack.c.h.b16 %v463
    %v634 = vunpack.c.l.b16 %v464
    %v635 = vunpack.c.h.b16 %v464
    %v636 = vunpack.c.l.b16 %v465
    %v637 = vunpack.c.h.b16 %v465
    %v638 = vunpack.c.l.b16 %v466
    %v639 = vunpack.c.h.b16 %v466
    %v640 = vunpack.c.l.b16 %v467
    %v641 = vunpack.c.h.b16 %v467
    %v642 = vunpack.c.l.b16 %v468
    %v643 = vunpack.c.h.b16 %v468
    %v644 = vunpack.c.l.b16 %v469
    %v645 = vunpack.c.h.b16 %v469
    %v646 = vunpack.c.l.b16 %v470
    %v647 = vunpack.c.h.b16 %v470
    %v648 = vunpack.c.l.b16 %v471
    %v649 = vunpack.c.h.b16 %v471
    %v650 = vpack.c.b16 %v574, %v570
    %v651 = vpack.c.b16 %v575, %v571
    %v652 = vpack.c.b16 %v576, %v572
    %v653 = vpack.c.b16 %v577, %v573
    %v654 = vpack.c.b16 %v582, %v578
    %v655 = vpack.c.b16 %v583, %v579
    %v656 = vpack.c.b16 %v584, %v580
    %v657 = vpack.c.b16 %v585, %v581
    %v658 = vpack.c.b16 %v590, %v586
    %v659 = vpack.c.b16 %v591, %v587
    %v660 = vpack.c.b16 %v592, %v588
    %v661 = vpack.c.b16 %v593, %v589
    %v662 = vpack.c.b16 %v598, %v594
    %v663 = vpack.c.b16 %v599, %v595
    %v664 = vpack.c.b16 %v600, %v596
    %v665 = vpack.c.b16 %v601, %v597
    %v666 = vpack.c.b16 %v606, %v602
    %v667 = vpack.c.b16 %v607, %v603
    %v668 = vpack.c.b16 %v608, %v604
    %v669 = vpack.c.b16 %v609, %v605
    %v670 = vpack.c.b16 %v614, %v610
    %v671 = vpack.c.b16 %v615, %v611
    %v672 = vpack.c.b16 %v616, %v612
    %v673 = vpack.c.b16 %v617, %v613
    %v674 = vpack.c.b16 %v622, %v618
    %v675 = vpack.c.b16 %v623, %v619
    %v676 = vpack.c.b16 %v624, %v620
    %v677 = vpack.c.b16 %v625, %v621
    %v678 = vpack.c.b16 %v630, %v626
    %v679 = vpack.c.b16 %v631, %v627
    %v680 = vpack.c.b16 %v632, %v628
    %v681 = vpack.c.b16 %v633, %v629
    %v682 = vpack.c.b16 %v638, %v634
    %v683 = vpack.c.b16 %v639, %v635
    %v684 = vpack.c.b16 %v640, %v636
    %v685 = vpack.c.b16 %v641, %v637
    %v686 = vpack.c.b16 %v646, %v642
    %v687 = vpack.c.b16 %v647, %v643
    %v688 = vpack.c.b16 %v648, %v644
    %v689 = vpack.c.b16 %v649, %v645
    %vm730 = vcmask 261120
    %v732 = vsel %vm730, %v519, 0
    %v735 = vsel %vm730, %v521, 0
    %v738 = vsel %vm730, %v523, 0
    %v741 = vsel %vm730, %v525, 0
    %743 = vmatprep.subr.bf16.mxu0 %v679
    %744 = vmatpush1.bf16.msra.mxu0 %v678
    %745 = vmatprep.subr.bf16.mxu0 %v675
    %746 = vmatpush1.bf16.msra.mxu0 %v674
    %747 = vmatprep.subr.bf16.mxu0 %v671
    %748 = vmatpush1.bf16.msra.mxu0 %v670
    %749 = vmatprep.subr.bf16.mxu0 %v667
    %750 = vmatpush1.bf16.msra.mxu0 %v666
    %751 = vmatprep.subr.bf16.mxu0 %v663
    %752 = vmatpush1.bf16.msra.mxu0 %v662
    %753 = vmatprep.subr.bf16.mxu0 %v659
    %754 = vmatpush1.bf16.msra.mxu0 %v658
    %755 = vmatprep.subr.bf16.mxu0 %v655
    %756 = vmatpush1.bf16.msra.mxu0 %v654
    %757 = vmatprep.subr.bf16.mxu0 %v651
    %758 = vmatpush1.bf16.msra.mxu0 %v650
    %759 = vmatprep.subr.bf16.mxu0 0
    %760 = vmatpush2.bf16.msra.mxu0 0
    %761 = vmatprep.subr.bf16.mxu0 0
    %762 = vmatpush2.bf16.msra.mxu0 0
    %763 = vmatprep.subr.bf16.mxu0 0
    %764 = vmatpush2.bf16.msra.mxu0 0
    %765 = vmatprep.subr.bf16.mxu0 0
    %766 = vmatpush2.bf16.msra.mxu0 0
    %767 = vmatprep.subr.bf16.mxu0 0
    %768 = vmatpush2.bf16.msra.mxu0 0
    %769 = vmatprep.subr.bf16.mxu0 0
    %770 = vmatpush2.bf16.msra.mxu0 0
    %771 = vmatprep.subr.bf16.mxu0 %v687
    %772 = vmatpush2.bf16.msra.mxu0 %v686
    %773 = vmatprep.subr.bf16.mxu0 %v683
    %774 = vmatpush2.bf16.msra.mxu0 %v682
    %775 = vmatprep.mubr.bf16.mxu0 %v732
    %776 = vmatmul.mubr.bf16.gmra.mxu0 %v518
    %v777 = vpop.f32.mrf.mxu0
    %v778 = vadd.f32 %v477, %v777
    %v779 = vpop.f32.mrf.mxu0
    %v780 = vadd.f32 %v481, %v779
    %v781 = vpop.f32.mrf.mxu0
    %v782 = vadd.f32 %v477, %v781
    %v783 = vpop.f32.mrf.mxu0
    %v784 = vadd.f32 %v481, %v783
    %785 = vmatprep.mubr.bf16.mxu0 %v735
    %786 = vmatmul.mubr.bf16.gmra.mxu0 %v520
    %v787 = vpop.f32.mrf.mxu0
    %v788 = vadd.f32 %v477, %v787
    %v789 = vpop.f32.mrf.mxu0
    %v790 = vadd.f32 %v481, %v789
    %v791 = vpop.f32.mrf.mxu0
    %v792 = vadd.f32 %v477, %v791
    %v793 = vpop.f32.mrf.mxu0
    %v794 = vadd.f32 %v481, %v793
    %795 = vmatprep.mubr.bf16.mxu0 %v738
    %796 = vmatmul.mubr.bf16.gmra.mxu0 %v522
    %v797 = vpop.f32.mrf.mxu0
    %v798 = vadd.f32 %v477, %v797
    %v799 = vpop.f32.mrf.mxu0
    %v800 = vadd.f32 %v481, %v799
    %v801 = vpop.f32.mrf.mxu0
    %v802 = vadd.f32 %v477, %v801
    %v803 = vpop.f32.mrf.mxu0
    %v804 = vadd.f32 %v481, %v803
    %805 = vmatprep.mubr.bf16.mxu0 %v741
    %806 = vmatmul.mubr.bf16.gmra.mxu0 %v524
    %v807 = vpop.f32.mrf.mxu0
    %v808 = vadd.f32 %v477, %v807
    %v809 = vpop.f32.mrf.mxu0
    %v810 = vadd.f32 %v481, %v809
    %v811 = vpop.f32.mrf.mxu0
    %v812 = vadd.f32 %v477, %v811
    %v813 = vpop.f32.mrf.mxu0
    %v814 = vadd.f32 %v481, %v813
    %815 = vdwg.mxu0
    %816 = vmatprep.subr.bf16.mxu0 %v681
    %817 = vmatpush1.bf16.msra.mxu0 %v680
    %818 = vmatprep.subr.bf16.mxu0 %v677
    %819 = vmatpush1.bf16.msra.mxu0 %v676
    %820 = vmatprep.subr.bf16.mxu0 %v673
    %821 = vmatpush1.bf16.msra.mxu0 %v672
    %822 = vmatprep.subr.bf16.mxu0 %v669
    %823 = vmatpush1.bf16.msra.mxu0 %v668
    %824 = vmatprep.subr.bf16.mxu0 %v665
    %825 = vmatpush1.bf16.msra.mxu0 %v664
    %826 = vmatprep.subr.bf16.mxu0 %v661
    %827 = vmatpush1.bf16.msra.mxu0 %v660
    %828 = vmatprep.subr.bf16.mxu0 %v657
    %829 = vmatpush1.bf16.msra.mxu0 %v656
    %830 = vmatprep.subr.bf16.mxu0 %v653
    %831 = vmatpush1.bf16.msra.mxu0 %v652
    %832 = vmatprep.subr.bf16.mxu0 0
    %833 = vmatpush2.bf16.msra.mxu0 0
    %834 = vmatprep.subr.bf16.mxu0 0
    %835 = vmatpush2.bf16.msra.mxu0 0
    %836 = vmatprep.subr.bf16.mxu0 0
    %837 = vmatpush2.bf16.msra.mxu0 0
    %838 = vmatprep.subr.bf16.mxu0 0
    %839 = vmatpush2.bf16.msra.mxu0 0
    %840 = vmatprep.subr.bf16.mxu0 0
    %841 = vmatpush2.bf16.msra.mxu0 0
    %842 = vmatprep.subr.bf16.mxu0 0
    %843 = vmatpush2.bf16.msra.mxu0 0
    %844 = vmatprep.subr.bf16.mxu0 %v689
    %845 = vmatpush2.bf16.msra.mxu0 %v688
    %846 = vmatprep.subr.bf16.mxu0 %v685
    %847 = vmatpush2.bf16.msra.mxu0 %v684
    %848 = vmatprep.mubr.bf16.mxu0 %v732
    %849 = vmatmul.mubr.bf16.gmra.mxu0 %v518
    %v850 = vpop.f32.mrf.mxu0
    %v851 = vadd.f32 %v485, %v850
    %v852 = vpop.f32.mrf.mxu0
    %v853 = vadd.f32 %v489, %v852
    %v854 = vpop.f32.mrf.mxu0
    %v855 = vadd.f32 %v485, %v854
    %v856 = vpop.f32.mrf.mxu0
    %v857 = vadd.f32 %v489, %v856
    %858 = vmatprep.mubr.bf16.mxu0 %v735
    %859 = vmatmul.mubr.bf16.gmra.mxu0 %v520
    %v860 = vpop.f32.mrf.mxu0
    %v861 = vadd.f32 %v485, %v860
    %v862 = vpop.f32.mrf.mxu0
    %v863 = vadd.f32 %v489, %v862
    %v864 = vpop.f32.mrf.mxu0
    %v865 = vadd.f32 %v485, %v864
    %v866 = vpop.f32.mrf.mxu0
    %v867 = vadd.f32 %v489, %v866
    %868 = vmatprep.mubr.bf16.mxu0 %v738
    %869 = vmatmul.mubr.bf16.gmra.mxu0 %v522
    %v870 = vpop.f32.mrf.mxu0
    %v871 = vadd.f32 %v485, %v870
    %v872 = vpop.f32.mrf.mxu0
    %v873 = vadd.f32 %v489, %v872
    %v874 = vpop.f32.mrf.mxu0
    %v875 = vadd.f32 %v485, %v874
    %v876 = vpop.f32.mrf.mxu0
    %v877 = vadd.f32 %v489, %v876
    %878 = vmatprep.mubr.bf16.mxu0 %v741
    %879 = vmatmul.mubr.bf16.gmra.mxu0 %v524
    %v880 = vpop.f32.mrf.mxu0
    %v881 = vadd.f32 %v485, %v880
    %v882 = vpop.f32.mrf.mxu0
    %v883 = vadd.f32 %v489, %v882
    %v884 = vpop.f32.mrf.mxu0
    %v885 = vadd.f32 %v485, %v884
    %v886 = vpop.f32.mrf.mxu0
    %v887 = vadd.f32 %v489, %v886
    %888 = vdwg.mxu0
    %v889 = vmax.f32 %v778, 0.0
    %v890 = vmax.f32 %v780, 0.0
    %v891 = vmax.f32 %v851, 0.0
    %v892 = vmax.f32 %v853, 0.0
    %v893 = vmax.f32 %v782, 0.0
    %v894 = vmax.f32 %v784, 0.0
    %v895 = vmax.f32 %v855, 0.0
    %v896 = vmax.f32 %v857, 0.0
    %v897 = vmax.f32 %v788, 0.0
    %v898 = vmax.f32 %v790, 0.0
    %v899 = vmax.f32 %v861, 0.0
    %v900 = vmax.f32 %v863, 0.0
    %v901 = vmax.f32 %v792, 0.0
    %v902 = vmax.f32 %v794, 0.0
    %v903 = vmax.f32 %v865, 0.0
    %v904 = vmax.f32 %v867, 0.0
    %v905 = vmax.f32 %v798, 0.0
    %v906 = vmax.f32 %v800, 0.0
    %v907 = vmax.f32 %v871, 0.0
    %v908 = vmax.f32 %v873, 0.0
    %v909 = vmax.f32 %v802, 0.0
    %v910 = vmax.f32 %v804, 0.0
    %v911 = vmax.f32 %v875, 0.0
    %v912 = vmax.f32 %v877, 0.0
    %v913 = vmax.f32 %v808, 0.0
    %v914 = vmax.f32 %v810, 0.0
    %v915 = vmax.f32 %v881, 0.0
    %v916 = vmax.f32 %v883, 0.0
    %v917 = vmax.f32 %v812, 0.0
    %v918 = vmax.f32 %v814, 0.0
    %v919 = vmax.f32 %v885, 0.0
    %v920 = vmax.f32 %v887, 0.0
    %945 = vrot.lane.b32.xlu0 %v890, 32
    %v946 = vpop.permute.xlu0 %945
    %947 = vrot.lane.b32.xlu0 %v891, 32
    %v948 = vpop.permute.xlu0 %947
    %949 = vrot.lane.b32.xlu0 %v892, 32
    %v950 = vpop.permute.xlu0 %949
    %951 = vrot.lane.b32.xlu0 %v894, 32
    %v952 = vpop.permute.xlu0 %951
    %953 = vrot.lane.b32.xlu0 %v895, 32
    %v954 = vpop.permute.xlu0 %953
    %955 = vrot.lane.b32.xlu0 %v896, 32
    %v956 = vpop.permute.xlu0 %955
    %957 = vrot.lane.b32.xlu0 %v898, 32
    %v958 = vpop.permute.xlu0 %957
    %959 = vrot.lane.b32.xlu0 %v899, 32
    %v960 = vpop.permute.xlu0 %959
    %961 = vrot.lane.b32.xlu0 %v900, 32
    %v962 = vpop.permute.xlu0 %961
    %963 = vrot.lane.b32.xlu0 %v902, 32
    %v964 = vpop.permute.xlu0 %963
    %965 = vrot.lane.b32.xlu0 %v903, 32
    %v966 = vpop.permute.xlu0 %965
    %967 = vrot.lane.b32.xlu0 %v904, 32
    %v968 = vpop.permute.xlu0 %967
    %969 = vrot.lane.b32.xlu0 %v906, 32
    %v970 = vpop.permute.xlu0 %969
    %971 = vrot.lane.b32.xlu0 %v907, 32
    %v972 = vpop.permute.xlu0 %971
    %973 = vrot.lane.b32.xlu0 %v908, 32
    %v974 = vpop.permute.xlu0 %973
    %975 = vrot.lane.b32.xlu0 %v910, 32
    %v976 = vpop.permute.xlu0 %975
    %977 = vrot.lane.b32.xlu0 %v911, 32
    %v978 = vpop.permute.xlu0 %977
    %979 = vrot.lane.b32.xlu0 %v912, 32
    %v980 = vpop.permute.xlu0 %979
    %981 = vrot.lane.b32.xlu0 %v914, 32
    %v982 = vpop.permute.xlu0 %981
    %983 = vrot.lane.b32.xlu0 %v915, 32
    %v984 = vpop.permute.xlu0 %983
    %985 = vrot.lane.b32.xlu0 %v916, 32
    %v986 = vpop.permute.xlu0 %985
    %987 = vrot.lane.b32.xlu0 %v918, 32
    %v988 = vpop.permute.xlu0 %987
    %989 = vrot.lane.b32.xlu0 %v919, 32
    %v990 = vpop.permute.xlu0 %989
    %991 = vrot.lane.b32.xlu0 %v920, 32
    %v992 = vpop.permute.xlu0 %991
    %v993 = vsel %vm730, %v946, %v948
    %v994 = vsel %vm730, %v948, %v950
    %v995 = vsel %vm730, %v952, %v954
    %v996 = vsel %vm730, %v954, %v956
    %v997 = vsel %vm730, %v958, %v960
    %v998 = vsel %vm730, %v960, %v962
    %v999 = vsel %vm730, %v964, %v966
    %v1000 = vsel %vm730, %v966, %v968
    %v1001 = vsel %vm730, %v970, %v972
    %v1002 = vsel %vm730, %v972, %v974
    %v1003 = vsel %vm730, %v976, %v978
    %v1004 = vsel %vm730, %v978, %v980
    %v1005 = vsel %vm730, %v982, %v984
    %v1006 = vsel %vm730, %v984, %v986
    %v1007 = vsel %vm730, %v988, %v990
    %v1008 = vsel %vm730, %v990, %v992
    %v1025 = vmax.f32 %v889, %v993
    %v1026 = vmax.f32 %v890, %v994
    %v1027 = vmax.f32 %v893, %v995
    %v1028 = vmax.f32 %v894, %v996
    %v1029 = vmax.f32 %v897, %v997
    %v1030 = vmax.f32 %v898, %v998
    %v1031 = vmax.f32 %v901, %v999
    %v1032 = vmax.f32 %v902, %v1000
    %v1033 = vmax.f32 %v905, %v1001
    %v1034 = vmax.f32 %v906, %v1002
    %v1035 = vmax.f32 %v909, %v1003
    %v1036 = vmax.f32 %v910, %v1004
    %v1037 = vmax.f32 %v913, %v1005
    %v1038 = vmax.f32 %v914, %v1006
    %v1039 = vmax.f32 %v917, %v1007
    %v1040 = vmax.f32 %v918, %v1008
    %1041 = vst [vmem:[#allocation3] sm:$0x11] 0
    %vm1042 = vcmask 253952
    %1043 = vst.msk [vmem:[#allocation3 + $0x8] sm:$0x1] %vm1042, 0
    %1044 = vst [vmem:[#allocation3 + $0x24] sm:$0x11] 0
    %1045 = vst.msk [vmem:[#allocation3 + $0x2c] sm:$0x1] %vm1042, 0
    %1046 = vst [vmem:[#allocation3 + $0x18] sm:$0x11] 0
    %1047 = vst.msk [vmem:[#allocation3 + $0x20] sm:$0x1] %vm1042, 0
    %1048 = vst [vmem:[#allocation3 + $0x3c] sm:$0x11] 0
    %1049 = vst.msk [vmem:[#allocation3 + $0x44] sm:$0x1] %vm1042, 0
    %vm1050 = vcmask 257025
    %1051 = vst.msk [vmem:[#allocation3] sm:$0xe] %vm1050, 0
    %1052 = vst.msk [vmem:[#allocation3 + $0xc] sm:$0xf] %vm36, 0
    %1053 = vst.msk [vmem:[#allocation3 + $0x24] sm:$0xe] %vm1050, 0
    %1054 = vst.msk [vmem:[#allocation3 + $0x30] sm:$0xf] %vm36, 0
    %1055 = vst.msk [vmem:[#allocation3 + $0x8] sm:$0xe] %vm1050, 0
    %1056 = vst.msk [vmem:[#allocation3 + $0x14] sm:$0xf] %vm36, 0
    %1057 = vst.msk [vmem:[#allocation3 + $0x2c] sm:$0xe] %vm1050, 0
    %1058 = vst.msk [vmem:[#allocation3 + $0x38] sm:$0xf] %vm36, 0
    %v1063 = vrot.slane %v1025, 1
    %v1064 = vrot.slane %v1026, 1
    %v1065 = vrot.slane %v1033, 1
    %v1066 = vrot.slane %v1034, 1
    %v1071 = vmax.f32 %v1025, %v1063
    %v1072 = vmax.f32 %v1026, %v1064
    %v1073 = vmax.f32 %v1033, %v1065
    %v1074 = vmax.f32 %v1034, %v1066
    %v1075 = vpack.c.bf16 %v1071, %v1071
    %v1076 = vpack.c.bf16 %v1072, %v1072
    %v1077 = vpack.c.bf16 %v1073, %v1073
    %v1078 = vpack.c.bf16 %v1074, %v1074
    %v1083 = vunpack.c.l.b16 %v1075
    %v1084 = vunpack.c.l.b16 %v1076
    %v1085 = vunpack.c.l.b16 %v1077
    %v1086 = vunpack.c.l.b16 %v1078
    %v1087 = vpack.c.b16 %v1084, %v1083
    %v1088 = vpack.c.b16 %v1086, %v1085
    %v1089 = vrot.slane %v1087, 7
    %v1090 = vrot.slane %v1088, 7
    %1091 = vrot.lane.b32.xlu0 %v1089, 32
    %v1092 = vpop.permute.xlu0 %1091
    %1093 = vrot.lane.b32.xlu0 %v1090, 32
    %v1094 = vpop.permute.xlu0 %1093
    %v1095 = vrot.slane %v1092, 4
    %v1096 = vrot.slane %v1094, 4
    %vm1097 = vcmask 261120
    %v1098 = vsel %vm1097, %v1095, %v1092
    %v1099 = vsel %vm1097, %v1096, %v1094
    %vm1102 = vcmask 1041665
    %vm1103 = vsmask.f32 1280
    %vm1104 = vmand %vm1102, %vm1103
    %vm1105 = vcmask 1045509
    %vm1106 = vsmask.f32 5376
    %vm1107 = vmand %vm1105, %vm1106
    %vm1108 = vmor %vm1107, %vm1104
    %v1109 = vld [vmem:[#allocation3] sm:$0x22]
    %v1110 = vsel %vm1108, %v1098, %v1109
    %1111 = vst [vmem:[#allocation3] sm:$0x22] %v1110
    %v1112 = vld [vmem:[#allocation3 + $0x24] sm:$0x22]
    %v1113 = vsel %vm1108, %v1099, %v1112
    %1114 = vst [vmem:[#allocation3 + $0x24] sm:$0x22] %v1113
    %v1116 = vshll.u32 %v1087, 16
    %v1119 = vshll.u32 %v1088, 16
    %1121 = vrot.lane.b32.xlu0 %v1116, 32
    %v1122 = vpop.permute.xlu0 %1121
    %1123 = vrot.lane.b32.xlu0 %v1119, 32
    %v1124 = vpop.permute.xlu0 %1123
    %v1125 = vrot.slane %v1122, 4
    %v1126 = vrot.slane %v1124, 4
    %v1127 = vsel %vm1097, %v1125, %v1122
    %v1128 = vsel %vm1097, %v1126, %v1124
    %vm1131 = vsmask.f32 7942
    %vm1132 = vmand %vm1102, %vm1131
    %vm1133 = vsmask.f32 7958
    %vm1134 = vmand %vm1105, %vm1133
    %vm1135 = vmor %vm1134, %vm1132
    %v1136 = vld [vmem:[#allocation3] sm:$0x22]
    %v1137 = vsel %vm1135, %v1127, %v1136
    %1138 = vst [vmem:[#allocation3] sm:$0x22] %v1137
    %v1139 = vld [vmem:[#allocation3 + $0x24] sm:$0x22]
    %v1140 = vsel %vm1135, %v1128, %v1139
    %1141 = vst [vmem:[#allocation3 + $0x24] sm:$0x22] %v1140
    %1142 = vrot.lane.b32.xlu0 %v1087, 32
    %v1143 = vpop.permute.xlu0 %1142
    %1144 = vrot.lane.b32.xlu0 %v1088, 32
    %v1145 = vpop.permute.xlu0 %1144
    %v1146 = vrot.slane %v1143, 4
    %v1147 = vrot.slane %v1145, 4
    %v1148 = vsel %vm1097, %v1146, %v1143
    %v1149 = vsel %vm1097, %v1147, %v1145
    %vm1152 = vcmask 1042690
    %vm1153 = vmand %vm1152, %vm252
    %vm1154 = vcmask 1046534
    %vm1155 = vsmask.f32 6400
    %vm1156 = vmand %vm1154, %vm1155
    %vm1157 = vmor %vm1156, %vm1153
    %v1158 = vld [vmem:[#allocation3] sm:$0x44]
    %v1159 = vsel %vm1157, %v1148, %v1158
    %1160 = vst [vmem:[#allocation3] sm:$0x44] %v1159
    %v1161 = vld [vmem:[#allocation3 + $0x24] sm:$0x44]
    %v1162 = vsel %vm1157, %v1149, %v1161
    %1163 = vst [vmem:[#allocation3 + $0x24] sm:$0x44] %v1162
    %v1164 = vrot.slane %v1116, 5
    %v1165 = vrot.slane %v1164, 4
    %v1166 = vrot.slane %v1119, 5
    %v1167 = vrot.slane %v1166, 4
    %1168 = vrot.lane.b32.xlu0 %v1165, 32
    %v1169 = vpop.permute.xlu0 %1168
    %1170 = vrot.lane.b32.xlu0 %v1167, 32
    %v1171 = vpop.permute.xlu0 %1170
    %v1172 = vrot.slane %v1169, 4
    %v1173 = vrot.slane %v1171, 4
    %v1174 = vsel %vm1097, %v1172, %v1169
    %v1175 = vsel %vm1097, %v1173, %v1171
    %vm1178 = vsmask.f32 7946
    %vm1179 = vmand %vm1152, %vm1178
    %vm1180 = vsmask.f32 7962
    %vm1181 = vmand %vm1154, %vm1180
    %vm1182 = vmor %vm1181, %vm1179
    %v1183 = vld [vmem:[#allocation3] sm:$0x44]
    %v1184 = vsel %vm1182, %v1174, %v1183
    %1185 = vst [vmem:[#allocation3] sm:$0x44] %v1184
    %v1186 = vld [vmem:[#allocation3 + $0x24] sm:$0x44]
    %v1187 = vsel %vm1182, %v1175, %v1186
    %1188 = vst [vmem:[#allocation3 + $0x24] sm:$0x44] %v1187
    %v1193 = vrot.slane %v1027, 1
    %v1194 = vrot.slane %v1028, 1
    %v1195 = vrot.slane %v1035, 1
    %v1196 = vrot.slane %v1036, 1
    %v1201 = vmax.f32 %v1027, %v1193
    %v1202 = vmax.f32 %v1028, %v1194
    %v1203 = vmax.f32 %v1035, %v1195
    %v1204 = vmax.f32 %v1036, %v1196
    %v1205 = vpack.c.bf16 %v1201, %v1201
    %v1206 = vpack.c.bf16 %v1202, %v1202
    %v1207 = vpack.c.bf16 %v1203, %v1203
    %v1208 = vpack.c.bf16 %v1204, %v1204
    %v1213 = vunpack.c.l.b16 %v1205
    %v1214 = vunpack.c.l.b16 %v1206
    %v1215 = vunpack.c.l.b16 %v1207
    %v1216 = vunpack.c.l.b16 %v1208
    %v1217 = vpack.c.b16 %v1214, %v1213
    %v1218 = vpack.c.b16 %v1216, %v1215
    %v1219 = vrot.slane %v1217, 5
    %v1220 = vrot.slane %v1218, 5
    %1221 = vrot.lane.b32.xlu0 %v1219, 32
    %v1222 = vpop.permute.xlu0 %1221
    %1223 = vrot.lane.b32.xlu0 %v1220, 32
    %v1224 = vpop.permute.xlu0 %1223
    %v1225 = vrot.slane %v1222, 4
    %v1226 = vrot.slane %v1224, 4
    %v1227 = vsel %vm1097, %v1225, %v1222
    %v1228 = vsel %vm1097, %v1226, %v1224
    %vm1231 = vcmask 1043715
    %vm1232 = vmand %vm1231, %vm54
    %vm1233 = vcmask 1047559
    %vm1234 = vsmask.f32 7424
    %vm1235 = vmand %vm1233, %vm1234
    %vm1236 = vmor %vm1235, %vm1232
    %v1237 = vld [vmem:[#allocation3] sm:$0x88]
    %v1238 = vsel %vm1236, %v1227, %v1237
    %1239 = vst [vmem:[#allocation3] sm:$0x88] %v1238
    %v1240 = vld [vmem:[#allocation3 + $0x24] sm:$0x88]
    %v1241 = vsel %vm1236, %v1228, %v1240
    %1242 = vst [vmem:[#allocation3 + $0x24] sm:$0x88] %v1241
    %v1244 = vshll.u32 %v1217, 16
    %v1246 = vrot.slane %v1244, 6
    %v1248 = vshll.u32 %v1218, 16
    %v1250 = vrot.slane %v1248, 6
    %1251 = vrot.lane.b32.xlu0 %v1246, 32
    %v1252 = vpop.permute.xlu0 %1251
    %1253 = vrot.lane.b32.xlu0 %v1250, 32
    %v1254 = vpop.permute.xlu0 %1253
    %v1255 = vrot.slane %v1252, 4
    %v1256 = vrot.slane %v1254, 4
    %v1257 = vsel %vm1097, %v1255, %v1252
    %v1258 = vsel %vm1097, %v1256, %v1254
    %vm1261 = vsmask.f32 7950
    %vm1262 = vmand %vm1231, %vm1261
    %vm1263 = vsmask.f32 7966
    %vm1264 = vmand %vm1233, %vm1263
    %vm1265 = vmor %vm1264, %vm1262
    %v1266 = vld [vmem:[#allocation3] sm:$0x88]
    %v1267 = vsel %vm1265, %v1257, %v1266
    %1268 = vst [vmem:[#allocation3] sm:$0x88] %v1267
    %v1269 = vld [vmem:[#allocation3 + $0x24] sm:$0x88]
    %v1270 = vsel %vm1265, %v1258, %v1269
    %1271 = vst [vmem:[#allocation3 + $0x24] sm:$0x88] %v1270
    %v1272 = vrot.slane %v1217, 6
    %v1273 = vrot.slane %v1272, 4
    %v1274 = vrot.slane %v1218, 6
    %v1275 = vrot.slane %v1274, 4
    %1276 = vrot.lane.b32.xlu0 %v1273, 32
    %v1277 = vpop.permute.xlu0 %1276
    %1278 = vrot.lane.b32.xlu0 %v1275, 32
    %v1279 = vpop.permute.xlu0 %1278
    %v1280 = vrot.slane %v1277, 4
    %v1281 = vrot.slane %v1279, 4
    %v1282 = vsel %vm1097, %v1280, %v1277
    %v1283 = vsel %vm1097, %v1281, %v1279
    %vm1286 = vcmask 1040640
    %vm1287 = vsmask.f32 256
    %vm1288 = vmand %vm1286, %vm1287
    %vm1289 = vcmask 1044484
    %vm1290 = vsmask.f32 4352
    %vm1291 = vmand %vm1289, %vm1290
    %vm1292 = vmor %vm1291, %vm1288
    %v1293 = vld [vmem:[#allocation3 + $0xc] sm:$0x11]
    %v1294 = vsel %vm1292, %v1282, %v1293
    %1295 = vst [vmem:[#allocation3 + $0xc] sm:$0x11] %v1294
    %v1296 = vld [vmem:[#allocation3 + $0x30] sm:$0x11]
    %v1297 = vsel %vm1292, %v1283, %v1296
    %1298 = vst [vmem:[#allocation3 + $0x30] sm:$0x11] %v1297
    %v1299 = vrot.slane %v1244, 7
    %v1300 = vrot.slane %v1299, 4
    %v1301 = vrot.slane %v1248, 7
    %v1302 = vrot.slane %v1301, 4
    %1303 = vrot.lane.b32.xlu0 %v1300, 32
    %v1304 = vpop.permute.xlu0 %1303
    %1305 = vrot.lane.b32.xlu0 %v1302, 32
    %v1306 = vpop.permute.xlu0 %1305
    %v1307 = vrot.slane %v1304, 4
    %v1308 = vrot.slane %v1306, 4
    %v1309 = vsel %vm1097, %v1307, %v1304
    %v1310 = vsel %vm1097, %v1308, %v1306
    %vm1313 = vsmask.f32 7938
    %vm1314 = vmand %vm1286, %vm1313
    %vm1315 = vsmask.f32 7954
    %vm1316 = vmand %vm1289, %vm1315
    %vm1317 = vmor %vm1316, %vm1314
    %v1318 = vld [vmem:[#allocation3 + $0xc] sm:$0x11]
    %v1319 = vsel %vm1317, %v1309, %v1318
    %1320 = vst [vmem:[#allocation3 + $0xc] sm:$0x11] %v1319
    %v1321 = vld [vmem:[#allocation3 + $0x30] sm:$0x11]
    %v1322 = vsel %vm1317, %v1310, %v1321
    %1323 = vst [vmem:[#allocation3 + $0x30] sm:$0x11] %v1322
    %v1328 = vrot.slane %v1029, 1
    %v1329 = vrot.slane %v1030, 1
    %v1330 = vrot.slane %v1037, 1
    %v1331 = vrot.slane %v1038, 1
    %v1336 = vmax.f32 %v1029, %v1328
    %v1337 = vmax.f32 %v1030, %v1329
    %v1338 = vmax.f32 %v1037, %v1330
    %v1339 = vmax.f32 %v1038, %v1331
    %v1340 = vpack.c.bf16 %v1336, %v1336
    %v1341 = vpack.c.bf16 %v1337, %v1337
    %v1342 = vpack.c.bf16 %v1338, %v1338
    %v1343 = vpack.c.bf16 %v1339, %v1339
    %v1348 = vunpack.c.l.b16 %v1340
    %v1349 = vunpack.c.l.b16 %v1341
    %v1350 = vunpack.c.l.b16 %v1342
    %v1351 = vunpack.c.l.b16 %v1343
    %v1352 = vpack.c.b16 %v1349, %v1348
    %v1353 = vpack.c.b16 %v1351, %v1350
    %v1354 = vrot.slane %v1352, 7
    %v1355 = vrot.slane %v1353, 7
    %1356 = vrot.lane.b32.xlu0 %v1354, 32
    %v1357 = vpop.permute.xlu0 %1356
    %1358 = vrot.lane.b32.xlu0 %v1355, 32
    %v1359 = vpop.permute.xlu0 %1358
    %v1360 = vrot.slane %v1357, 4
    %v1361 = vrot.slane %v1359, 4
    %v1362 = vsel %vm1097, %v1360, %v1357
    %v1363 = vsel %vm1097, %v1361, %v1359
    %v1366 = vld [vmem:[#allocation3 + $0xc] sm:$0x22]
    %v1367 = vsel %vm1108, %v1362, %v1366
    %1368 = vst [vmem:[#allocation3 + $0xc] sm:$0x22] %v1367
    %v1369 = vld [vmem:[#allocation3 + $0x30] sm:$0x22]
    %v1370 = vsel %vm1108, %v1363, %v1369
    %1371 = vst [vmem:[#allocation3 + $0x30] sm:$0x22] %v1370
    %v1373 = vshll.u32 %v1352, 16
    %v1376 = vshll.u32 %v1353, 16
    %1378 = vrot.lane.b32.xlu0 %v1373, 32
    %v1379 = vpop.permute.xlu0 %1378
    %1380 = vrot.lane.b32.xlu0 %v1376, 32
    %v1381 = vpop.permute.xlu0 %1380
    %v1382 = vrot.slane %v1379, 4
    %v1383 = vrot.slane %v1381, 4
    %v1384 = vsel %vm1097, %v1382, %v1379
    %v1385 = vsel %vm1097, %v1383, %v1381
    %v1388 = vld [vmem:[#allocation3 + $0xc] sm:$0x22]
    %v1389 = vsel %vm1135, %v1384, %v1388
    %1390 = vst [vmem:[#allocation3 + $0xc] sm:$0x22] %v1389
    %v1391 = vld [vmem:[#allocation3 + $0x30] sm:$0x22]
    %v1392 = vsel %vm1135, %v1385, %v1391
    %1393 = vst [vmem:[#allocation3 + $0x30] sm:$0x22] %v1392
    %1394 = vrot.lane.b32.xlu0 %v1352, 32
    %v1395 = vpop.permute.xlu0 %1394
    %1396 = vrot.lane.b32.xlu0 %v1353, 32
    %v1397 = vpop.permute.xlu0 %1396
    %v1398 = vrot.slane %v1395, 4
    %v1399 = vrot.slane %v1397, 4
    %v1400 = vsel %vm1097, %v1398, %v1395
    %v1401 = vsel %vm1097, %v1399, %v1397
    %v1404 = vld [vmem:[#allocation3 + $0xc] sm:$0x44]
    %v1405 = vsel %vm1157, %v1400, %v1404
    %1406 = vst [vmem:[#allocation3 + $0xc] sm:$0x44] %v1405
    %v1407 = vld [vmem:[#allocation3 + $0x30] sm:$0x44]
    %v1408 = vsel %vm1157, %v1401, %v1407
    %1409 = vst [vmem:[#allocation3 + $0x30] sm:$0x44] %v1408
    %v1410 = vrot.slane %v1373, 5
    %v1411 = vrot.slane %v1410, 4
    %v1412 = vrot.slane %v1376, 5
    %v1413 = vrot.slane %v1412, 4
    %1414 = vrot.lane.b32.xlu0 %v1411, 32
    %v1415 = vpop.permute.xlu0 %1414
    %1416 = vrot.lane.b32.xlu0 %v1413, 32
    %v1417 = vpop.permute.xlu0 %1416
    %v1418 = vrot.slane %v1415, 4
    %v1419 = vrot.slane %v1417, 4
    %v1420 = vsel %vm1097, %v1418, %v1415
    %v1421 = vsel %vm1097, %v1419, %v1417
    %v1424 = vld [vmem:[#allocation3 + $0xc] sm:$0x44]
    %v1425 = vsel %vm1182, %v1420, %v1424
    %1426 = vst [vmem:[#allocation3 + $0xc] sm:$0x44] %v1425
    %v1427 = vld [vmem:[#allocation3 + $0x30] sm:$0x44]
    %v1428 = vsel %vm1182, %v1421, %v1427
    %1429 = vst [vmem:[#allocation3 + $0x30] sm:$0x44] %v1428
    %v1434 = vrot.slane %v1031, 1
    %v1435 = vrot.slane %v1032, 1
    %v1436 = vrot.slane %v1039, 1
    %v1437 = vrot.slane %v1040, 1
    %v1442 = vmax.f32 %v1031, %v1434
    %v1443 = vmax.f32 %v1032, %v1435
    %v1444 = vmax.f32 %v1039, %v1436
    %v1445 = vmax.f32 %v1040, %v1437
    %v1446 = vpack.c.bf16 %v1442, %v1442
    %v1447 = vpack.c.bf16 %v1443, %v1443
    %v1448 = vpack.c.bf16 %v1444, %v1444
    %v1449 = vpack.c.bf16 %v1445, %v1445
    %v1454 = vunpack.c.l.b16 %v1446
    %v1455 = vunpack.c.l.b16 %v1447
    %v1456 = vunpack.c.l.b16 %v1448
    %v1457 = vunpack.c.l.b16 %v1449
    %v1458 = vpack.c.b16 %v1455, %v1454
    %v1459 = vpack.c.b16 %v1457, %v1456
    %v1460 = vrot.slane %v1458, 5
    %v1461 = vrot.slane %v1459, 5
    %1462 = vrot.lane.b32.xlu0 %v1460, 32
    %v1463 = vpop.permute.xlu0 %1462
    %1464 = vrot.lane.b32.xlu0 %v1461, 32
    %v1465 = vpop.permute.xlu0 %1464
    %v1466 = vrot.slane %v1463, 4
    %v1467 = vrot.slane %v1465, 4
    %v1468 = vsel %vm1097, %v1466, %v1463
    %v1469 = vsel %vm1097, %v1467, %v1465
    %v1472 = vld [vmem:[#allocation3 + $0xc] sm:$0x88]
    %v1473 = vsel %vm1236, %v1468, %v1472
    %1474 = vst [vmem:[#allocation3 + $0xc] sm:$0x88] %v1473
    %v1475 = vld [vmem:[#allocation3 + $0x30] sm:$0x88]
    %v1476 = vsel %vm1236, %v1469, %v1475
    %1477 = vst [vmem:[#allocation3 + $0x30] sm:$0x88] %v1476
    %v1479 = vshll.u32 %v1458, 16
    %v1481 = vrot.slane %v1479, 6
    %v1483 = vshll.u32 %v1459, 16
    %v1485 = vrot.slane %v1483, 6
    %1486 = vrot.lane.b32.xlu0 %v1481, 32
    %v1487 = vpop.permute.xlu0 %1486
    %1488 = vrot.lane.b32.xlu0 %v1485, 32
    %v1489 = vpop.permute.xlu0 %1488
    %v1490 = vrot.slane %v1487, 4
    %v1491 = vrot.slane %v1489, 4
    %v1492 = vsel %vm1097, %v1490, %v1487
    %v1493 = vsel %vm1097, %v1491, %v1489
    %v1496 = vld [vmem:[#allocation3 + $0xc] sm:$0x88]
    %v1497 = vsel %vm1265, %v1492, %v1496
    %1498 = vst [vmem:[#allocation3 + $0xc] sm:$0x88] %v1497
    %v1499 = vld [vmem:[#allocation3 + $0x30] sm:$0x88]
    %v1500 = vsel %vm1265, %v1493, %v1499
    %1501 = vst [vmem:[#allocation3 + $0x30] sm:$0x88] %v1500
    %v1502 = vld [vmem:[#allocation3] sm:$0xff]
    %v1503 = vld [vmem:[#allocation3 + $0x8] sm:$0xf]
    %v1504 = vld [vmem:[#allocation3 + $0xc] sm:$0x77]
    %v1505 = vld [vmem:[#allocation3 + $0x14] sm:$0x7]
    %v1506 = vld [vmem:[#allocation3 + $0x24] sm:$0xff]
    %v1507 = vld [vmem:[#allocation3 + $0x2c] sm:$0xf]
    %v1508 = vld [vmem:[#allocation3 + $0x30] sm:$0x77]
    %v1509 = vld [vmem:[#allocation3 + $0x38] sm:$0x7]
    %1510 = vst [vmem:[#allocation4] sm:$0xff] %v1502
    %1511 = vst.msk [vmem:[#allocation4 + $0x8] sm:$0xf] %vm36, %v1503
    %1512 = vst [vmem:[#allocation4 + $0x30] sm:$0x77] %v1504
    %vm1513 = vcmask 256000
    %1514 = vst.msk [vmem:[#allocation4 + $0x38] sm:$0x7] %vm1513, %v1505
    %1515 = vst [vmem:[#allocation4 + $0x60] sm:$0xff] %v1506
    %1516 = vst.msk [vmem:[#allocation4 + $0x68] sm:$0xf] %vm36, %v1507
    %1517 = vst [vmem:[#allocation4 + $0x90] sm:$0x77] %v1508
    %1518 = vst.msk [vmem:[#allocation4 + $0x98] sm:$0x7] %vm1513, %v1509
    %v1519 = vld [vmem:[#allocation3] sm:$0xff]
    %v1520 = vld [vmem:[#allocation3 + $0x8] sm:$0xf]
    %v1521 = vld [vmem:[#allocation3 + $0xc] sm:$0xff]
    %v1522 = vld [vmem:[#allocation3 + $0x14] sm:$0xf]
    %v1523 = vld [vmem:[#allocation3 + $0x24] sm:$0xff]
    %v1524 = vld [vmem:[#allocation3 + $0x2c] sm:$0xf]
    %v1525 = vld [vmem:[#allocation3 + $0x30] sm:$0xff]
    %v1526 = vld [vmem:[#allocation3 + $0x38] sm:$0xf]
    %v1528 = vshrl.u32 %v1519, 16
    %v1530 = vrot.slane %v1528, 4
    %v1531 = vshll.u32 %v1519, 16
    %v1533 = vrot.slane %v1531, 5
    %v1534 = vor.u32 %v1530, %v1533
    %v1535 = vrot.slane %v1534, 4
    %v1537 = vshll.u32 %v1521, 16
    %v1539 = vrot.slane %v1537, 5
    %v1540 = vsel %vm56, %v1535, %v1539
    %v1542 = vshrl.u32 %v1520, 16
    %v1544 = vrot.slane %v1542, 4
    %v1545 = vshll.u32 %v1520, 16
    %v1547 = vrot.slane %v1545, 5
    %v1548 = vor.u32 %v1544, %v1547
    %v1549 = vrot.slane %v1548, 4
    %v1551 = vshll.u32 %v1522, 16
    %v1553 = vrot.slane %v1551, 5
    %v1554 = vsel %vm56, %v1549, %v1553
    %v1555 = vshrl.u32 %v1521, 16
    %v1557 = vrot.slane %v1555, 4
    %v1558 = vor.u32 %v1557, %v1539
    %v1559 = vrot.slane %v1558, 4
    %v1560 = vshrl.u32 %v1522, 16
    %v1562 = vrot.slane %v1560, 4
    %v1563 = vor.u32 %v1562, %v1553
    %v1564 = vrot.slane %v1563, 4
    %v1566 = vshrl.u32 %v1523, 16
    %v1568 = vrot.slane %v1566, 4
    %v1569 = vshll.u32 %v1523, 16
    %v1571 = vrot.slane %v1569, 5
    %v1572 = vor.u32 %v1568, %v1571
    %v1573 = vrot.slane %v1572, 4
    %v1575 = vshll.u32 %v1525, 16
    %v1577 = vrot.slane %v1575, 5
    %v1578 = vsel %vm56, %v1573, %v1577
    %v1580 = vshrl.u32 %v1524, 16
    %v1582 = vrot.slane %v1580, 4
    %v1583 = vshll.u32 %v1524, 16
    %v1585 = vrot.slane %v1583, 5
    %v1586 = vor.u32 %v1582, %v1585
    %v1587 = vrot.slane %v1586, 4
    %v1589 = vshll.u32 %v1526, 16
    %v1591 = vrot.slane %v1589, 5
    %v1592 = vsel %vm56, %v1587, %v1591
    %v1593 = vshrl.u32 %v1525, 16
    %v1595 = vrot.slane %v1593, 4
    %v1596 = vor.u32 %v1595, %v1577
    %v1597 = vrot.slane %v1596, 4
    %v1598 = vshrl.u32 %v1526, 16
    %v1600 = vrot.slane %v1598, 4
    %v1601 = vor.u32 %v1600, %v1591
    %v1602 = vrot.slane %v1601, 4
    %1603 = vrot.lane.b32.xlu0 %v1540, 32
    %v1604 = vpop.permute.xlu0 %1603
    %1605 = vrot.lane.b32.xlu0 %v1554, 32
    %v1606 = vpop.permute.xlu0 %1605
    %1607 = vrot.lane.b32.xlu0 %v1559, 32
    %v1608 = vpop.permute.xlu0 %1607
    %1609 = vrot.lane.b32.xlu0 %v1564, 32
    %v1610 = vpop.permute.xlu0 %1609
    %1611 = vrot.lane.b32.xlu0 %v1578, 32
    %v1612 = vpop.permute.xlu0 %1611
    %1613 = vrot.lane.b32.xlu0 %v1592, 32
    %v1614 = vpop.permute.xlu0 %1613
    %1615 = vrot.lane.b32.xlu0 %v1597, 32
    %v1616 = vpop.permute.xlu0 %1615
    %1617 = vrot.lane.b32.xlu0 %v1602, 32
    %v1618 = vpop.permute.xlu0 %1617
    %v1619 = vrot.slane %v1604, 4
    %v1620 = vrot.slane %v1608, 4
    %v1621 = vrot.slane %v1612, 4
    %v1622 = vrot.slane %v1616, 4
    %v1623 = vsel %vm1097, %v1619, %v1604
    %v1624 = vsel %vm1097, %v1619, %v1606
    %v1625 = vsel %vm1097, %v1620, %v1608
    %v1626 = vsel %vm1097, %v1620, %v1610
    %v1627 = vsel %vm1097, %v1621, %v1612
    %v1628 = vsel %vm1097, %v1621, %v1614
    %v1629 = vsel %vm1097, %v1622, %v1616
    %v1630 = vsel %vm1097, %v1622, %v1618
    %vm1639 = vcmask 1043712
    %vm1640 = vcmask 1047556
    %vm1641 = vmor %vm1640, %vm1639
    %1642 = vst.msk [vmem:[#allocation4 + $0x8] sm:$0xff] %vm1641, %v1623
    %vm1643 = vcmask 519168
    %1644 = vst.msk [vmem:[#allocation4 + $0x10] sm:$0xf] %vm1643, %v1624
    %vm1645 = vcmask 1042688
    %vm1646 = vcmask 1046532
    %vm1647 = vmor %vm1646, %vm1645
    %1648 = vst.msk [vmem:[#allocation4 + $0x38] sm:$0x77] %vm1647, %v1625
    %vm1649 = vcmask 518144
    %1650 = vst.msk [vmem:[#allocation4 + $0x40] sm:$0x7] %vm1649, %v1626
    %1651 = vst.msk [vmem:[#allocation4 + $0x68] sm:$0xff] %vm1641, %v1627
    %1652 = vst.msk [vmem:[#allocation4 + $0x70] sm:$0xf] %vm1643, %v1628
    %1653 = vst.msk [vmem:[#allocation4 + $0x98] sm:$0x77] %vm1647, %v1629
    %1654 = vst.msk [vmem:[#allocation4 + $0xa0] sm:$0x7] %vm1649, %v1630
    %v1655 = vld [vmem:[#allocation3] sm:$0xee]
    %v1656 = vld [vmem:[#allocation3 + $0x8] sm:$0xe]
    %v1657 = vld [vmem:[#allocation3 + $0xc] sm:$0xff]
    %v1658 = vld [vmem:[#allocation3 + $0x14] sm:$0xf]
    %v1659 = vld [vmem:[#allocation3 + $0x24] sm:$0xee]
    %v1660 = vld [vmem:[#allocation3 + $0x2c] sm:$0xe]
    %v1661 = vld [vmem:[#allocation3 + $0x30] sm:$0xff]
    %v1662 = vld [vmem:[#allocation3 + $0x38] sm:$0xf]
    %v1671 = vrot.slane %v1655, 5
    %v1672 = vrot.slane %v1671, 4
    %v1673 = vrot.slane %v1657, 5
    %v1674 = vsel %vm187, %v1672, %v1673
    %v1675 = vrot.slane %v1656, 5
    %v1676 = vrot.slane %v1675, 4
    %v1677 = vrot.slane %v1658, 5
    %v1678 = vsel %vm187, %v1676, %v1677
    %v1679 = vrot.slane %v1673, 4
    %v1680 = vrot.slane %v1677, 4
    %v1681 = vrot.slane %v1659, 5
    %v1682 = vrot.slane %v1681, 4
    %v1683 = vrot.slane %v1661, 5
    %v1684 = vsel %vm187, %v1682, %v1683
    %v1685 = vrot.slane %v1660, 5
    %v1686 = vrot.slane %v1685, 4
    %v1687 = vrot.slane %v1662, 5
    %v1688 = vsel %vm187, %v1686, %v1687
    %v1689 = vrot.slane %v1683, 4
    %v1690 = vrot.slane %v1687, 4
    %1691 = vrot.lane.b32.xlu0 %v1674, 64
    %v1692 = vpop.permute.xlu0 %1691
    %1693 = vrot.lane.b32.xlu0 %v1678, 64
    %v1694 = vpop.permute.xlu0 %1693
    %1695 = vrot.lane.b32.xlu0 %v1679, 64
    %v1696 = vpop.permute.xlu0 %1695
    %1697 = vrot.lane.b32.xlu0 %v1680, 64
    %v1698 = vpop.permute.xlu0 %1697
    %1699 = vrot.lane.b32.xlu0 %v1684, 64
    %v1700 = vpop.permute.xlu0 %1699
    %1701 = vrot.lane.b32.xlu0 %v1688, 64
    %v1702 = vpop.permute.xlu0 %1701
    %1703 = vrot.lane.b32.xlu0 %v1689, 64
    %v1704 = vpop.permute.xlu0 %1703
    %1705 = vrot.lane.b32.xlu0 %v1690, 64
    %v1706 = vpop.permute.xlu0 %1705
    %v1707 = vrot.slane %v1692, 4
    %v1708 = vrot.slane %v1696, 4
    %v1709 = vrot.slane %v1700, 4
    %v1710 = vrot.slane %v1704, 4
    %vm1711 = vcmask 523264
    %v1712 = vsel %vm1711, %v1707, %v1692
    %v1713 = vsel %vm1711, %v1707, %v1694
    %v1714 = vsel %vm1711, %v1708, %v1696
    %v1715 = vsel %vm1711, %v1708, %v1698
    %v1716 = vsel %vm1711, %v1709, %v1700
    %v1717 = vsel %vm1711, %v1709, %v1702
    %v1718 = vsel %vm1711, %v1710, %v1704
    %v1719 = vsel %vm1711, %v1710, %v1706
    %vm1728 = vcmask 1043968
    %vm1729 = vmor %vm1640, %vm1728
    %1730 = vst.msk [vmem:[#allocation4 + $0x10] sm:$0xff] %vm1729, %v1712
    %vm1731 = vcmask 781312
    %1732 = vst.msk [vmem:[#allocation4 + $0x18] sm:$0xf] %vm1731, %v1713
    %vm1733 = vcmask 1042944
    %vm1734 = vmor %vm1646, %vm1733
    %1735 = vst.msk [vmem:[#allocation4 + $0x40] sm:$0x77] %vm1734, %v1714
    %vm1736 = vcmask 780288
    %1737 = vst.msk [vmem:[#allocation4 + $0x48] sm:$0x7] %vm1736, %v1715
    %1738 = vst.msk [vmem:[#allocation4 + $0x70] sm:$0xff] %vm1729, %v1716
    %1739 = vst.msk [vmem:[#allocation4 + $0x78] sm:$0xf] %vm1731, %v1717
    %1740 = vst.msk [vmem:[#allocation4 + $0xa0] sm:$0x77] %vm1734, %v1718
    %1741 = vst.msk [vmem:[#allocation4 + $0xa8] sm:$0x7] %vm1736, %v1719
    %v1742 = vld [vmem:[#allocation3] sm:$0xee]
    %v1743 = vld [vmem:[#allocation3 + $0x8] sm:$0xe]
    %v1744 = vld [vmem:[#allocation3 + $0xc] sm:$0xff]
    %v1745 = vld [vmem:[#allocation3 + $0x14] sm:$0xf]
    %v1746 = vld [vmem:[#allocation3 + $0x18] sm:$0x11]
    %v1747 = vld [vmem:[#allocation3 + $0x20] sm:$0x1]
    %v1748 = vld [vmem:[#allocation3 + $0x24] sm:$0xee]
    %v1749 = vld [vmem:[#allocation3 + $0x2c] sm:$0xe]
    %v1750 = vld [vmem:[#allocation3 + $0x30] sm:$0xff]
    %v1751 = vld [vmem:[#allocation3 + $0x38] sm:$0xf]
    %v1752 = vld [vmem:[#allocation3 + $0x3c] sm:$0x11]
    %v1753 = vld [vmem:[#allocation3 + $0x44] sm:$0x1]
    %v1755 = vshrl.u32 %v1742, 16
    %v1757 = vrot.slane %v1755, 5
    %v1758 = vshll.u32 %v1742, 16
    %v1760 = vrot.slane %v1758, 6
    %v1761 = vor.u32 %v1757, %v1760
    %v1762 = vrot.slane %v1761, 4
    %v1764 = vshrl.u32 %v1744, 16
    %v1766 = vrot.slane %v1764, 5
    %v1767 = vshll.u32 %v1744, 16
    %v1769 = vrot.slane %v1767, 6
    %v1770 = vor.u32 %v1766, %v1769
    %v1771 = vsel %vm254, %v1762, %v1770
    %v1773 = vshrl.u32 %v1743, 16
    %v1775 = vrot.slane %v1773, 5
    %v1776 = vshll.u32 %v1743, 16
    %v1778 = vrot.slane %v1776, 6
    %v1779 = vor.u32 %v1775, %v1778
    %v1780 = vrot.slane %v1779, 4
    %v1782 = vshrl.u32 %v1745, 16
    %v1784 = vrot.slane %v1782, 5
    %v1785 = vshll.u32 %v1745, 16
    %v1787 = vrot.slane %v1785, 6
    %v1788 = vor.u32 %v1784, %v1787
    %v1789 = vsel %vm254, %v1780, %v1788
    %v1790 = vrot.slane %v1770, 4
    %v1792 = vshll.u32 %v1746, 16
    %v1794 = vrot.slane %v1792, 6
    %v1795 = vsel %vm254, %v1790, %v1794
    %v1796 = vrot.slane %v1788, 4
    %v1798 = vshll.u32 %v1747, 16
    %v1800 = vrot.slane %v1798, 6
    %v1801 = vsel %vm254, %v1796, %v1800
    %v1803 = vshrl.u32 %v1748, 16
    %v1805 = vrot.slane %v1803, 5
    %v1806 = vshll.u32 %v1748, 16
    %v1808 = vrot.slane %v1806, 6
    %v1809 = vor.u32 %v1805, %v1808
    %v1810 = vrot.slane %v1809, 4
    %v1812 = vshrl.u32 %v1750, 16
    %v1814 = vrot.slane %v1812, 5
    %v1815 = vshll.u32 %v1750, 16
    %v1817 = vrot.slane %v1815, 6
    %v1818 = vor.u32 %v1814, %v1817
    %v1819 = vsel %vm254, %v1810, %v1818
    %v1821 = vshrl.u32 %v1749, 16
    %v1823 = vrot.slane %v1821, 5
    %v1824 = vshll.u32 %v1749, 16
    %v1826 = vrot.slane %v1824, 6
    %v1827 = vor.u32 %v1823, %v1826
    %v1828 = vrot.slane %v1827, 4
    %v1830 = vshrl.u32 %v1751, 16
    %v1832 = vrot.slane %v1830, 5
    %v1833 = vshll.u32 %v1751, 16
    %v1835 = vrot.slane %v1833, 6
    %v1836 = vor.u32 %v1832, %v1835
    %v1837 = vsel %vm254, %v1828, %v1836
    %v1838 = vrot.slane %v1818, 4
    %v1840 = vshll.u32 %v1752, 16
    %v1842 = vrot.slane %v1840, 6
    %v1843 = vsel %vm254, %v1838, %v1842
    %v1844 = vrot.slane %v1836, 4
    %v1846 = vshll.u32 %v1753, 16
    %v1848 = vrot.slane %v1846, 6
    %v1849 = vsel %vm254, %v1844, %v1848
    %1850 = vrot.lane.b32.xlu0 %v1771, 96
    %v1851 = vpop.permute.xlu0 %1850
    %1852 = vrot.lane.b32.xlu0 %v1789, 96
    %v1853 = vpop.permute.xlu0 %1852
    %1854 = vrot.lane.b32.xlu0 %v1795, 96
    %v1855 = vpop.permute.xlu0 %1854
    %1856 = vrot.lane.b32.xlu0 %v1801, 96
    %v1857 = vpop.permute.xlu0 %1856
    %1858 = vrot.lane.b32.xlu0 %v1819, 96
    %v1859 = vpop.permute.xlu0 %1858
    %1860 = vrot.lane.b32.xlu0 %v1837, 96
    %v1861 = vpop.permute.xlu0 %1860
    %1862 = vrot.lane.b32.xlu0 %v1843, 96
    %v1863 = vpop.permute.xlu0 %1862
    %1864 = vrot.lane.b32.xlu0 %v1849, 96
    %v1865 = vpop.permute.xlu0 %1864
    %v1866 = vrot.slane %v1851, 4
    %v1867 = vrot.slane %v1855, 4
    %v1868 = vrot.slane %v1859, 4
    %v1869 = vrot.slane %v1863, 4
    %vm1870 = vcmask 785408
    %v1871 = vsel %vm1870, %v1866, %v1851
    %v1872 = vsel %vm1870, %v1866, %v1853
    %v1873 = vsel %vm1870, %v1867, %v1855
    %v1874 = vsel %vm1870, %v1867, %v1857
    %v1875 = vsel %vm1870, %v1868, %v1859
    %v1876 = vsel %vm1870, %v1868, %v1861
    %v1877 = vsel %vm1870, %v1869, %v1863
    %v1878 = vsel %vm1870, %v1869, %v1865
    %vm1887 = vmor %vm1640, %vm357
    %1888 = vst.msk [vmem:[#allocation4 + $0x18] sm:$0xff] %vm1887, %v1871
    %1889 = vst [vmem:[#allocation4 + $0x20] sm:$0xf] %v1872
    %vm1890 = vcmask 1043200
    %vm1891 = vmor %vm1646, %vm1890
    %1892 = vst.msk [vmem:[#allocation4 + $0x48] sm:$0x77] %vm1891, %v1873
    %1893 = vst [vmem:[#allocation4 + $0x50] sm:$0x7] %v1874
    %1894 = vst.msk [vmem:[#allocation4 + $0x78] sm:$0xff] %vm1887, %v1875
    %1895 = vst [vmem:[#allocation4 + $0x80] sm:$0xf] %v1876
    %1896 = vst.msk [vmem:[#allocation4 + $0xa8] sm:$0x77] %vm1891, %v1877
    %1897 = vst [vmem:[#allocation4 + $0xb0] sm:$0x7] %v1878
    %v1898 = vld [vmem:[#allocation3] sm:$0xcc]
    %v1899 = vld [vmem:[#allocation3 + $0x8] sm:$0xc]
    %v1900 = vld [vmem:[#allocation3 + $0xc] sm:$0xff]
    %v1901 = vld [vmem:[#allocation3 + $0x14] sm:$0xf]
    %v1902 = vld [vmem:[#allocation3 + $0x18] sm:$0x11]
    %v1903 = vld [vmem:[#allocation3 + $0x20] sm:$0x1]
    %v1904 = vld [vmem:[#allocation3 + $0x24] sm:$0xcc]
    %v1905 = vld [vmem:[#allocation3 + $0x2c] sm:$0xc]
    %v1906 = vld [vmem:[#allocation3 + $0x30] sm:$0xff]
    %v1907 = vld [vmem:[#allocation3 + $0x38] sm:$0xf]
    %v1908 = vld [vmem:[#allocation3 + $0x3c] sm:$0x11]
    %v1909 = vld [vmem:[#allocation3 + $0x44] sm:$0x1]
    %v1922 = vrot.slane %v1898, 6
    %v1923 = vrot.slane %v1922, 4
    %v1924 = vrot.slane %v1900, 6
    %v1925 = vsel %vm385, %v1923, %v1924
    %v1926 = vrot.slane %v1899, 6
    %v1927 = vrot.slane %v1926, 4
    %v1928 = vrot.slane %v1901, 6
    %v1929 = vsel %vm385, %v1927, %v1928
    %v1930 = vrot.slane %v1924, 4
    %v1931 = vrot.slane %v1902, 6
    %v1932 = vsel %vm385, %v1930, %v1931
    %v1933 = vrot.slane %v1928, 4
    %v1934 = vrot.slane %v1903, 6
    %v1935 = vsel %vm385, %v1933, %v1934
    %v1936 = vrot.slane %v1904, 6
    %v1937 = vrot.slane %v1936, 4
    %v1938 = vrot.slane %v1906, 6
    %v1939 = vsel %vm385, %v1937, %v1938
    %v1940 = vrot.slane %v1905, 6
    %v1941 = vrot.slane %v1940, 4
    %v1942 = vrot.slane %v1907, 6
    %v1943 = vsel %vm385, %v1941, %v1942
    %v1944 = vrot.slane %v1938, 4
    %v1945 = vrot.slane %v1908, 6
    %v1946 = vsel %vm385, %v1944, %v1945
    %v1947 = vrot.slane %v1942, 4
    %v1948 = vrot.slane %v1909, 6
    %v1949 = vsel %vm385, %v1947, %v1948
    %1958 = vst [vmem:[#allocation4 + $0x24] sm:$0xff] %v1925
    %1959 = vst.msk [vmem:[#allocation4 + $0x2c] sm:$0xf] %vm36, %v1929
    %1960 = vst [vmem:[#allocation4 + $0x54] sm:$0x77] %v1932
    %1961 = vst.msk [vmem:[#allocation4 + $0x5c] sm:$0x7] %vm1513, %v1935
    %1962 = vst [vmem:[#allocation4 + $0x84] sm:$0xff] %v1939
    %1963 = vst.msk [vmem:[#allocation4 + $0x8c] sm:$0xf] %vm36, %v1943
    %1964 = vst [vmem:[#allocation4 + $0xb4] sm:$0x77] %v1946
    %1965 = vst.msk [vmem:[#allocation4 + $0xbc] sm:$0x7] %vm1513, %v1949
    %v1966 = vld [vmem:[#allocation4] sm:$0xff]
    %v1967 = vld [vmem:[#allocation4 + $0x8] sm:$0xff]
    %v1968 = vld [vmem:[#allocation4 + $0x10] sm:$0xff]
    %v1969 = vld [vmem:[#allocation4 + $0x18] sm:$0xff]
    %v1970 = vld [vmem:[#allocation4 + $0x20] sm:$0xff]
    %v1971 = vld [vmem:[#allocation4 + $0x28] sm:$0xff]
    %v1972 = vld [vmem:[#allocation4 + $0x30] sm:$0xff]
    %v1973 = vld [vmem:[#allocation4 + $0x38] sm:$0xff]
    %v1974 = vld [vmem:[#allocation4 + $0x40] sm:$0xff]
    %v1975 = vld [vmem:[#allocation4 + $0x48] sm:$0xff]
    %v1976 = vld [vmem:[#allocation4 + $0x50] sm:$0xff]
    %v1977 = vld [vmem:[#allocation4 + $0x58] sm:$0xff]
    %v1978 = vld [vmem:[#allocation4 + $0x60] sm:$0xff]
    %v1979 = vld [vmem:[#allocation4 + $0x68] sm:$0xff]
    %v1980 = vld [vmem:[#allocation4 + $0x70] sm:$0xff]
    %v1981 = vld [vmem:[#allocation4 + $0x78] sm:$0xff]
    %v1982 = vld [vmem:[#allocation4 + $0x80] sm:$0xff]
    %v1983 = vld [vmem:[#allocation4 + $0x88] sm:$0xff]
    %v1984 = vld [vmem:[#allocation4 + $0x90] sm:$0xff]
    %v1985 = vld [vmem:[#allocation4 + $0x98] sm:$0xff]
    %v1986 = vld [vmem:[#allocation4 + $0xa0] sm:$0xff]
    %v1987 = vld [vmem:[#allocation4 + $0xa8] sm:$0xff]
    %v1988 = vld [vmem:[#allocation4 + $0xb0] sm:$0xff]
    %v1989 = vld [vmem:[#allocation4 + $0xb8] sm:$0xff]
    %v1990 = vld [vmem:[%s3] sm:$0xff]
    %v1991 = vld [vmem:[%s3 + $0x8] sm:$0xff]
    %v1992 = vld [vmem:[%s3 + $0x10] sm:$0xff]
    %v1993 = vld [vmem:[%s3 + $0x18] sm:$0xff]
    %v1994 = vld [vmem:[%s3 + $0x20] sm:$0xff]
    %v1995 = vld [vmem:[%s3 + $0x28] sm:$0xff]
    %v1996 = vld [vmem:[%s3 + $0x30] sm:$0xff]
    %v1997 = vld [vmem:[%s3 + $0x38] sm:$0xff]
    %v1998 = vld [vmem:[%s3 + $0x40] sm:$0xff]
    %v1999 = vld [vmem:[%s3 + $0x48] sm:$0xff]
    %v2000 = vld [vmem:[%s3 + $0x50] sm:$0xff]
    %v2001 = vld [vmem:[%s3 + $0x58] sm:$0xff]
    %v2002 = vld [vmem:[%s3 + $0x60] sm:$0xff]
    %v2003 = vld [vmem:[%s3 + $0x68] sm:$0xff]
    %v2004 = vld [vmem:[%s3 + $0x70] sm:$0xff]
    %v2005 = vld [vmem:[%s3 + $0x78] sm:$0xff]
    %v2006 = vld [vmem:[%s3 + $0x80] sm:$0xff]
    %v2007 = vld [vmem:[%s3 + $0x88] sm:$0xff]
    %v2008 = vld [vmem:[%s3 + $0x90] sm:$0xff]
    %v2009 = vld [vmem:[%s3 + $0x98] sm:$0xff]
    %v2010 = vld [vmem:[%s3 + $0xa0] sm:$0xff]
    %v2011 = vld [vmem:[%s3 + $0xa8] sm:$0xff]
    %v2012 = vld [vmem:[%s3 + $0xb0] sm:$0xff]
    %v2013 = vld [vmem:[%s3 + $0xb8] sm:$0xff]
    %v2014 = vld [vmem:[%s3 + $0xc0] sm:$0xff]
    %v2015 = vld [vmem:[%s3 + $0xc8] sm:$0xff]
    %v2016 = vld [vmem:[%s3 + $0xd0] sm:$0xff]
    %v2017 = vld [vmem:[%s3 + $0xd8] sm:$0xff]
    %v2018 = vld [vmem:[%s3 + $0xe0] sm:$0xff]
    %v2019 = vld [vmem:[%s3 + $0xe8] sm:$0xff]
    %v2020 = vld [vmem:[%s3 + $0xf0] sm:$0xff]
    %v2021 = vld [vmem:[%s3 + $0xf8] sm:$0xff]
    %v2022 = vld [vmem:[%s3 + $0x100] sm:$0xff]
    %v2023 = vld [vmem:[%s3 + $0x108] sm:$0xff]
    %v2024 = vld [vmem:[%s3 + $0x110] sm:$0xff]
    %v2025 = vld [vmem:[%s3 + $0x118] sm:$0xff]
    %v2026 = vld [vmem:[%s3 + $0x120] sm:$0xff]
    %v2027 = vld [vmem:[%s3 + $0x128] sm:$0xff]
    %v2028 = vld [vmem:[%s3 + $0x130] sm:$0xff]
    %v2029 = vld [vmem:[%s3 + $0x138] sm:$0xff]
    %v2030 = vld [vmem:[%s3 + $0x140] sm:$0xff]
    %v2031 = vld [vmem:[%s3 + $0x148] sm:$0xff]
    %v2032 = vld [vmem:[%s3 + $0x150] sm:$0xff]
    %v2033 = vld [vmem:[%s3 + $0x158] sm:$0xff]
    %v2034 = vld [vmem:[%s3 + $0x160] sm:$0xff]
    %v2035 = vld [vmem:[%s3 + $0x168] sm:$0xff]
    %v2036 = vld [vmem:[%s3 + $0x170] sm:$0xff]
    %v2037 = vld [vmem:[%s3 + $0x178] sm:$0xff]
    %v2038 = vld [vmem:[%s3 + $0x180] sm:$0xff]
    %v2039 = vld [vmem:[%s3 + $0x188] sm:$0xff]
    %v2040 = vld [vmem:[%s3 + $0x190] sm:$0xff]
    %v2041 = vld [vmem:[%s3 + $0x198] sm:$0xff]
    %v2042 = vld [vmem:[%s3 + $0x1a0] sm:$0xff]
    %v2043 = vld [vmem:[%s3 + $0x1a8] sm:$0xff]
    %v2044 = vld [vmem:[%s3 + $0x1b0] sm:$0xff]
    %v2045 = vld [vmem:[%s3 + $0x1b8] sm:$0xff]
    %v2046 = vld [vmem:[%s3 + $0x1c0] sm:$0xff]
    %v2047 = vld [vmem:[%s3 + $0x1c8] sm:$0xff]
    %v2048 = vld [vmem:[%s3 + $0x1d0] sm:$0xff]
    %v2049 = vld [vmem:[%s3 + $0x1d8] sm:$0xff]
    %v2050 = vld [vmem:[%s3 + $0x1e0] sm:$0xff]
    %v2051 = vld [vmem:[%s3 + $0x1e8] sm:$0xff]
    %v2052 = vld [vmem:[%s3 + $0x1f0] sm:$0xff]
    %v2053 = vld [vmem:[%s3 + $0x1f8] sm:$0xff]
    %v2054 = vld [vmem:[%s3 + $0x200] sm:$0xff]
    %v2055 = vld [vmem:[%s3 + $0x208] sm:$0xff]
    %v2056 = vld [vmem:[%s3 + $0x210] sm:$0xff]
    %v2057 = vld [vmem:[%s3 + $0x218] sm:$0xff]
    %v2058 = vld [vmem:[%s3 + $0x220] sm:$0xff]
    %v2059 = vld [vmem:[%s3 + $0x228] sm:$0xff]
    %v2060 = vld [vmem:[%s3 + $0x230] sm:$0xff]
    %v2061 = vld [vmem:[%s3 + $0x238] sm:$0xff]
    %v2062 = vld [vmem:[%s3 + $0x240] sm:$0xff]
    %v2063 = vld [vmem:[%s3 + $0x248] sm:$0xff]
    %v2064 = vld [vmem:[%s3 + $0x250] sm:$0xff]
    %v2065 = vld [vmem:[%s3 + $0x258] sm:$0xff]
    %v2066 = vld [vmem:[%s3 + $0x260] sm:$0xff]
    %v2067 = vld [vmem:[%s3 + $0x268] sm:$0xff]
    %v2068 = vld [vmem:[%s3 + $0x270] sm:$0xff]
    %v2069 = vld [vmem:[%s3 + $0x278] sm:$0xff]
    %v2070 = vld [vmem:[%s3 + $0x280] sm:$0xff]
    %v2071 = vld [vmem:[%s3 + $0x288] sm:$0xff]
    %v2072 = vld [vmem:[%s3 + $0x290] sm:$0xff]
    %v2073 = vld [vmem:[%s3 + $0x298] sm:$0xff]
    %v2074 = vld [vmem:[%s3 + $0x2a0] sm:$0xff]
    %v2075 = vld [vmem:[%s3 + $0x2a8] sm:$0xff]
    %v2076 = vld [vmem:[%s3 + $0x2b0] sm:$0xff]
    %v2077 = vld [vmem:[%s3 + $0x2b8] sm:$0xff]
    %v2078 = vld [vmem:[%s3 + $0x2c0] sm:$0xff]
    %v2079 = vld [vmem:[%s3 + $0x2c8] sm:$0xff]
    %v2080 = vld [vmem:[%s3 + $0x2d0] sm:$0xff]
    %v2081 = vld [vmem:[%s3 + $0x2d8] sm:$0xff]
    %v2082 = vld [vmem:[%s3 + $0x2e0] sm:$0xff]
    %v2083 = vld [vmem:[%s3 + $0x2e8] sm:$0xff]
    %v2084 = vld [vmem:[%s3 + $0x2f0] sm:$0xff]
    %v2085 = vld [vmem:[%s3 + $0x2f8] sm:$0xff]
    %v2086 = vld [vmem:[%s3 + $0x300] sm:$0xff]
    %v2087 = vld [vmem:[%s3 + $0x308] sm:$0xff]
    %v2088 = vld [vmem:[%s3 + $0x310] sm:$0xff]
    %v2089 = vld [vmem:[%s3 + $0x318] sm:$0xff]
    %v2090 = vld [vmem:[%s3 + $0x320] sm:$0xff]
    %v2091 = vld [vmem:[%s3 + $0x328] sm:$0xff]
    %v2092 = vld [vmem:[%s3 + $0x330] sm:$0xff]
    %v2093 = vld [vmem:[%s3 + $0x338] sm:$0xff]
    %v2094 = vld [vmem:[%s3 + $0x340] sm:$0xff]
    %v2095 = vld [vmem:[%s3 + $0x348] sm:$0xff]
    %v2096 = vld [vmem:[%s3 + $0x350] sm:$0xff]
    %v2097 = vld [vmem:[%s3 + $0x358] sm:$0xff]
    %v2098 = vld [vmem:[%s3 + $0x360] sm:$0xff]
    %v2099 = vld [vmem:[%s3 + $0x368] sm:$0xff]
    %v2100 = vld [vmem:[%s3 + $0x370] sm:$0xff]
    %v2101 = vld [vmem:[%s3 + $0x378] sm:$0xff]
    %v2102 = vld [vmem:[%s3 + $0x380] sm:$0xff]
    %v2103 = vld [vmem:[%s3 + $0x388] sm:$0xff]
    %v2104 = vld [vmem:[%s3 + $0x390] sm:$0xff]
    %v2105 = vld [vmem:[%s3 + $0x398] sm:$0xff]
    %v2106 = vld [vmem:[%s3 + $0x3a0] sm:$0xff]
    %v2107 = vld [vmem:[%s3 + $0x3a8] sm:$0xff]
    %v2108 = vld [vmem:[%s3 + $0x3b0] sm:$0xff]
    %v2109 = vld [vmem:[%s3 + $0x3b8] sm:$0xff]
    %v2110 = vld [vmem:[%s3 + $0x3c0] sm:$0xff]
    %v2111 = vld [vmem:[%s3 + $0x3c8] sm:$0xff]
    %v2112 = vld [vmem:[%s3 + $0x3d0] sm:$0xff]
    %v2113 = vld [vmem:[%s3 + $0x3d8] sm:$0xff]
    %v2114 = vld [vmem:[%s3 + $0x3e0] sm:$0xff]
    %v2115 = vld [vmem:[%s3 + $0x3e8] sm:$0xff]
    %v2116 = vld [vmem:[%s3 + $0x3f0] sm:$0xff]
    %v2117 = vld [vmem:[%s3 + $0x3f8] sm:$0xff]
    %v2118 = vld [vmem:[%s3 + $0x400] sm:$0xff]
    %v2119 = vld [vmem:[%s3 + $0x408] sm:$0xff]
    %v2120 = vld [vmem:[%s3 + $0x410] sm:$0xff]
    %v2121 = vld [vmem:[%s3 + $0x418] sm:$0xff]
    %v2122 = vld [vmem:[%s3 + $0x420] sm:$0xff]
    %v2123 = vld [vmem:[%s3 + $0x428] sm:$0xff]
    %v2124 = vld [vmem:[%s3 + $0x430] sm:$0xff]
    %v2125 = vld [vmem:[%s3 + $0x438] sm:$0xff]
    %v2126 = vld [vmem:[%s3 + $0x440] sm:$0xff]
    %v2127 = vld [vmem:[%s3 + $0x448] sm:$0xff]
    %v2128 = vld [vmem:[%s3 + $0x450] sm:$0xff]
    %v2129 = vld [vmem:[%s3 + $0x458] sm:$0xff]
    %v2130 = vld [vmem:[%s3 + $0x460] sm:$0xff]
    %v2131 = vld [vmem:[%s3 + $0x468] sm:$0xff]
    %v2132 = vld [vmem:[%s3 + $0x470] sm:$0xff]
    %v2133 = vld [vmem:[%s3 + $0x478] sm:$0xff]
    %v2134 = vld [vmem:[%s3 + $0x480] sm:$0xff]
    %v2135 = vld [vmem:[%s3 + $0x488] sm:$0xff]
    %v2136 = vld [vmem:[%s3 + $0x490] sm:$0xff]
    %v2137 = vld [vmem:[%s3 + $0x498] sm:$0xff]
    %v2138 = vld [vmem:[%s3 + $0x4a0] sm:$0xff]
    %v2139 = vld [vmem:[%s3 + $0x4a8] sm:$0xff]
    %v2140 = vld [vmem:[%s3 + $0x4b0] sm:$0xff]
    %v2141 = vld [vmem:[%s3 + $0x4b8] sm:$0xff]
    %v2142 = vld [vmem:[%s3 + $0x4c0] sm:$0xff]
    %v2143 = vld [vmem:[%s3 + $0x4c8] sm:$0xff]
    %v2144 = vld [vmem:[%s3 + $0x4d0] sm:$0xff]
    %v2145 = vld [vmem:[%s3 + $0x4d8] sm:$0xff]
    %v2146 = vld [vmem:[%s3 + $0x4e0] sm:$0xff]
    %v2147 = vld [vmem:[%s3 + $0x4e8] sm:$0xff]
    %v2148 = vld [vmem:[%s3 + $0x4f0] sm:$0xff]
    %v2149 = vld [vmem:[%s3 + $0x4f8] sm:$0xff]
    %v2150 = vld [vmem:[%s3 + $0x500] sm:$0xff]
    %v2151 = vld [vmem:[%s3 + $0x508] sm:$0xff]
    %v2152 = vld [vmem:[%s3 + $0x510] sm:$0xff]
    %v2153 = vld [vmem:[%s3 + $0x518] sm:$0xff]
    %v2154 = vld [vmem:[%s3 + $0x520] sm:$0xff]
    %v2155 = vld [vmem:[%s3 + $0x528] sm:$0xff]
    %v2156 = vld [vmem:[%s3 + $0x530] sm:$0xff]
    %v2157 = vld [vmem:[%s3 + $0x538] sm:$0xff]
    %v2158 = vld [vmem:[%s3 + $0x540] sm:$0xff]
    %v2159 = vld [vmem:[%s3 + $0x548] sm:$0xff]
    %v2160 = vld [vmem:[%s3 + $0x550] sm:$0xff]
    %v2161 = vld [vmem:[%s3 + $0x558] sm:$0xff]
    %v2162 = vld [vmem:[%s3 + $0x560] sm:$0xff]
    %v2163 = vld [vmem:[%s3 + $0x568] sm:$0xff]
    %v2164 = vld [vmem:[%s3 + $0x570] sm:$0xff]
    %v2165 = vld [vmem:[%s3 + $0x578] sm:$0xff]
    %v2166 = vld [vmem:[%s3 + $0x580] sm:$0xff]
    %v2167 = vld [vmem:[%s3 + $0x588] sm:$0xff]
    %v2168 = vld [vmem:[%s3 + $0x590] sm:$0xff]
    %v2169 = vld [vmem:[%s3 + $0x598] sm:$0xff]
    %v2170 = vld [vmem:[%s3 + $0x5a0] sm:$0xff]
    %v2171 = vld [vmem:[%s3 + $0x5a8] sm:$0xff]
    %v2172 = vld [vmem:[%s3 + $0x5b0] sm:$0xff]
    %v2173 = vld [vmem:[%s3 + $0x5b8] sm:$0xff]
    %v2174 = vld [vmem:[%s3 + $0x5c0] sm:$0xff]
    %v2175 = vld [vmem:[%s3 + $0x5c8] sm:$0xff]
    %v2176 = vld [vmem:[%s3 + $0x5d0] sm:$0xff]
    %v2177 = vld [vmem:[%s3 + $0x5d8] sm:$0xff]
    %v2178 = vld [vmem:[%s3 + $0x5e0] sm:$0xff]
    %v2179 = vld [vmem:[%s3 + $0x5e8] sm:$0xff]
    %v2180 = vld [vmem:[%s3 + $0x5f0] sm:$0xff]
    %v2181 = vld [vmem:[%s3 + $0x5f8] sm:$0xff]
    %v2182 = vld [vmem:[%s3 + $0x600] sm:$0xff]
    %v2183 = vld [vmem:[%s3 + $0x608] sm:$0xff]
    %v2184 = vld [vmem:[%s3 + $0x610] sm:$0xff]
    %v2185 = vld [vmem:[%s3 + $0x618] sm:$0xff]
    %v2186 = vld [vmem:[%s3 + $0x620] sm:$0xff]
    %v2187 = vld [vmem:[%s3 + $0x628] sm:$0xff]
    %v2188 = vld [vmem:[%s3 + $0x630] sm:$0xff]
    %v2189 = vld [vmem:[%s3 + $0x638] sm:$0xff]
    %v2190 = vld [vmem:[%s3 + $0x640] sm:$0xff]
    %v2191 = vld [vmem:[%s3 + $0x648] sm:$0xff]
    %v2192 = vld [vmem:[%s3 + $0x650] sm:$0xff]
    %v2193 = vld [vmem:[%s3 + $0x658] sm:$0xff]
    %v2194 = vld [vmem:[%s3 + $0x660] sm:$0xff]
    %v2195 = vld [vmem:[%s3 + $0x668] sm:$0xff]
    %v2196 = vld [vmem:[%s3 + $0x670] sm:$0xff]
    %v2197 = vld [vmem:[%s3 + $0x678] sm:$0xff]
    %v2198 = vld [vmem:[%s3 + $0x680] sm:$0xff]
    %v2199 = vld [vmem:[%s3 + $0x688] sm:$0xff]
    %v2200 = vld [vmem:[%s3 + $0x690] sm:$0xff]
    %v2201 = vld [vmem:[%s3 + $0x698] sm:$0xff]
    %v2202 = vld [vmem:[%s3 + $0x6a0] sm:$0xff]
    %v2203 = vld [vmem:[%s3 + $0x6a8] sm:$0xff]
    %v2204 = vld [vmem:[%s3 + $0x6b0] sm:$0xff]
    %v2205 = vld [vmem:[%s3 + $0x6b8] sm:$0xff]
    %v2206 = vld [vmem:[%s3 + $0x6c0] sm:$0xff]
    %v2207 = vld [vmem:[%s3 + $0x6c8] sm:$0xff]
    %v2208 = vld [vmem:[%s3 + $0x6d0] sm:$0xff]
    %v2209 = vld [vmem:[%s3 + $0x6d8] sm:$0xff]
    %v2210 = vld [vmem:[%s3 + $0x6e0] sm:$0xff]
    %v2211 = vld [vmem:[%s3 + $0x6e8] sm:$0xff]
    %v2212 = vld [vmem:[%s3 + $0x6f0] sm:$0xff]
    %v2213 = vld [vmem:[%s3 + $0x6f8] sm:$0xff]
    %v2214 = vld [vmem:[%s3 + $0x700] sm:$0xff]
    %v2215 = vld [vmem:[%s3 + $0x708] sm:$0xff]
    %v2216 = vld [vmem:[%s3 + $0x710] sm:$0xff]
    %v2217 = vld [vmem:[%s3 + $0x718] sm:$0xff]
    %v2218 = vld [vmem:[%s3 + $0x720] sm:$0xff]
    %v2219 = vld [vmem:[%s3 + $0x728] sm:$0xff]
    %v2220 = vld [vmem:[%s3 + $0x730] sm:$0xff]
    %v2221 = vld [vmem:[%s3 + $0x738] sm:$0xff]
    %v2222 = vld [vmem:[%s3 + $0x740] sm:$0xff]
    %v2223 = vld [vmem:[%s3 + $0x748] sm:$0xff]
    %v2224 = vld [vmem:[%s3 + $0x750] sm:$0xff]
    %v2225 = vld [vmem:[%s3 + $0x758] sm:$0xff]
    %v2226 = vld [vmem:[%s3 + $0x760] sm:$0xff]
    %v2227 = vld [vmem:[%s3 + $0x768] sm:$0xff]
    %v2228 = vld [vmem:[%s3 + $0x770] sm:$0xff]
    %v2229 = vld [vmem:[%s3 + $0x778] sm:$0xff]
    %v2230 = vld [vmem:[%s3 + $0x780] sm:$0xff]
    %v2231 = vld [vmem:[%s3 + $0x788] sm:$0xff]
    %v2232 = vld [vmem:[%s3 + $0x790] sm:$0xff]
    %v2233 = vld [vmem:[%s3 + $0x798] sm:$0xff]
    %v2234 = vld [vmem:[%s3 + $0x7a0] sm:$0xff]
    %v2235 = vld [vmem:[%s3 + $0x7a8] sm:$0xff]
    %v2236 = vld [vmem:[%s3 + $0x7b0] sm:$0xff]
    %v2237 = vld [vmem:[%s3 + $0x7b8] sm:$0xff]
    %v2238 = vld [vmem:[%s3 + $0x7c0] sm:$0xff]
    %v2239 = vld [vmem:[%s3 + $0x7c8] sm:$0xff]
    %v2240 = vld [vmem:[%s3 + $0x7d0] sm:$0xff]
    %v2241 = vld [vmem:[%s3 + $0x7d8] sm:$0xff]
    %v2242 = vld [vmem:[%s3 + $0x7e0] sm:$0xff]
    %v2243 = vld [vmem:[%s3 + $0x7e8] sm:$0xff]
    %v2244 = vld [vmem:[%s3 + $0x7f0] sm:$0xff]
    %v2245 = vld [vmem:[%s3 + $0x7f8] sm:$0xff]
    %v2246 = vld [vmem:[%s3 + $0x800] sm:$0xff]
    %v2247 = vld [vmem:[%s3 + $0x808] sm:$0xff]
    %v2248 = vld [vmem:[%s3 + $0x810] sm:$0xff]
    %v2249 = vld [vmem:[%s3 + $0x818] sm:$0xff]
    %v2250 = vld [vmem:[%s3 + $0x820] sm:$0xff]
    %v2251 = vld [vmem:[%s3 + $0x828] sm:$0xff]
    %v2252 = vld [vmem:[%s3 + $0x830] sm:$0xff]
    %v2253 = vld [vmem:[%s3 + $0x838] sm:$0xff]
    %v2254 = vld [vmem:[%s3 + $0x840] sm:$0xff]
    %v2255 = vld [vmem:[%s3 + $0x848] sm:$0xff]
    %v2256 = vld [vmem:[%s3 + $0x850] sm:$0xff]
    %v2257 = vld [vmem:[%s3 + $0x858] sm:$0xff]
    %v2258 = vld [vmem:[%s3 + $0x860] sm:$0xff]
    %v2259 = vld [vmem:[%s3 + $0x868] sm:$0xff]
    %v2260 = vld [vmem:[%s3 + $0x870] sm:$0xff]
    %v2261 = vld [vmem:[%s3 + $0x878] sm:$0xff]
    %v2262 = vld [vmem:[%s3 + $0x880] sm:$0xff]
    %v2263 = vld [vmem:[%s3 + $0x888] sm:$0xff]
    %v2264 = vld [vmem:[%s3 + $0x890] sm:$0xff]
    %v2265 = vld [vmem:[%s3 + $0x898] sm:$0xff]
    %v2266 = vld [vmem:[%s3 + $0x8a0] sm:$0xff]
    %v2267 = vld [vmem:[%s3 + $0x8a8] sm:$0xff]
    %v2268 = vld [vmem:[%s3 + $0x8b0] sm:$0xff]
    %v2269 = vld [vmem:[%s3 + $0x8b8] sm:$0xff]
    %v2270 = vld [vmem:[%s3 + $0x8c0] sm:$0xff]
    %v2271 = vld [vmem:[%s3 + $0x8c8] sm:$0xff]
    %v2272 = vld [vmem:[%s3 + $0x8d0] sm:$0xff]
    %v2273 = vld [vmem:[%s3 + $0x8d8] sm:$0xff]
    %v2274 = vld [vmem:[%s3 + $0x8e0] sm:$0xff]
    %v2275 = vld [vmem:[%s3 + $0x8e8] sm:$0xff]
    %v2276 = vld [vmem:[%s3 + $0x8f0] sm:$0xff]
    %v2277 = vld [vmem:[%s3 + $0x8f8] sm:$0xff]
    %v2278 = vld [vmem:[%s3 + $0x900] sm:$0xff]
    %v2279 = vld [vmem:[%s3 + $0x908] sm:$0xff]
    %v2280 = vld [vmem:[%s3 + $0x910] sm:$0xff]
    %v2281 = vld [vmem:[%s3 + $0x918] sm:$0xff]
    %v2282 = vld [vmem:[%s3 + $0x920] sm:$0xff]
    %v2283 = vld [vmem:[%s3 + $0x928] sm:$0xff]
    %v2284 = vld [vmem:[%s3 + $0x930] sm:$0xff]
    %v2285 = vld [vmem:[%s3 + $0x938] sm:$0xff]
    %v2286 = vld [vmem:[%s3 + $0x940] sm:$0xff]
    %v2287 = vld [vmem:[%s3 + $0x948] sm:$0xff]
    %v2288 = vld [vmem:[%s3 + $0x950] sm:$0xff]
    %v2289 = vld [vmem:[%s3 + $0x958] sm:$0xff]
    %v2290 = vld [vmem:[%s3 + $0x960] sm:$0xff]
    %v2291 = vld [vmem:[%s3 + $0x968] sm:$0xff]
    %v2292 = vld [vmem:[%s3 + $0x970] sm:$0xff]
    %v2293 = vld [vmem:[%s3 + $0x978] sm:$0xff]
    %v2294 = vld [vmem:[%s3 + $0x980] sm:$0xff]
    %v2295 = vld [vmem:[%s3 + $0x988] sm:$0xff]
    %v2296 = vld [vmem:[%s3 + $0x990] sm:$0xff]
    %v2297 = vld [vmem:[%s3 + $0x998] sm:$0xff]
    %v2298 = vld [vmem:[%s3 + $0x9a0] sm:$0xff]
    %v2299 = vld [vmem:[%s3 + $0x9a8] sm:$0xff]
    %v2300 = vld [vmem:[%s3 + $0x9b0] sm:$0xff]
    %v2301 = vld [vmem:[%s3 + $0x9b8] sm:$0xff]
    %v2302 = vld [vmem:[%s3 + $0x9c0] sm:$0xff]
    %v2303 = vld [vmem:[%s3 + $0x9c8] sm:$0xff]
    %v2304 = vld [vmem:[%s3 + $0x9d0] sm:$0xff]
    %v2305 = vld [vmem:[%s3 + $0x9d8] sm:$0xff]
    %v2306 = vld [vmem:[%s3 + $0x9e0] sm:$0xff]
    %v2307 = vld [vmem:[%s3 + $0x9e8] sm:$0xff]
    %v2308 = vld [vmem:[%s3 + $0x9f0] sm:$0xff]
    %v2309 = vld [vmem:[%s3 + $0x9f8] sm:$0xff]
    %v2310 = vld [vmem:[%s3 + $0xa00] sm:$0xff]
    %v2311 = vld [vmem:[%s3 + $0xa08] sm:$0xff]
    %v2312 = vld [vmem:[%s3 + $0xa10] sm:$0xff]
    %v2313 = vld [vmem:[%s3 + $0xa18] sm:$0xff]
    %v2314 = vld [vmem:[%s3 + $0xa20] sm:$0xff]
    %v2315 = vld [vmem:[%s3 + $0xa28] sm:$0xff]
    %v2316 = vld [vmem:[%s3 + $0xa30] sm:$0xff]
    %v2317 = vld [vmem:[%s3 + $0xa38] sm:$0xff]
    %v2318 = vld [vmem:[%s3 + $0xa40] sm:$0xff]
    %v2319 = vld [vmem:[%s3 + $0xa48] sm:$0xff]
    %v2320 = vld [vmem:[%s3 + $0xa50] sm:$0xff]
    %v2321 = vld [vmem:[%s3 + $0xa58] sm:$0xff]
    %v2322 = vld [vmem:[%s3 + $0xa60] sm:$0xff]
    %v2323 = vld [vmem:[%s3 + $0xa68] sm:$0xff]
    %v2324 = vld [vmem:[%s3 + $0xa70] sm:$0xff]
    %v2325 = vld [vmem:[%s3 + $0xa78] sm:$0xff]
    %v2326 = vld [vmem:[%s3 + $0xa80] sm:$0xff]
    %v2327 = vld [vmem:[%s3 + $0xa88] sm:$0xff]
    %v2328 = vld [vmem:[%s3 + $0xa90] sm:$0xff]
    %v2329 = vld [vmem:[%s3 + $0xa98] sm:$0xff]
    %v2330 = vld [vmem:[%s3 + $0xaa0] sm:$0xff]
    %v2331 = vld [vmem:[%s3 + $0xaa8] sm:$0xff]
    %v2332 = vld [vmem:[%s3 + $0xab0] sm:$0xff]
    %v2333 = vld [vmem:[%s3 + $0xab8] sm:$0xff]
    %v2334 = vld [vmem:[%s3 + $0xac0] sm:$0xff]
    %v2335 = vld [vmem:[%s3 + $0xac8] sm:$0xff]
    %v2336 = vld [vmem:[%s3 + $0xad0] sm:$0xff]
    %v2337 = vld [vmem:[%s3 + $0xad8] sm:$0xff]
    %v2338 = vld [vmem:[%s3 + $0xae0] sm:$0xff]
    %v2339 = vld [vmem:[%s3 + $0xae8] sm:$0xff]
    %v2340 = vld [vmem:[%s3 + $0xaf0] sm:$0xff]
    %v2341 = vld [vmem:[%s3 + $0xaf8] sm:$0xff]
    %v2342 = vld [vmem:[%s3 + $0xb00] sm:$0xff]
    %v2343 = vld [vmem:[%s3 + $0xb08] sm:$0xff]
    %v2344 = vld [vmem:[%s3 + $0xb10] sm:$0xff]
    %v2345 = vld [vmem:[%s3 + $0xb18] sm:$0xff]
    %v2346 = vld [vmem:[%s3 + $0xb20] sm:$0xff]
    %v2347 = vld [vmem:[%s3 + $0xb28] sm:$0xff]
    %v2348 = vld [vmem:[%s3 + $0xb30] sm:$0xff]
    %v2349 = vld [vmem:[%s3 + $0xb38] sm:$0xff]
    %v2350 = vld [vmem:[%s4] sm:$0xf]
    %v2352 = vlaneseq
    %v2353 = vshrl.u32 %v2352, 7
    %v2354 = vsub.s32 0, %v2353
    %v2355 = vrot.slane %v2350, %v2354
    %v2356 = vlaneseq
    %v2357 = vshrl.u32 %v2356, 7
    %v2358 = vsub.s32 1, %v2357
    %v2359 = vrot.slane %v2350, %v2358
    %v2360 = vlaneseq
    %v2361 = vshrl.u32 %v2360, 7
    %v2362 = vsub.s32 2, %v2361
    %v2363 = vrot.slane %v2350, %v2362
    %v2364 = vlaneseq
    %v2365 = vshrl.u32 %v2364, 7
    %v2366 = vsub.s32 3, %v2365
    %v2367 = vrot.slane %v2350, %v2366
    %v2396 = vunpack.c.l.b16 %v1966
    %v2397 = vunpack.c.h.b16 %v1966
    %v2398 = vunpack.c.l.b16 %v1967
    %v2399 = vunpack.c.h.b16 %v1967
    %v2400 = vunpack.c.l.b16 %v1968
    %v2401 = vunpack.c.h.b16 %v1968
    %v2402 = vunpack.c.l.b16 %v1969
    %v2403 = vunpack.c.h.b16 %v1969
    %v2404 = vunpack.c.l.b16 %v1970
    %v2405 = vunpack.c.h.b16 %v1970
    %v2406 = vunpack.c.l.b16 %v1971
    %v2407 = vunpack.c.h.b16 %v1971
    %v2408 = vunpack.c.l.b16 %v1972
    %v2409 = vunpack.c.h.b16 %v1972
    %v2410 = vunpack.c.l.b16 %v1973
    %v2411 = vunpack.c.h.b16 %v1973
    %v2412 = vunpack.c.l.b16 %v1974
    %v2413 = vunpack.c.h.b16 %v1974
    %v2414 = vunpack.c.l.b16 %v1975
    %v2415 = vunpack.c.h.b16 %v1975
    %v2416 = vunpack.c.l.b16 %v1976
    %v2417 = vunpack.c.h.b16 %v1976
    %v2418 = vunpack.c.l.b16 %v1977
    %v2419 = vunpack.c.h.b16 %v1977
    %v2420 = vunpack.c.l.b16 %v1978
    %v2421 = vunpack.c.h.b16 %v1978
    %v2422 = vunpack.c.l.b16 %v1979
    %v2423 = vunpack.c.h.b16 %v1979
    %v2424 = vunpack.c.l.b16 %v1980
    %v2425 = vunpack.c.h.b16 %v1980
    %v2426 = vunpack.c.l.b16 %v1981
    %v2427 = vunpack.c.h.b16 %v1981
    %v2428 = vunpack.c.l.b16 %v1982
    %v2429 = vunpack.c.h.b16 %v1982
    %v2430 = vunpack.c.l.b16 %v1983
    %v2431 = vunpack.c.h.b16 %v1983
    %v2432 = vunpack.c.l.b16 %v1984
    %v2433 = vunpack.c.h.b16 %v1984
    %v2434 = vunpack.c.l.b16 %v1985
    %v2435 = vunpack.c.h.b16 %v1985
    %v2436 = vunpack.c.l.b16 %v1986
    %v2437 = vunpack.c.h.b16 %v1986
    %v2438 = vunpack.c.l.b16 %v1987
    %v2439 = vunpack.c.h.b16 %v1987
    %v2440 = vunpack.c.l.b16 %v1988
    %v2441 = vunpack.c.h.b16 %v1988
    %v2442 = vunpack.c.l.b16 %v1989
    %v2443 = vunpack.c.h.b16 %v1989
    %v2444 = vpack.c.b16 %v2408, %v2396
    %v2445 = vpack.c.b16 %v2409, %v2397
    %v2446 = vpack.c.b16 %v2410, %v2398
    %v2447 = vpack.c.b16 %v2411, %v2399
    %v2448 = vpack.c.b16 %v2412, %v2400
    %v2449 = vpack.c.b16 %v2413, %v2401
    %v2450 = vpack.c.b16 %v2414, %v2402
    %v2451 = vpack.c.b16 %v2415, %v2403
    %v2452 = vpack.c.b16 %v2416, %v2404
    %v2453 = vpack.c.b16 %v2417, %v2405
    %v2454 = vpack.c.b16 %v2418, %v2406
    %v2455 = vpack.c.b16 %v2419, %v2407
    %v2456 = vpack.c.b16 %v2432, %v2420
    %v2457 = vpack.c.b16 %v2433, %v2421
    %v2458 = vpack.c.b16 %v2434, %v2422
    %v2459 = vpack.c.b16 %v2435, %v2423
    %v2460 = vpack.c.b16 %v2436, %v2424
    %v2461 = vpack.c.b16 %v2437, %v2425
    %v2462 = vpack.c.b16 %v2438, %v2426
    %v2463 = vpack.c.b16 %v2439, %v2427
    %v2464 = vpack.c.b16 %v2440, %v2428
    %v2465 = vpack.c.b16 %v2441, %v2429
    %v2466 = vpack.c.b16 %v2442, %v2430
    %v2467 = vpack.c.b16 %v2443, %v2431
    %v2850 = vunpack.c.l.b16 %v1990
    %v2851 = vunpack.c.h.b16 %v1990
    %v2852 = vunpack.c.l.b16 %v1991
    %v2853 = vunpack.c.h.b16 %v1991
    %v2854 = vunpack.c.l.b16 %v1992
    %v2855 = vunpack.c.h.b16 %v1992
    %v2856 = vunpack.c.l.b16 %v1993
    %v2857 = vunpack.c.h.b16 %v1993
    %v2858 = vunpack.c.l.b16 %v1994
    %v2859 = vunpack.c.h.b16 %v1994
    %v2860 = vunpack.c.l.b16 %v1995
    %v2861 = vunpack.c.h.b16 %v1995
    %v2862 = vunpack.c.l.b16 %v1996
    %v2863 = vunpack.c.h.b16 %v1996
    %v2864 = vunpack.c.l.b16 %v1997
    %v2865 = vunpack.c.h.b16 %v1997
    %v2866 = vunpack.c.l.b16 %v1998
    %v2867 = vunpack.c.h.b16 %v1998
    %v2868 = vunpack.c.l.b16 %v1999
    %v2869 = vunpack.c.h.b16 %v1999
    %v2870 = vunpack.c.l.b16 %v2000
    %v2871 = vunpack.c.h.b16 %v2000
    %v2872 = vunpack.c.l.b16 %v2001
    %v2873 = vunpack.c.h.b16 %v2001
    %v2874 = vunpack.c.l.b16 %v2002
    %v2875 = vunpack.c.h.b16 %v2002
    %v2876 = vunpack.c.l.b16 %v2003
    %v2877 = vunpack.c.h.b16 %v2003
    %v2878 = vunpack.c.l.b16 %v2004
    %v2879 = vunpack.c.h.b16 %v2004
    %v2880 = vunpack.c.l.b16 %v2005
    %v2881 = vunpack.c.h.b16 %v2005
    %v2882 = vunpack.c.l.b16 %v2006
    %v2883 = vunpack.c.h.b16 %v2006
    %v2884 = vunpack.c.l.b16 %v2007
    %v2885 = vunpack.c.h.b16 %v2007
    %v2886 = vunpack.c.l.b16 %v2008
    %v2887 = vunpack.c.h.b16 %v2008
    %v2888 = vunpack.c.l.b16 %v2009
    %v2889 = vunpack.c.h.b16 %v2009
    %v2890 = vunpack.c.l.b16 %v2010
    %v2891 = vunpack.c.h.b16 %v2010
    %v2892 = vunpack.c.l.b16 %v2011
    %v2893 = vunpack.c.h.b16 %v2011
    %v2894 = vunpack.c.l.b16 %v2012
    %v2895 = vunpack.c.h.b16 %v2012
    %v2896 = vunpack.c.l.b16 %v2013
    %v2897 = vunpack.c.h.b16 %v2013
    %v2898 = vunpack.c.l.b16 %v2014
    %v2899 = vunpack.c.h.b16 %v2014
    %v2900 = vunpack.c.l.b16 %v2015
    %v2901 = vunpack.c.h.b16 %v2015
    %v2902 = vunpack.c.l.b16 %v2016
    %v2903 = vunpack.c.h.b16 %v2016
    %v2904 = vunpack.c.l.b16 %v2017
    %v2905 = vunpack.c.h.b16 %v2017
    %v2906 = vunpack.c.l.b16 %v2018
    %v2907 = vunpack.c.h.b16 %v2018
    %v2908 = vunpack.c.l.b16 %v2019
    %v2909 = vunpack.c.h.b16 %v2019
    %v2910 = vunpack.c.l.b16 %v2020
    %v2911 = vunpack.c.h.b16 %v2020
    %v2912 = vunpack.c.l.b16 %v2021
    %v2913 = vunpack.c.h.b16 %v2021
    %v2914 = vunpack.c.l.b16 %v2022
    %v2915 = vunpack.c.h.b16 %v2022
    %v2916 = vunpack.c.l.b16 %v2023
    %v2917 = vunpack.c.h.b16 %v2023
    %v2918 = vunpack.c.l.b16 %v2024
    %v2919 = vunpack.c.h.b16 %v2024
    %v2920 = vunpack.c.l.b16 %v2025
    %v2921 = vunpack.c.h.b16 %v2025
    %v2922 = vunpack.c.l.b16 %v2026
    %v2923 = vunpack.c.h.b16 %v2026
    %v2924 = vunpack.c.l.b16 %v2027
    %v2925 = vunpack.c.h.b16 %v2027
    %v2926 = vunpack.c.l.b16 %v2028
    %v2927 = vunpack.c.h.b16 %v2028
    %v2928 = vunpack.c.l.b16 %v2029
    %v2929 = vunpack.c.h.b16 %v2029
    %v2930 = vunpack.c.l.b16 %v2030
    %v2931 = vunpack.c.h.b16 %v2030
    %v2932 = vunpack.c.l.b16 %v2031
    %v2933 = vunpack.c.h.b16 %v2031
    %v2934 = vunpack.c.l.b16 %v2032
    %v2935 = vunpack.c.h.b16 %v2032
    %v2936 = vunpack.c.l.b16 %v2033
    %v2937 = vunpack.c.h.b16 %v2033
    %v2938 = vunpack.c.l.b16 %v2034
    %v2939 = vunpack.c.h.b16 %v2034
    %v2940 = vunpack.c.l.b16 %v2035
    %v2941 = vunpack.c.h.b16 %v2035
    %v2942 = vunpack.c.l.b16 %v2036
    %v2943 = vunpack.c.h.b16 %v2036
    %v2944 = vunpack.c.l.b16 %v2037
    %v2945 = vunpack.c.h.b16 %v2037
    %v2946 = vunpack.c.l.b16 %v2038
    %v2947 = vunpack.c.h.b16 %v2038
    %v2948 = vunpack.c.l.b16 %v2039
    %v2949 = vunpack.c.h.b16 %v2039
    %v2950 = vunpack.c.l.b16 %v2040
    %v2951 = vunpack.c.h.b16 %v2040
    %v2952 = vunpack.c.l.b16 %v2041
    %v2953 = vunpack.c.h.b16 %v2041
    %v2954 = vunpack.c.l.b16 %v2042
    %v2955 = vunpack.c.h.b16 %v2042
    %v2956 = vunpack.c.l.b16 %v2043
    %v2957 = vunpack.c.h.b16 %v2043
    %v2958 = vunpack.c.l.b16 %v2044
    %v2959 = vunpack.c.h.b16 %v2044
    %v2960 = vunpack.c.l.b16 %v2045
    %v2961 = vunpack.c.h.b16 %v2045
    %v2962 = vunpack.c.l.b16 %v2046
    %v2963 = vunpack.c.h.b16 %v2046
    %v2964 = vunpack.c.l.b16 %v2047
    %v2965 = vunpack.c.h.b16 %v2047
    %v2966 = vunpack.c.l.b16 %v2048
    %v2967 = vunpack.c.h.b16 %v2048
    %v2968 = vunpack.c.l.b16 %v2049
    %v2969 = vunpack.c.h.b16 %v2049
    %v2970 = vunpack.c.l.b16 %v2050
    %v2971 = vunpack.c.h.b16 %v2050
    %v2972 = vunpack.c.l.b16 %v2051
    %v2973 = vunpack.c.h.b16 %v2051
    %v2974 = vunpack.c.l.b16 %v2052
    %v2975 = vunpack.c.h.b16 %v2052
    %v2976 = vunpack.c.l.b16 %v2053
    %v2977 = vunpack.c.h.b16 %v2053
    %v2978 = vunpack.c.l.b16 %v2054
    %v2979 = vunpack.c.h.b16 %v2054
    %v2980 = vunpack.c.l.b16 %v2055
    %v2981 = vunpack.c.h.b16 %v2055
    %v2982 = vunpack.c.l.b16 %v2056
    %v2983 = vunpack.c.h.b16 %v2056
    %v2984 = vunpack.c.l.b16 %v2057
    %v2985 = vunpack.c.h.b16 %v2057
    %v2986 = vunpack.c.l.b16 %v2058
    %v2987 = vunpack.c.h.b16 %v2058
    %v2988 = vunpack.c.l.b16 %v2059
    %v2989 = vunpack.c.h.b16 %v2059
    %v2990 = vunpack.c.l.b16 %v2060
    %v2991 = vunpack.c.h.b16 %v2060
    %v2992 = vunpack.c.l.b16 %v2061
    %v2993 = vunpack.c.h.b16 %v2061
    %v2994 = vunpack.c.l.b16 %v2062
    %v2995 = vunpack.c.h.b16 %v2062
    %v2996 = vunpack.c.l.b16 %v2063
    %v2997 = vunpack.c.h.b16 %v2063
    %v2998 = vunpack.c.l.b16 %v2064
    %v2999 = vunpack.c.h.b16 %v2064
    %v3000 = vunpack.c.l.b16 %v2065
    %v3001 = vunpack.c.h.b16 %v2065
    %v3002 = vunpack.c.l.b16 %v2066
    %v3003 = vunpack.c.h.b16 %v2066
    %v3004 = vunpack.c.l.b16 %v2067
    %v3005 = vunpack.c.h.b16 %v2067
    %v3006 = vunpack.c.l.b16 %v2068
    %v3007 = vunpack.c.h.b16 %v2068
    %v3008 = vunpack.c.l.b16 %v2069
    %v3009 = vunpack.c.h.b16 %v2069
    %v3010 = vunpack.c.l.b16 %v2070
    %v3011 = vunpack.c.h.b16 %v2070
    %v3012 = vunpack.c.l.b16 %v2071
    %v3013 = vunpack.c.h.b16 %v2071
    %v3014 = vunpack.c.l.b16 %v2072
    %v3015 = vunpack.c.h.b16 %v2072
    %v3016 = vunpack.c.l.b16 %v2073
    %v3017 = vunpack.c.h.b16 %v2073
    %v3018 = vunpack.c.l.b16 %v2074
    %v3019 = vunpack.c.h.b16 %v2074
    %v3020 = vunpack.c.l.b16 %v2075
    %v3021 = vunpack.c.h.b16 %v2075
    %v3022 = vunpack.c.l.b16 %v2076
    %v3023 = vunpack.c.h.b16 %v2076
    %v3024 = vunpack.c.l.b16 %v2077
    %v3025 = vunpack.c.h.b16 %v2077
    %v3026 = vunpack.c.l.b16 %v2078
    %v3027 = vunpack.c.h.b16 %v2078
    %v3028 = vunpack.c.l.b16 %v2079
    %v3029 = vunpack.c.h.b16 %v2079
    %v3030 = vunpack.c.l.b16 %v2080
    %v3031 = vunpack.c.h.b16 %v2080
    %v3032 = vunpack.c.l.b16 %v2081
    %v3033 = vunpack.c.h.b16 %v2081
    %v3034 = vunpack.c.l.b16 %v2082
    %v3035 = vunpack.c.h.b16 %v2082
    %v3036 = vunpack.c.l.b16 %v2083
    %v3037 = vunpack.c.h.b16 %v2083
    %v3038 = vunpack.c.l.b16 %v2084
    %v3039 = vunpack.c.h.b16 %v2084
    %v3040 = vunpack.c.l.b16 %v2085
    %v3041 = vunpack.c.h.b16 %v2085
    %v3042 = vunpack.c.l.b16 %v2086
    %v3043 = vunpack.c.h.b16 %v2086
    %v3044 = vunpack.c.l.b16 %v2087
    %v3045 = vunpack.c.h.b16 %v2087
    %v3046 = vunpack.c.l.b16 %v2088
    %v3047 = vunpack.c.h.b16 %v2088
    %v3048 = vunpack.c.l.b16 %v2089
    %v3049 = vunpack.c.h.b16 %v2089
    %v3050 = vunpack.c.l.b16 %v2090
    %v3051 = vunpack.c.h.b16 %v2090
    %v3052 = vunpack.c.l.b16 %v2091
    %v3053 = vunpack.c.h.b16 %v2091
    %v3054 = vunpack.c.l.b16 %v2092
    %v3055 = vunpack.c.h.b16 %v2092
    %v3056 = vunpack.c.l.b16 %v2093
    %v3057 = vunpack.c.h.b16 %v2093
    %v3058 = vunpack.c.l.b16 %v2094
    %v3059 = vunpack.c.h.b16 %v2094
    %v3060 = vunpack.c.l.b16 %v2095
    %v3061 = vunpack.c.h.b16 %v2095
    %v3062 = vunpack.c.l.b16 %v2096
    %v3063 = vunpack.c.h.b16 %v2096
    %v3064 = vunpack.c.l.b16 %v2097
    %v3065 = vunpack.c.h.b16 %v2097
    %v3066 = vunpack.c.l.b16 %v2098
    %v3067 = vunpack.c.h.b16 %v2098
    %v3068 = vunpack.c.l.b16 %v2099
    %v3069 = vunpack.c.h.b16 %v2099
    %v3070 = vunpack.c.l.b16 %v2100
    %v3071 = vunpack.c.h.b16 %v2100
    %v3072 = vunpack.c.l.b16 %v2101
    %v3073 = vunpack.c.h.b16 %v2101
    %v3074 = vunpack.c.l.b16 %v2102
    %v3075 = vunpack.c.h.b16 %v2102
    %v3076 = vunpack.c.l.b16 %v2103
    %v3077 = vunpack.c.h.b16 %v2103
    %v3078 = vunpack.c.l.b16 %v2104
    %v3079 = vunpack.c.h.b16 %v2104
    %v3080 = vunpack.c.l.b16 %v2105
    %v3081 = vunpack.c.h.b16 %v2105
    %v3082 = vunpack.c.l.b16 %v2106
    %v3083 = vunpack.c.h.b16 %v2106
    %v3084 = vunpack.c.l.b16 %v2107
    %v3085 = vunpack.c.h.b16 %v2107
    %v3086 = vunpack.c.l.b16 %v2108
    %v3087 = vunpack.c.h.b16 %v2108
    %v3088 = vunpack.c.l.b16 %v2109
    %v3089 = vunpack.c.h.b16 %v2109
    %v3090 = vunpack.c.l.b16 %v2110
    %v3091 = vunpack.c.h.b16 %v2110
    %v3092 = vunpack.c.l.b16 %v2111
    %v3093 = vunpack.c.h.b16 %v2111
    %v3094 = vunpack.c.l.b16 %v2112
    %v3095 = vunpack.c.h.b16 %v2112
    %v3096 = vunpack.c.l.b16 %v2113
    %v3097 = vunpack.c.h.b16 %v2113
    %v3098 = vunpack.c.l.b16 %v2114
    %v3099 = vunpack.c.h.b16 %v2114
    %v3100 = vunpack.c.l.b16 %v2115
    %v3101 = vunpack.c.h.b16 %v2115
    %v3102 = vunpack.c.l.b16 %v2116
    %v3103 = vunpack.c.h.b16 %v2116
    %v3104 = vunpack.c.l.b16 %v2117
    %v3105 = vunpack.c.h.b16 %v2117
    %v3106 = vunpack.c.l.b16 %v2118
    %v3107 = vunpack.c.h.b16 %v2118
    %v3108 = vunpack.c.l.b16 %v2119
    %v3109 = vunpack.c.h.b16 %v2119
    %v3110 = vunpack.c.l.b16 %v2120
    %v3111 = vunpack.c.h.b16 %v2120
    %v3112 = vunpack.c.l.b16 %v2121
    %v3113 = vunpack.c.h.b16 %v2121
    %v3114 = vunpack.c.l.b16 %v2122
    %v3115 = vunpack.c.h.b16 %v2122
    %v3116 = vunpack.c.l.b16 %v2123
    %v3117 = vunpack.c.h.b16 %v2123
    %v3118 = vunpack.c.l.b16 %v2124
    %v3119 = vunpack.c.h.b16 %v2124
    %v3120 = vunpack.c.l.b16 %v2125
    %v3121 = vunpack.c.h.b16 %v2125
    %v3122 = vunpack.c.l.b16 %v2126
    %v3123 = vunpack.c.h.b16 %v2126
    %v3124 = vunpack.c.l.b16 %v2127
    %v3125 = vunpack.c.h.b16 %v2127
    %v3126 = vunpack.c.l.b16 %v2128
    %v3127 = vunpack.c.h.b16 %v2128
    %v3128 = vunpack.c.l.b16 %v2129
    %v3129 = vunpack.c.h.b16 %v2129
    %v3130 = vunpack.c.l.b16 %v2130
    %v3131 = vunpack.c.h.b16 %v2130
    %v3132 = vunpack.c.l.b16 %v2131
    %v3133 = vunpack.c.h.b16 %v2131
    %v3134 = vunpack.c.l.b16 %v2132
    %v3135 = vunpack.c.h.b16 %v2132
    %v3136 = vunpack.c.l.b16 %v2133
    %v3137 = vunpack.c.h.b16 %v2133
    %v3138 = vunpack.c.l.b16 %v2134
    %v3139 = vunpack.c.h.b16 %v2134
    %v3140 = vunpack.c.l.b16 %v2135
    %v3141 = vunpack.c.h.b16 %v2135
    %v3142 = vunpack.c.l.b16 %v2136
    %v3143 = vunpack.c.h.b16 %v2136
    %v3144 = vunpack.c.l.b16 %v2137
    %v3145 = vunpack.c.h.b16 %v2137
    %v3146 = vunpack.c.l.b16 %v2138
    %v3147 = vunpack.c.h.b16 %v2138
    %v3148 = vunpack.c.l.b16 %v2139
    %v3149 = vunpack.c.h.b16 %v2139
    %v3150 = vunpack.c.l.b16 %v2140
    %v3151 = vunpack.c.h.b16 %v2140
    %v3152 = vunpack.c.l.b16 %v2141
    %v3153 = vunpack.c.h.b16 %v2141
    %v3154 = vunpack.c.l.b16 %v2142
    %v3155 = vunpack.c.h.b16 %v2142
    %v3156 = vunpack.c.l.b16 %v2143
    %v3157 = vunpack.c.h.b16 %v2143
    %v3158 = vunpack.c.l.b16 %v2144
    %v3159 = vunpack.c.h.b16 %v2144
    %v3160 = vunpack.c.l.b16 %v2145
    %v3161 = vunpack.c.h.b16 %v2145
    %v3162 = vunpack.c.l.b16 %v2146
    %v3163 = vunpack.c.h.b16 %v2146
    %v3164 = vunpack.c.l.b16 %v2147
    %v3165 = vunpack.c.h.b16 %v2147
    %v3166 = vunpack.c.l.b16 %v2148
    %v3167 = vunpack.c.h.b16 %v2148
    %v3168 = vunpack.c.l.b16 %v2149
    %v3169 = vunpack.c.h.b16 %v2149
    %v3170 = vunpack.c.l.b16 %v2150
    %v3171 = vunpack.c.h.b16 %v2150
    %v3172 = vunpack.c.l.b16 %v2151
    %v3173 = vunpack.c.h.b16 %v2151
    %v3174 = vunpack.c.l.b16 %v2152
    %v3175 = vunpack.c.h.b16 %v2152
    %v3176 = vunpack.c.l.b16 %v2153
    %v3177 = vunpack.c.h.b16 %v2153
    %v3178 = vunpack.c.l.b16 %v2154
    %v3179 = vunpack.c.h.b16 %v2154
    %v3180 = vunpack.c.l.b16 %v2155
    %v3181 = vunpack.c.h.b16 %v2155
    %v3182 = vunpack.c.l.b16 %v2156
    %v3183 = vunpack.c.h.b16 %v2156
    %v3184 = vunpack.c.l.b16 %v2157
    %v3185 = vunpack.c.h.b16 %v2157
    %v3186 = vunpack.c.l.b16 %v2158
    %v3187 = vunpack.c.h.b16 %v2158
    %v3188 = vunpack.c.l.b16 %v2159
    %v3189 = vunpack.c.h.b16 %v2159
    %v3190 = vunpack.c.l.b16 %v2160
    %v3191 = vunpack.c.h.b16 %v2160
    %v3192 = vunpack.c.l.b16 %v2161
    %v3193 = vunpack.c.h.b16 %v2161
    %v3194 = vunpack.c.l.b16 %v2162
    %v3195 = vunpack.c.h.b16 %v2162
    %v3196 = vunpack.c.l.b16 %v2163
    %v3197 = vunpack.c.h.b16 %v2163
    %v3198 = vunpack.c.l.b16 %v2164
    %v3199 = vunpack.c.h.b16 %v2164
    %v3200 = vunpack.c.l.b16 %v2165
    %v3201 = vunpack.c.h.b16 %v2165
    %v3202 = vunpack.c.l.b16 %v2166
    %v3203 = vunpack.c.h.b16 %v2166
    %v3204 = vunpack.c.l.b16 %v2167
    %v3205 = vunpack.c.h.b16 %v2167
    %v3206 = vunpack.c.l.b16 %v2168
    %v3207 = vunpack.c.h.b16 %v2168
    %v3208 = vunpack.c.l.b16 %v2169
    %v3209 = vunpack.c.h.b16 %v2169
    %v3210 = vunpack.c.l.b16 %v2170
    %v3211 = vunpack.c.h.b16 %v2170
    %v3212 = vunpack.c.l.b16 %v2171
    %v3213 = vunpack.c.h.b16 %v2171
    %v3214 = vunpack.c.l.b16 %v2172
    %v3215 = vunpack.c.h.b16 %v2172
    %v3216 = vunpack.c.l.b16 %v2173
    %v3217 = vunpack.c.h.b16 %v2173
    %v3218 = vunpack.c.l.b16 %v2174
    %v3219 = vunpack.c.h.b16 %v2174
    %v3220 = vunpack.c.l.b16 %v2175
    %v3221 = vunpack.c.h.b16 %v2175
    %v3222 = vunpack.c.l.b16 %v2176
    %v3223 = vunpack.c.h.b16 %v2176
    %v3224 = vunpack.c.l.b16 %v2177
    %v3225 = vunpack.c.h.b16 %v2177
    %v3226 = vunpack.c.l.b16 %v2178
    %v3227 = vunpack.c.h.b16 %v2178
    %v3228 = vunpack.c.l.b16 %v2179
    %v3229 = vunpack.c.h.b16 %v2179
    %v3230 = vunpack.c.l.b16 %v2180
    %v3231 = vunpack.c.h.b16 %v2180
    %v3232 = vunpack.c.l.b16 %v2181
    %v3233 = vunpack.c.h.b16 %v2181
    %v3234 = vunpack.c.l.b16 %v2182
    %v3235 = vunpack.c.h.b16 %v2182
    %v3236 = vunpack.c.l.b16 %v2183
    %v3237 = vunpack.c.h.b16 %v2183
    %v3238 = vunpack.c.l.b16 %v2184
    %v3239 = vunpack.c.h.b16 %v2184
    %v3240 = vunpack.c.l.b16 %v2185
    %v3241 = vunpack.c.h.b16 %v2185
    %v3242 = vunpack.c.l.b16 %v2186
    %v3243 = vunpack.c.h.b16 %v2186
    %v3244 = vunpack.c.l.b16 %v2187
    %v3245 = vunpack.c.h.b16 %v2187
    %v3246 = vunpack.c.l.b16 %v2188
    %v3247 = vunpack.c.h.b16 %v2188
    %v3248 = vunpack.c.l.b16 %v2189
    %v3249 = vunpack.c.h.b16 %v2189
    %v3250 = vunpack.c.l.b16 %v2190
    %v3251 = vunpack.c.h.b16 %v2190
    %v3252 = vunpack.c.l.b16 %v2191
    %v3253 = vunpack.c.h.b16 %v2191
    %v3254 = vunpack.c.l.b16 %v2192
    %v3255 = vunpack.c.h.b16 %v2192
    %v3256 = vunpack.c.l.b16 %v2193
    %v3257 = vunpack.c.h.b16 %v2193
    %v3258 = vunpack.c.l.b16 %v2194
    %v3259 = vunpack.c.h.b16 %v2194
    %v3260 = vunpack.c.l.b16 %v2195
    %v3261 = vunpack.c.h.b16 %v2195
    %v3262 = vunpack.c.l.b16 %v2196
    %v3263 = vunpack.c.h.b16 %v2196
    %v3264 = vunpack.c.l.b16 %v2197
    %v3265 = vunpack.c.h.b16 %v2197
    %v3266 = vunpack.c.l.b16 %v2198
    %v3267 = vunpack.c.h.b16 %v2198
    %v3268 = vunpack.c.l.b16 %v2199
    %v3269 = vunpack.c.h.b16 %v2199
    %v3270 = vunpack.c.l.b16 %v2200
    %v3271 = vunpack.c.h.b16 %v2200
    %v3272 = vunpack.c.l.b16 %v2201
    %v3273 = vunpack.c.h.b16 %v2201
    %v3274 = vunpack.c.l.b16 %v2202
    %v3275 = vunpack.c.h.b16 %v2202
    %v3276 = vunpack.c.l.b16 %v2203
    %v3277 = vunpack.c.h.b16 %v2203
    %v3278 = vunpack.c.l.b16 %v2204
    %v3279 = vunpack.c.h.b16 %v2204
    %v3280 = vunpack.c.l.b16 %v2205
    %v3281 = vunpack.c.h.b16 %v2205
    %v3282 = vunpack.c.l.b16 %v2206
    %v3283 = vunpack.c.h.b16 %v2206
    %v3284 = vunpack.c.l.b16 %v2207
    %v3285 = vunpack.c.h.b16 %v2207
    %v3286 = vunpack.c.l.b16 %v2208
    %v3287 = vunpack.c.h.b16 %v2208
    %v3288 = vunpack.c.l.b16 %v2209
    %v3289 = vunpack.c.h.b16 %v2209
    %v3290 = vunpack.c.l.b16 %v2210
    %v3291 = vunpack.c.h.b16 %v2210
    %v3292 = vunpack.c.l.b16 %v2211
    %v3293 = vunpack.c.h.b16 %v2211
    %v3294 = vunpack.c.l.b16 %v2212
    %v3295 = vunpack.c.h.b16 %v2212
    %v3296 = vunpack.c.l.b16 %v2213
    %v3297 = vunpack.c.h.b16 %v2213
    %v3298 = vunpack.c.l.b16 %v2214
    %v3299 = vunpack.c.h.b16 %v2214
    %v3300 = vunpack.c.l.b16 %v2215
    %v3301 = vunpack.c.h.b16 %v2215
    %v3302 = vunpack.c.l.b16 %v2216
    %v3303 = vunpack.c.h.b16 %v2216
    %v3304 = vunpack.c.l.b16 %v2217
    %v3305 = vunpack.c.h.b16 %v2217
    %v3306 = vunpack.c.l.b16 %v2218
    %v3307 = vunpack.c.h.b16 %v2218
    %v3308 = vunpack.c.l.b16 %v2219
    %v3309 = vunpack.c.h.b16 %v2219
    %v3310 = vunpack.c.l.b16 %v2220
    %v3311 = vunpack.c.h.b16 %v2220
    %v3312 = vunpack.c.l.b16 %v2221
    %v3313 = vunpack.c.h.b16 %v2221
    %v3314 = vunpack.c.l.b16 %v2222
    %v3315 = vunpack.c.h.b16 %v2222
    %v3316 = vunpack.c.l.b16 %v2223
    %v3317 = vunpack.c.h.b16 %v2223
    %v3318 = vunpack.c.l.b16 %v2224
    %v3319 = vunpack.c.h.b16 %v2224
    %v3320 = vunpack.c.l.b16 %v2225
    %v3321 = vunpack.c.h.b16 %v2225
    %v3322 = vunpack.c.l.b16 %v2226
    %v3323 = vunpack.c.h.b16 %v2226
    %v3324 = vunpack.c.l.b16 %v2227
    %v3325 = vunpack.c.h.b16 %v2227
    %v3326 = vunpack.c.l.b16 %v2228
    %v3327 = vunpack.c.h.b16 %v2228
    %v3328 = vunpack.c.l.b16 %v2229
    %v3329 = vunpack.c.h.b16 %v2229
    %v3330 = vunpack.c.l.b16 %v2230
    %v3331 = vunpack.c.h.b16 %v2230
    %v3332 = vunpack.c.l.b16 %v2231
    %v3333 = vunpack.c.h.b16 %v2231
    %v3334 = vunpack.c.l.b16 %v2232
    %v3335 = vunpack.c.h.b16 %v2232
    %v3336 = vunpack.c.l.b16 %v2233
    %v3337 = vunpack.c.h.b16 %v2233
    %v3338 = vunpack.c.l.b16 %v2234
    %v3339 = vunpack.c.h.b16 %v2234
    %v3340 = vunpack.c.l.b16 %v2235
    %v3341 = vunpack.c.h.b16 %v2235
    %v3342 = vunpack.c.l.b16 %v2236
    %v3343 = vunpack.c.h.b16 %v2236
    %v3344 = vunpack.c.l.b16 %v2237
    %v3345 = vunpack.c.h.b16 %v2237
    %v3346 = vunpack.c.l.b16 %v2238
    %v3347 = vunpack.c.h.b16 %v2238
    %v3348 = vunpack.c.l.b16 %v2239
    %v3349 = vunpack.c.h.b16 %v2239
    %v3350 = vunpack.c.l.b16 %v2240
    %v3351 = vunpack.c.h.b16 %v2240
    %v3352 = vunpack.c.l.b16 %v2241
    %v3353 = vunpack.c.h.b16 %v2241
    %v3354 = vunpack.c.l.b16 %v2242
    %v3355 = vunpack.c.h.b16 %v2242
    %v3356 = vunpack.c.l.b16 %v2243
    %v3357 = vunpack.c.h.b16 %v2243
    %v3358 = vunpack.c.l.b16 %v2244
    %v3359 = vunpack.c.h.b16 %v2244
    %v3360 = vunpack.c.l.b16 %v2245
    %v3361 = vunpack.c.h.b16 %v2245
    %v3362 = vunpack.c.l.b16 %v2246
    %v3363 = vunpack.c.h.b16 %v2246
    %v3364 = vunpack.c.l.b16 %v2247
    %v3365 = vunpack.c.h.b16 %v2247
    %v3366 = vunpack.c.l.b16 %v2248
    %v3367 = vunpack.c.h.b16 %v2248
    %v3368 = vunpack.c.l.b16 %v2249
    %v3369 = vunpack.c.h.b16 %v2249
    %v3370 = vunpack.c.l.b16 %v2250
    %v3371 = vunpack.c.h.b16 %v2250
    %v3372 = vunpack.c.l.b16 %v2251
    %v3373 = vunpack.c.h.b16 %v2251
    %v3374 = vunpack.c.l.b16 %v2252
    %v3375 = vunpack.c.h.b16 %v2252
    %v3376 = vunpack.c.l.b16 %v2253
    %v3377 = vunpack.c.h.b16 %v2253
    %v3378 = vunpack.c.l.b16 %v2254
    %v3379 = vunpack.c.h.b16 %v2254
    %v3380 = vunpack.c.l.b16 %v2255
    %v3381 = vunpack.c.h.b16 %v2255
    %v3382 = vunpack.c.l.b16 %v2256
    %v3383 = vunpack.c.h.b16 %v2256
    %v3384 = vunpack.c.l.b16 %v2257
    %v3385 = vunpack.c.h.b16 %v2257
    %v3386 = vunpack.c.l.b16 %v2258
    %v3387 = vunpack.c.h.b16 %v2258
    %v3388 = vunpack.c.l.b16 %v2259
    %v3389 = vunpack.c.h.b16 %v2259
    %v3390 = vunpack.c.l.b16 %v2260
    %v3391 = vunpack.c.h.b16 %v2260
    %v3392 = vunpack.c.l.b16 %v2261
    %v3393 = vunpack.c.h.b16 %v2261
    %v3394 = vunpack.c.l.b16 %v2262
    %v3395 = vunpack.c.h.b16 %v2262
    %v3396 = vunpack.c.l.b16 %v2263
    %v3397 = vunpack.c.h.b16 %v2263
    %v3398 = vunpack.c.l.b16 %v2264
    %v3399 = vunpack.c.h.b16 %v2264
    %v3400 = vunpack.c.l.b16 %v2265
    %v3401 = vunpack.c.h.b16 %v2265
    %v3402 = vunpack.c.l.b16 %v2266
    %v3403 = vunpack.c.h.b16 %v2266
    %v3404 = vunpack.c.l.b16 %v2267
    %v3405 = vunpack.c.h.b16 %v2267
    %v3406 = vunpack.c.l.b16 %v2268
    %v3407 = vunpack.c.h.b16 %v2268
    %v3408 = vunpack.c.l.b16 %v2269
    %v3409 = vunpack.c.h.b16 %v2269
    %v3410 = vunpack.c.l.b16 %v2270
    %v3411 = vunpack.c.h.b16 %v2270
    %v3412 = vunpack.c.l.b16 %v2271
    %v3413 = vunpack.c.h.b16 %v2271
    %v3414 = vunpack.c.l.b16 %v2272
    %v3415 = vunpack.c.h.b16 %v2272
    %v3416 = vunpack.c.l.b16 %v2273
    %v3417 = vunpack.c.h.b16 %v2273
    %v3418 = vunpack.c.l.b16 %v2274
    %v3419 = vunpack.c.h.b16 %v2274
    %v3420 = vunpack.c.l.b16 %v2275
    %v3421 = vunpack.c.h.b16 %v2275
    %v3422 = vunpack.c.l.b16 %v2276
    %v3423 = vunpack.c.h.b16 %v2276
    %v3424 = vunpack.c.l.b16 %v2277
    %v3425 = vunpack.c.h.b16 %v2277
    %v3426 = vunpack.c.l.b16 %v2278
    %v3427 = vunpack.c.h.b16 %v2278
    %v3428 = vunpack.c.l.b16 %v2279
    %v3429 = vunpack.c.h.b16 %v2279
    %v3430 = vunpack.c.l.b16 %v2280
    %v3431 = vunpack.c.h.b16 %v2280
    %v3432 = vunpack.c.l.b16 %v2281
    %v3433 = vunpack.c.h.b16 %v2281
    %v3434 = vunpack.c.l.b16 %v2282
    %v3435 = vunpack.c.h.b16 %v2282
    %v3436 = vunpack.c.l.b16 %v2283
    %v3437 = vunpack.c.h.b16 %v2283
    %v3438 = vunpack.c.l.b16 %v2284
    %v3439 = vunpack.c.h.b16 %v2284
    %v3440 = vunpack.c.l.b16 %v2285
    %v3441 = vunpack.c.h.b16 %v2285
    %v3442 = vunpack.c.l.b16 %v2286
    %v3443 = vunpack.c.h.b16 %v2286
    %v3444 = vunpack.c.l.b16 %v2287
    %v3445 = vunpack.c.h.b16 %v2287
    %v3446 = vunpack.c.l.b16 %v2288
    %v3447 = vunpack.c.h.b16 %v2288
    %v3448 = vunpack.c.l.b16 %v2289
    %v3449 = vunpack.c.h.b16 %v2289
    %v3450 = vunpack.c.l.b16 %v2290
    %v3451 = vunpack.c.h.b16 %v2290
    %v3452 = vunpack.c.l.b16 %v2291
    %v3453 = vunpack.c.h.b16 %v2291
    %v3454 = vunpack.c.l.b16 %v2292
    %v3455 = vunpack.c.h.b16 %v2292
    %v3456 = vunpack.c.l.b16 %v2293
    %v3457 = vunpack.c.h.b16 %v2293
    %v3458 = vunpack.c.l.b16 %v2294
    %v3459 = vunpack.c.h.b16 %v2294
    %v3460 = vunpack.c.l.b16 %v2295
    %v3461 = vunpack.c.h.b16 %v2295
    %v3462 = vunpack.c.l.b16 %v2296
    %v3463 = vunpack.c.h.b16 %v2296
    %v3464 = vunpack.c.l.b16 %v2297
    %v3465 = vunpack.c.h.b16 %v2297
    %v3466 = vunpack.c.l.b16 %v2298
    %v3467 = vunpack.c.h.b16 %v2298
    %v3468 = vunpack.c.l.b16 %v2299
    %v3469 = vunpack.c.h.b16 %v2299
    %v3470 = vunpack.c.l.b16 %v2300
    %v3471 = vunpack.c.h.b16 %v2300
    %v3472 = vunpack.c.l.b16 %v2301
    %v3473 = vunpack.c.h.b16 %v2301
    %v3474 = vunpack.c.l.b16 %v2302
    %v3475 = vunpack.c.h.b16 %v2302
    %v3476 = vunpack.c.l.b16 %v2303
    %v3477 = vunpack.c.h.b16 %v2303
    %v3478 = vunpack.c.l.b16 %v2304
    %v3479 = vunpack.c.h.b16 %v2304
    %v3480 = vunpack.c.l.b16 %v2305
    %v3481 = vunpack.c.h.b16 %v2305
    %v3482 = vunpack.c.l.b16 %v2306
    %v3483 = vunpack.c.h.b16 %v2306
    %v3484 = vunpack.c.l.b16 %v2307
    %v3485 = vunpack.c.h.b16 %v2307
    %v3486 = vunpack.c.l.b16 %v2308
    %v3487 = vunpack.c.h.b16 %v2308
    %v3488 = vunpack.c.l.b16 %v2309
    %v3489 = vunpack.c.h.b16 %v2309
    %v3490 = vunpack.c.l.b16 %v2310
    %v3491 = vunpack.c.h.b16 %v2310
    %v3492 = vunpack.c.l.b16 %v2311
    %v3493 = vunpack.c.h.b16 %v2311
    %v3494 = vunpack.c.l.b16 %v2312
    %v3495 = vunpack.c.h.b16 %v2312
    %v3496 = vunpack.c.l.b16 %v2313
    %v3497 = vunpack.c.h.b16 %v2313
    %v3498 = vunpack.c.l.b16 %v2314
    %v3499 = vunpack.c.h.b16 %v2314
    %v3500 = vunpack.c.l.b16 %v2315
    %v3501 = vunpack.c.h.b16 %v2315
    %v3502 = vunpack.c.l.b16 %v2316
    %v3503 = vunpack.c.h.b16 %v2316
    %v3504 = vunpack.c.l.b16 %v2317
    %v3505 = vunpack.c.h.b16 %v2317
    %v3506 = vunpack.c.l.b16 %v2318
    %v3507 = vunpack.c.h.b16 %v2318
    %v3508 = vunpack.c.l.b16 %v2319
    %v3509 = vunpack.c.h.b16 %v2319
    %v3510 = vunpack.c.l.b16 %v2320
    %v3511 = vunpack.c.h.b16 %v2320
    %v3512 = vunpack.c.l.b16 %v2321
    %v3513 = vunpack.c.h.b16 %v2321
    %v3514 = vunpack.c.l.b16 %v2322
    %v3515 = vunpack.c.h.b16 %v2322
    %v3516 = vunpack.c.l.b16 %v2323
    %v3517 = vunpack.c.h.b16 %v2323
    %v3518 = vunpack.c.l.b16 %v2324
    %v3519 = vunpack.c.h.b16 %v2324
    %v3520 = vunpack.c.l.b16 %v2325
    %v3521 = vunpack.c.h.b16 %v2325
    %v3522 = vunpack.c.l.b16 %v2326
    %v3523 = vunpack.c.h.b16 %v2326
    %v3524 = vunpack.c.l.b16 %v2327
    %v3525 = vunpack.c.h.b16 %v2327
    %v3526 = vunpack.c.l.b16 %v2328
    %v3527 = vunpack.c.h.b16 %v2328
    %v3528 = vunpack.c.l.b16 %v2329
    %v3529 = vunpack.c.h.b16 %v2329
    %v3530 = vunpack.c.l.b16 %v2330
    %v3531 = vunpack.c.h.b16 %v2330
    %v3532 = vunpack.c.l.b16 %v2331
    %v3533 = vunpack.c.h.b16 %v2331
    %v3534 = vunpack.c.l.b16 %v2332
    %v3535 = vunpack.c.h.b16 %v2332
    %v3536 = vunpack.c.l.b16 %v2333
    %v3537 = vunpack.c.h.b16 %v2333
    %v3538 = vunpack.c.l.b16 %v2334
    %v3539 = vunpack.c.h.b16 %v2334
    %v3540 = vunpack.c.l.b16 %v2335
    %v3541 = vunpack.c.h.b16 %v2335
    %v3542 = vunpack.c.l.b16 %v2336
    %v3543 = vunpack.c.h.b16 %v2336
    %v3544 = vunpack.c.l.b16 %v2337
    %v3545 = vunpack.c.h.b16 %v2337
    %v3546 = vunpack.c.l.b16 %v2338
    %v3547 = vunpack.c.h.b16 %v2338
    %v3548 = vunpack.c.l.b16 %v2339
    %v3549 = vunpack.c.h.b16 %v2339
    %v3550 = vunpack.c.l.b16 %v2340
    %v3551 = vunpack.c.h.b16 %v2340
    %v3552 = vunpack.c.l.b16 %v2341
    %v3553 = vunpack.c.h.b16 %v2341
    %v3554 = vunpack.c.l.b16 %v2342
    %v3555 = vunpack.c.h.b16 %v2342
    %v3556 = vunpack.c.l.b16 %v2343
    %v3557 = vunpack.c.h.b16 %v2343
    %v3558 = vunpack.c.l.b16 %v2344
    %v3559 = vunpack.c.h.b16 %v2344
    %v3560 = vunpack.c.l.b16 %v2345
    %v3561 = vunpack.c.h.b16 %v2345
    %v3562 = vunpack.c.l.b16 %v2346
    %v3563 = vunpack.c.h.b16 %v2346
    %v3564 = vunpack.c.l.b16 %v2347
    %v3565 = vunpack.c.h.b16 %v2347
    %v3566 = vunpack.c.l.b16 %v2348
    %v3567 = vunpack.c.h.b16 %v2348
    %v3568 = vunpack.c.l.b16 %v2349
    %v3569 = vunpack.c.h.b16 %v2349
    %v3570 = vpack.c.b16 %v2854, %v2850
    %v3571 = vpack.c.b16 %v2855, %v2851
    %v3572 = vpack.c.b16 %v2856, %v2852
    %v3573 = vpack.c.b16 %v2857, %v2853
    %v3574 = vpack.c.b16 %v2862, %v2858
    %v3575 = vpack.c.b16 %v2863, %v2859
    %v3576 = vpack.c.b16 %v2864, %v2860
    %v3577 = vpack.c.b16 %v2865, %v2861
    %v3578 = vpack.c.b16 %v2870, %v2866
    %v3579 = vpack.c.b16 %v2871, %v2867
    %v3580 = vpack.c.b16 %v2872, %v2868
    %v3581 = vpack.c.b16 %v2873, %v2869
    %v3582 = vpack.c.b16 %v2878, %v2874
    %v3583 = vpack.c.b16 %v2879, %v2875
    %v3584 = vpack.c.b16 %v2880, %v2876
    %v3585 = vpack.c.b16 %v2881, %v2877
    %v3586 = vpack.c.b16 %v2886, %v2882
    %v3587 = vpack.c.b16 %v2887, %v2883
    %v3588 = vpack.c.b16 %v2888, %v2884
    %v3589 = vpack.c.b16 %v2889, %v2885
    %v3590 = vpack.c.b16 %v2894, %v2890
    %v3591 = vpack.c.b16 %v2895, %v2891
    %v3592 = vpack.c.b16 %v2896, %v2892
    %v3593 = vpack.c.b16 %v2897, %v2893
    %v3594 = vpack.c.b16 %v2902, %v2898
    %v3595 = vpack.c.b16 %v2903, %v2899
    %v3596 = vpack.c.b16 %v2904, %v2900
    %v3597 = vpack.c.b16 %v2905, %v2901
    %v3598 = vpack.c.b16 %v2910, %v2906
    %v3599 = vpack.c.b16 %v2911, %v2907
    %v3600 = vpack.c.b16 %v2912, %v2908
    %v3601 = vpack.c.b16 %v2913, %v2909
    %v3602 = vpack.c.b16 %v2918, %v2914
    %v3603 = vpack.c.b16 %v2919, %v2915
    %v3604 = vpack.c.b16 %v2920, %v2916
    %v3605 = vpack.c.b16 %v2921, %v2917
    %v3606 = vpack.c.b16 %v2926, %v2922
    %v3607 = vpack.c.b16 %v2927, %v2923
    %v3608 = vpack.c.b16 %v2928, %v2924
    %v3609 = vpack.c.b16 %v2929, %v2925
    %v3610 = vpack.c.b16 %v2934, %v2930
    %v3611 = vpack.c.b16 %v2935, %v2931
    %v3612 = vpack.c.b16 %v2936, %v2932
    %v3613 = vpack.c.b16 %v2937, %v2933
    %v3614 = vpack.c.b16 %v2942, %v2938
    %v3615 = vpack.c.b16 %v2943, %v2939
    %v3616 = vpack.c.b16 %v2944, %v2940
    %v3617 = vpack.c.b16 %v2945, %v2941
    %v3618 = vpack.c.b16 %v2950, %v2946
    %v3619 = vpack.c.b16 %v2951, %v2947
    %v3620 = vpack.c.b16 %v2952, %v2948
    %v3621 = vpack.c.b16 %v2953, %v2949
    %v3622 = vpack.c.b16 %v2958, %v2954
    %v3623 = vpack.c.b16 %v2959, %v2955
    %v3624 = vpack.c.b16 %v2960, %v2956
    %v3625 = vpack.c.b16 %v2961, %v2957
    %v3626 = vpack.c.b16 %v2966, %v2962
    %v3627 = vpack.c.b16 %v2967, %v2963
    %v3628 = vpack.c.b16 %v2968, %v2964
    %v3629 = vpack.c.b16 %v2969, %v2965
    %v3630 = vpack.c.b16 %v2974, %v2970
    %v3631 = vpack.c.b16 %v2975, %v2971
    %v3632 = vpack.c.b16 %v2976, %v2972
    %v3633 = vpack.c.b16 %v2977, %v2973
    %v3634 = vpack.c.b16 %v2982, %v2978
    %v3635 = vpack.c.b16 %v2983, %v2979
    %v3636 = vpack.c.b16 %v2984, %v2980
    %v3637 = vpack.c.b16 %v2985, %v2981
    %v3638 = vpack.c.b16 %v2990, %v2986
    %v3639 = vpack.c.b16 %v2991, %v2987
    %v3640 = vpack.c.b16 %v2992, %v2988
    %v3641 = vpack.c.b16 %v2993, %v2989
    %v3642 = vpack.c.b16 %v2998, %v2994
    %v3643 = vpack.c.b16 %v2999, %v2995
    %v3644 = vpack.c.b16 %v3000, %v2996
    %v3645 = vpack.c.b16 %v3001, %v2997
    %v3646 = vpack.c.b16 %v3006, %v3002
    %v3647 = vpack.c.b16 %v3007, %v3003
    %v3648 = vpack.c.b16 %v3008, %v3004
    %v3649 = vpack.c.b16 %v3009, %v3005
    %v3650 = vpack.c.b16 %v3014, %v3010
    %v3651 = vpack.c.b16 %v3015, %v3011
    %v3652 = vpack.c.b16 %v3016, %v3012
    %v3653 = vpack.c.b16 %v3017, %v3013
    %v3654 = vpack.c.b16 %v3022, %v3018
    %v3655 = vpack.c.b16 %v3023, %v3019
    %v3656 = vpack.c.b16 %v3024, %v3020
    %v3657 = vpack.c.b16 %v3025, %v3021
    %v3658 = vpack.c.b16 %v3030, %v3026
    %v3659 = vpack.c.b16 %v3031, %v3027
    %v3660 = vpack.c.b16 %v3032, %v3028
    %v3661 = vpack.c.b16 %v3033, %v3029
    %v3662 = vpack.c.b16 %v3038, %v3034
    %v3663 = vpack.c.b16 %v3039, %v3035
    %v3664 = vpack.c.b16 %v3040, %v3036
    %v3665 = vpack.c.b16 %v3041, %v3037
    %v3666 = vpack.c.b16 %v3046, %v3042
    %v3667 = vpack.c.b16 %v3047, %v3043
    %v3668 = vpack.c.b16 %v3048, %v3044
    %v3669 = vpack.c.b16 %v3049, %v3045
    %v3670 = vpack.c.b16 %v3054, %v3050
    %v3671 = vpack.c.b16 %v3055, %v3051
    %v3672 = vpack.c.b16 %v3056, %v3052
    %v3673 = vpack.c.b16 %v3057, %v3053
    %v3674 = vpack.c.b16 %v3062, %v3058
    %v3675 = vpack.c.b16 %v3063, %v3059
    %v3676 = vpack.c.b16 %v3064, %v3060
    %v3677 = vpack.c.b16 %v3065, %v3061
    %v3678 = vpack.c.b16 %v3070, %v3066
    %v3679 = vpack.c.b16 %v3071, %v3067
    %v3680 = vpack.c.b16 %v3072, %v3068
    %v3681 = vpack.c.b16 %v3073, %v3069
    %v3682 = vpack.c.b16 %v3078, %v3074
    %v3683 = vpack.c.b16 %v3079, %v3075
    %v3684 = vpack.c.b16 %v3080, %v3076
    %v3685 = vpack.c.b16 %v3081, %v3077
    %v3686 = vpack.c.b16 %v3086, %v3082
    %v3687 = vpack.c.b16 %v3087, %v3083
    %v3688 = vpack.c.b16 %v3088, %v3084
    %v3689 = vpack.c.b16 %v3089, %v3085
    %v3690 = vpack.c.b16 %v3094, %v3090
    %v3691 = vpack.c.b16 %v3095, %v3091
    %v3692 = vpack.c.b16 %v3096, %v3092
    %v3693 = vpack.c.b16 %v3097, %v3093
    %v3694 = vpack.c.b16 %v3102, %v3098
    %v3695 = vpack.c.b16 %v3103, %v3099
    %v3696 = vpack.c.b16 %v3104, %v3100
    %v3697 = vpack.c.b16 %v3105, %v3101
    %v3698 = vpack.c.b16 %v3110, %v3106
    %v3699 = vpack.c.b16 %v3111, %v3107
    %v3700 = vpack.c.b16 %v3112, %v3108
    %v3701 = vpack.c.b16 %v3113, %v3109
    %v3702 = vpack.c.b16 %v3118, %v3114
    %v3703 = vpack.c.b16 %v3119, %v3115
    %v3704 = vpack.c.b16 %v3120, %v3116
    %v3705 = vpack.c.b16 %v3121, %v3117
    %v3706 = vpack.c.b16 %v3126, %v3122
    %v3707 = vpack.c.b16 %v3127, %v3123
    %v3708 = vpack.c.b16 %v3128, %v3124
    %v3709 = vpack.c.b16 %v3129, %v3125
    %v3710 = vpack.c.b16 %v3134, %v3130
    %v3711 = vpack.c.b16 %v3135, %v3131
    %v3712 = vpack.c.b16 %v3136, %v3132
    %v3713 = vpack.c.b16 %v3137, %v3133
    %v3714 = vpack.c.b16 %v3142, %v3138
    %v3715 = vpack.c.b16 %v3143, %v3139
    %v3716 = vpack.c.b16 %v3144, %v3140
    %v3717 = vpack.c.b16 %v3145, %v3141
    %v3718 = vpack.c.b16 %v3150, %v3146
    %v3719 = vpack.c.b16 %v3151, %v3147
    %v3720 = vpack.c.b16 %v3152, %v3148
    %v3721 = vpack.c.b16 %v3153, %v3149
    %v3722 = vpack.c.b16 %v3158, %v3154
    %v3723 = vpack.c.b16 %v3159, %v3155
    %v3724 = vpack.c.b16 %v3160, %v3156
    %v3725 = vpack.c.b16 %v3161, %v3157
    %v3726 = vpack.c.b16 %v3166, %v3162
    %v3727 = vpack.c.b16 %v3167, %v3163
    %v3728 = vpack.c.b16 %v3168, %v3164
    %v3729 = vpack.c.b16 %v3169, %v3165
    %v3730 = vpack.c.b16 %v3174, %v3170
    %v3731 = vpack.c.b16 %v3175, %v3171
    %v3732 = vpack.c.b16 %v3176, %v3172
    %v3733 = vpack.c.b16 %v3177, %v3173
    %v3734 = vpack.c.b16 %v3182, %v3178
    %v3735 = vpack.c.b16 %v3183, %v3179
    %v3736 = vpack.c.b16 %v3184, %v3180
    %v3737 = vpack.c.b16 %v3185, %v3181
    %v3738 = vpack.c.b16 %v3190, %v3186
    %v3739 = vpack.c.b16 %v3191, %v3187
    %v3740 = vpack.c.b16 %v3192, %v3188
    %v3741 = vpack.c.b16 %v3193, %v3189
    %v3742 = vpack.c.b16 %v3198, %v3194
    %v3743 = vpack.c.b16 %v3199, %v3195
    %v3744 = vpack.c.b16 %v3200, %v3196
    %v3745 = vpack.c.b16 %v3201, %v3197
    %v3746 = vpack.c.b16 %v3206, %v3202
    %v3747 = vpack.c.b16 %v3207, %v3203
    %v3748 = vpack.c.b16 %v3208, %v3204
    %v3749 = vpack.c.b16 %v3209, %v3205
    %v3750 = vpack.c.b16 %v3214, %v3210
    %v3751 = vpack.c.b16 %v3215, %v3211
    %v3752 = vpack.c.b16 %v3216, %v3212
    %v3753 = vpack.c.b16 %v3217, %v3213
    %v3754 = vpack.c.b16 %v3222, %v3218
    %v3755 = vpack.c.b16 %v3223, %v3219
    %v3756 = vpack.c.b16 %v3224, %v3220
    %v3757 = vpack.c.b16 %v3225, %v3221
    %v3758 = vpack.c.b16 %v3230, %v3226
    %v3759 = vpack.c.b16 %v3231, %v3227
    %v3760 = vpack.c.b16 %v3232, %v3228
    %v3761 = vpack.c.b16 %v3233, %v3229
    %v3762 = vpack.c.b16 %v3238, %v3234
    %v3763 = vpack.c.b16 %v3239, %v3235
    %v3764 = vpack.c.b16 %v3240, %v3236
    %v3765 = vpack.c.b16 %v3241, %v3237
    %v3766 = vpack.c.b16 %v3246, %v3242
    %v3767 = vpack.c.b16 %v3247, %v3243
    %v3768 = vpack.c.b16 %v3248, %v3244
    %v3769 = vpack.c.b16 %v3249, %v3245
    %v3770 = vpack.c.b16 %v3254, %v3250
    %v3771 = vpack.c.b16 %v3255, %v3251
    %v3772 = vpack.c.b16 %v3256, %v3252
    %v3773 = vpack.c.b16 %v3257, %v3253
    %v3774 = vpack.c.b16 %v3262, %v3258
    %v3775 = vpack.c.b16 %v3263, %v3259
    %v3776 = vpack.c.b16 %v3264, %v3260
    %v3777 = vpack.c.b16 %v3265, %v3261
    %v3778 = vpack.c.b16 %v3270, %v3266
    %v3779 = vpack.c.b16 %v3271, %v3267
    %v3780 = vpack.c.b16 %v3272, %v3268
    %v3781 = vpack.c.b16 %v3273, %v3269
    %v3782 = vpack.c.b16 %v3278, %v3274
    %v3783 = vpack.c.b16 %v3279, %v3275
    %v3784 = vpack.c.b16 %v3280, %v3276
    %v3785 = vpack.c.b16 %v3281, %v3277
    %v3786 = vpack.c.b16 %v3286, %v3282
    %v3787 = vpack.c.b16 %v3287, %v3283
    %v3788 = vpack.c.b16 %v3288, %v3284
    %v3789 = vpack.c.b16 %v3289, %v3285
    %v3790 = vpack.c.b16 %v3294, %v3290
    %v3791 = vpack.c.b16 %v3295, %v3291
    %v3792 = vpack.c.b16 %v3296, %v3292
    %v3793 = vpack.c.b16 %v3297, %v3293
    %v3794 = vpack.c.b16 %v3302, %v3298
    %v3795 = vpack.c.b16 %v3303, %v3299
    %v3796 = vpack.c.b16 %v3304, %v3300
    %v3797 = vpack.c.b16 %v3305, %v3301
    %v3798 = vpack.c.b16 %v3310, %v3306
    %v3799 = vpack.c.b16 %v3311, %v3307
    %v3800 = vpack.c.b16 %v3312, %v3308
    %v3801 = vpack.c.b16 %v3313, %v3309
    %v3802 = vpack.c.b16 %v3318, %v3314
    %v3803 = vpack.c.b16 %v3319, %v3315
    %v3804 = vpack.c.b16 %v3320, %v3316
    %v3805 = vpack.c.b16 %v3321, %v3317
    %v3806 = vpack.c.b16 %v3326, %v3322
    %v3807 = vpack.c.b16 %v3327, %v3323
    %v3808 = vpack.c.b16 %v3328, %v3324
    %v3809 = vpack.c.b16 %v3329, %v3325
    %v3810 = vpack.c.b16 %v3334, %v3330
    %v3811 = vpack.c.b16 %v3335, %v3331
    %v3812 = vpack.c.b16 %v3336, %v3332
    %v3813 = vpack.c.b16 %v3337, %v3333
    %v3814 = vpack.c.b16 %v3342, %v3338
    %v3815 = vpack.c.b16 %v3343, %v3339
    %v3816 = vpack.c.b16 %v3344, %v3340
    %v3817 = vpack.c.b16 %v3345, %v3341
    %v3818 = vpack.c.b16 %v3350, %v3346
    %v3819 = vpack.c.b16 %v3351, %v3347
    %v3820 = vpack.c.b16 %v3352, %v3348
    %v3821 = vpack.c.b16 %v3353, %v3349
    %v3822 = vpack.c.b16 %v3358, %v3354
    %v3823 = vpack.c.b16 %v3359, %v3355
    %v3824 = vpack.c.b16 %v3360, %v3356
    %v3825 = vpack.c.b16 %v3361, %v3357
    %v3826 = vpack.c.b16 %v3366, %v3362
    %v3827 = vpack.c.b16 %v3367, %v3363
    %v3828 = vpack.c.b16 %v3368, %v3364
    %v3829 = vpack.c.b16 %v3369, %v3365
    %v3830 = vpack.c.b16 %v3374, %v3370
    %v3831 = vpack.c.b16 %v3375, %v3371
    %v3832 = vpack.c.b16 %v3376, %v3372
    %v3833 = vpack.c.b16 %v3377, %v3373
    %v3834 = vpack.c.b16 %v3382, %v3378
    %v3835 = vpack.c.b16 %v3383, %v3379
    %v3836 = vpack.c.b16 %v3384, %v3380
    %v3837 = vpack.c.b16 %v3385, %v3381
    %v3838 = vpack.c.b16 %v3390, %v3386
    %v3839 = vpack.c.b16 %v3391, %v3387
    %v3840 = vpack.c.b16 %v3392, %v3388
    %v3841 = vpack.c.b16 %v3393, %v3389
    %v3842 = vpack.c.b16 %v3398, %v3394
    %v3843 = vpack.c.b16 %v3399, %v3395
    %v3844 = vpack.c.b16 %v3400, %v3396
    %v3845 = vpack.c.b16 %v3401, %v3397
    %v3846 = vpack.c.b16 %v3406, %v3402
    %v3847 = vpack.c.b16 %v3407, %v3403
    %v3848 = vpack.c.b16 %v3408, %v3404
    %v3849 = vpack.c.b16 %v3409, %v3405
    %v3850 = vpack.c.b16 %v3414, %v3410
    %v3851 = vpack.c.b16 %v3415, %v3411
    %v3852 = vpack.c.b16 %v3416, %v3412
    %v3853 = vpack.c.b16 %v3417, %v3413
    %v3854 = vpack.c.b16 %v3422, %v3418
    %v3855 = vpack.c.b16 %v3423, %v3419
    %v3856 = vpack.c.b16 %v3424, %v3420
    %v3857 = vpack.c.b16 %v3425, %v3421
    %v3858 = vpack.c.b16 %v3430, %v3426
    %v3859 = vpack.c.b16 %v3431, %v3427
    %v3860 = vpack.c.b16 %v3432, %v3428
    %v3861 = vpack.c.b16 %v3433, %v3429
    %v3862 = vpack.c.b16 %v3438, %v3434
    %v3863 = vpack.c.b16 %v3439, %v3435
    %v3864 = vpack.c.b16 %v3440, %v3436
    %v3865 = vpack.c.b16 %v3441, %v3437
    %v3866 = vpack.c.b16 %v3446, %v3442
    %v3867 = vpack.c.b16 %v3447, %v3443
    %v3868 = vpack.c.b16 %v3448, %v3444
    %v3869 = vpack.c.b16 %v3449, %v3445
    %v3870 = vpack.c.b16 %v3454, %v3450
    %v3871 = vpack.c.b16 %v3455, %v3451
    %v3872 = vpack.c.b16 %v3456, %v3452
    %v3873 = vpack.c.b16 %v3457, %v3453
    %v3874 = vpack.c.b16 %v3462, %v3458
    %v3875 = vpack.c.b16 %v3463, %v3459
    %v3876 = vpack.c.b16 %v3464, %v3460
    %v3877 = vpack.c.b16 %v3465, %v3461
    %v3878 = vpack.c.b16 %v3470, %v3466
    %v3879 = vpack.c.b16 %v3471, %v3467
    %v3880 = vpack.c.b16 %v3472, %v3468
    %v3881 = vpack.c.b16 %v3473, %v3469
    %v3882 = vpack.c.b16 %v3478, %v3474
    %v3883 = vpack.c.b16 %v3479, %v3475
    %v3884 = vpack.c.b16 %v3480, %v3476
    %v3885 = vpack.c.b16 %v3481, %v3477
    %v3886 = vpack.c.b16 %v3486, %v3482
    %v3887 = vpack.c.b16 %v3487, %v3483
    %v3888 = vpack.c.b16 %v3488, %v3484
    %v3889 = vpack.c.b16 %v3489, %v3485
    %v3890 = vpack.c.b16 %v3494, %v3490
    %v3891 = vpack.c.b16 %v3495, %v3491
    %v3892 = vpack.c.b16 %v3496, %v3492
    %v3893 = vpack.c.b16 %v3497, %v3493
    %v3894 = vpack.c.b16 %v3502, %v3498
    %v3895 = vpack.c.b16 %v3503, %v3499
    %v3896 = vpack.c.b16 %v3504, %v3500
    %v3897 = vpack.c.b16 %v3505, %v3501
    %v3898 = vpack.c.b16 %v3510, %v3506
    %v3899 = vpack.c.b16 %v3511, %v3507
    %v3900 = vpack.c.b16 %v3512, %v3508
    %v3901 = vpack.c.b16 %v3513, %v3509
    %v3902 = vpack.c.b16 %v3518, %v3514
    %v3903 = vpack.c.b16 %v3519, %v3515
    %v3904 = vpack.c.b16 %v3520, %v3516
    %v3905 = vpack.c.b16 %v3521, %v3517
    %v3906 = vpack.c.b16 %v3526, %v3522
    %v3907 = vpack.c.b16 %v3527, %v3523
    %v3908 = vpack.c.b16 %v3528, %v3524
    %v3909 = vpack.c.b16 %v3529, %v3525
    %v3910 = vpack.c.b16 %v3534, %v3530
    %v3911 = vpack.c.b16 %v3535, %v3531
    %v3912 = vpack.c.b16 %v3536, %v3532
    %v3913 = vpack.c.b16 %v3537, %v3533
    %v3914 = vpack.c.b16 %v3542, %v3538
    %v3915 = vpack.c.b16 %v3543, %v3539
    %v3916 = vpack.c.b16 %v3544, %v3540
    %v3917 = vpack.c.b16 %v3545, %v3541
    %v3918 = vpack.c.b16 %v3550, %v3546
    %v3919 = vpack.c.b16 %v3551, %v3547
    %v3920 = vpack.c.b16 %v3552, %v3548
    %v3921 = vpack.c.b16 %v3553, %v3549
    %v3922 = vpack.c.b16 %v3558, %v3554
    %v3923 = vpack.c.b16 %v3559, %v3555
    %v3924 = vpack.c.b16 %v3560, %v3556
    %v3925 = vpack.c.b16 %v3561, %v3557
    %v3926 = vpack.c.b16 %v3566, %v3562
    %v3927 = vpack.c.b16 %v3567, %v3563
    %v3928 = vpack.c.b16 %v3568, %v3564
    %v3929 = vpack.c.b16 %v3569, %v3565
    %v4291 = vsel %vm730, %v2455, 0
    %v4294 = vsel %vm730, %v2467, 0
    %4296 = vmatprep.subr.bf16.mxu0 %v3599
    %4297 = vmatpush1.bf16.msra.mxu0 %v3598
    %4298 = vmatprep.subr.bf16.mxu0 %v3595
    %4299 = vmatpush1.bf16.msra.mxu0 %v3594
    %4300 = vmatprep.subr.bf16.mxu0 %v3591
    %4301 = vmatpush1.bf16.msra.mxu0 %v3590
    %4302 = vmatprep.subr.bf16.mxu0 %v3587
    %4303 = vmatpush1.bf16.msra.mxu0 %v3586
    %4304 = vmatprep.subr.bf16.mxu0 %v3583
    %4305 = vmatpush1.bf16.msra.mxu0 %v3582
    %4306 = vmatprep.subr.bf16.mxu0 %v3579
    %4307 = vmatpush1.bf16.msra.mxu0 %v3578
    %4308 = vmatprep.subr.bf16.mxu0 %v3575
    %4309 = vmatpush1.bf16.msra.mxu0 %v3574
    %4310 = vmatprep.subr.bf16.mxu0 %v3571
    %4311 = vmatpush1.bf16.msra.mxu0 %v3570
    %4312 = vmatprep.subr.bf16.mxu0 %v3631
    %4313 = vmatpush2.bf16.msra.mxu0 %v3630
    %4314 = vmatprep.subr.bf16.mxu0 %v3627
    %4315 = vmatpush2.bf16.msra.mxu0 %v3626
    %4316 = vmatprep.subr.bf16.mxu0 %v3623
    %4317 = vmatpush2.bf16.msra.mxu0 %v3622
    %4318 = vmatprep.subr.bf16.mxu0 %v3619
    %4319 = vmatpush2.bf16.msra.mxu0 %v3618
    %4320 = vmatprep.subr.bf16.mxu0 %v3615
    %4321 = vmatpush2.bf16.msra.mxu0 %v3614
    %4322 = vmatprep.subr.bf16.mxu0 %v3611
    %4323 = vmatpush2.bf16.msra.mxu0 %v3610
    %4324 = vmatprep.subr.bf16.mxu0 %v3607
    %4325 = vmatpush2.bf16.msra.mxu0 %v3606
    %4326 = vmatprep.subr.bf16.mxu0 %v3603
    %4327 = vmatpush2.bf16.msra.mxu0 %v3602
    %4328 = vmatprep.mubr.bf16.mxu0 %v2445
    %4329 = vmatmul.mubr.bf16.gmra.mxu0 %v2444
    %v4330 = vpop.f32.mrf.mxu0
    %v4331 = vadd.f32 %v2355, %v4330
    %v4332 = vpop.f32.mrf.mxu0
    %v4333 = vadd.f32 %v2359, %v4332
    %v4334 = vpop.f32.mrf.mxu0
    %v4335 = vadd.f32 %v2355, %v4334
    %v4336 = vpop.f32.mrf.mxu0
    %v4337 = vadd.f32 %v2359, %v4336
    %4338 = vmatprep.mubr.bf16.mxu0 %v2457
    %4339 = vmatmul.mubr.bf16.gmra.mxu0 %v2456
    %v4340 = vpop.f32.mrf.mxu0
    %v4341 = vadd.f32 %v2355, %v4340
    %v4342 = vpop.f32.mrf.mxu0
    %v4343 = vadd.f32 %v2359, %v4342
    %v4344 = vpop.f32.mrf.mxu0
    %v4345 = vadd.f32 %v2355, %v4344
    %v4346 = vpop.f32.mrf.mxu0
    %v4347 = vadd.f32 %v2359, %v4346
    %4348 = vdwg.mxu0
    %4349 = vmatprep.subr.bf16.mxu0 %v3663
    %4350 = vmatpush1.bf16.msra.mxu0 %v3662
    %4351 = vmatprep.subr.bf16.mxu0 %v3659
    %4352 = vmatpush1.bf16.msra.mxu0 %v3658
    %4353 = vmatprep.subr.bf16.mxu0 %v3655
    %4354 = vmatpush1.bf16.msra.mxu0 %v3654
    %4355 = vmatprep.subr.bf16.mxu0 %v3651
    %4356 = vmatpush1.bf16.msra.mxu0 %v3650
    %4357 = vmatprep.subr.bf16.mxu0 %v3647
    %4358 = vmatpush1.bf16.msra.mxu0 %v3646
    %4359 = vmatprep.subr.bf16.mxu0 %v3643
    %4360 = vmatpush1.bf16.msra.mxu0 %v3642
    %4361 = vmatprep.subr.bf16.mxu0 %v3639
    %4362 = vmatpush1.bf16.msra.mxu0 %v3638
    %4363 = vmatprep.subr.bf16.mxu0 %v3635
    %4364 = vmatpush1.bf16.msra.mxu0 %v3634
    %4365 = vmatprep.subr.bf16.mxu0 %v3695
    %4366 = vmatpush2.bf16.msra.mxu0 %v3694
    %4367 = vmatprep.subr.bf16.mxu0 %v3691
    %4368 = vmatpush2.bf16.msra.mxu0 %v3690
    %4369 = vmatprep.subr.bf16.mxu0 %v3687
    %4370 = vmatpush2.bf16.msra.mxu0 %v3686
    %4371 = vmatprep.subr.bf16.mxu0 %v3683
    %4372 = vmatpush2.bf16.msra.mxu0 %v3682
    %4373 = vmatprep.subr.bf16.mxu0 %v3679
    %4374 = vmatpush2.bf16.msra.mxu0 %v3678
    %4375 = vmatprep.subr.bf16.mxu0 %v3675
    %4376 = vmatpush2.bf16.msra.mxu0 %v3674
    %4377 = vmatprep.subr.bf16.mxu0 %v3671
    %4378 = vmatpush2.bf16.msra.mxu0 %v3670
    %4379 = vmatprep.subr.bf16.mxu0 %v3667
    %4380 = vmatpush2.bf16.msra.mxu0 %v3666
    %4381 = vmatprep.mubr.bf16.mxu0 %v2447
    %4382 = vmatmul.mubr.bf16.gmra.mxu0 %v2446
    %v4383 = vpop.f32.mrf.mxu0
    %v4384 = vadd.f32 %v4331, %v4383
    %v4385 = vpop.f32.mrf.mxu0
    %v4386 = vadd.f32 %v4333, %v4385
    %v4387 = vpop.f32.mrf.mxu0
    %v4388 = vadd.f32 %v4335, %v4387
    %v4389 = vpop.f32.mrf.mxu0
    %v4390 = vadd.f32 %v4337, %v4389
    %4391 = vmatprep.mubr.bf16.mxu0 %v2459
    %4392 = vmatmul.mubr.bf16.gmra.mxu0 %v2458
    %v4393 = vpop.f32.mrf.mxu0
    %v4394 = vadd.f32 %v4341, %v4393
    %v4395 = vpop.f32.mrf.mxu0
    %v4396 = vadd.f32 %v4343, %v4395
    %v4397 = vpop.f32.mrf.mxu0
    %v4398 = vadd.f32 %v4345, %v4397
    %v4399 = vpop.f32.mrf.mxu0
    %v4400 = vadd.f32 %v4347, %v4399
    %4401 = vdwg.mxu0
    %4402 = vmatprep.subr.bf16.mxu0 %v3727
    %4403 = vmatpush1.bf16.msra.mxu0 %v3726
    %4404 = vmatprep.subr.bf16.mxu0 %v3723
    %4405 = vmatpush1.bf16.msra.mxu0 %v3722
    %4406 = vmatprep.subr.bf16.mxu0 %v3719
    %4407 = vmatpush1.bf16.msra.mxu0 %v3718
    %4408 = vmatprep.subr.bf16.mxu0 %v3715
    %4409 = vmatpush1.bf16.msra.mxu0 %v3714
    %4410 = vmatprep.subr.bf16.mxu0 %v3711
    %4411 = vmatpush1.bf16.msra.mxu0 %v3710
    %4412 = vmatprep.subr.bf16.mxu0 %v3707
    %4413 = vmatpush1.bf16.msra.mxu0 %v3706
    %4414 = vmatprep.subr.bf16.mxu0 %v3703
    %4415 = vmatpush1.bf16.msra.mxu0 %v3702
    %4416 = vmatprep.subr.bf16.mxu0 %v3699
    %4417 = vmatpush1.bf16.msra.mxu0 %v3698
    %4418 = vmatprep.subr.bf16.mxu0 %v3759
    %4419 = vmatpush2.bf16.msra.mxu0 %v3758
    %4420 = vmatprep.subr.bf16.mxu0 %v3755
    %4421 = vmatpush2.bf16.msra.mxu0 %v3754
    %4422 = vmatprep.subr.bf16.mxu0 %v3751
    %4423 = vmatpush2.bf16.msra.mxu0 %v3750
    %4424 = vmatprep.subr.bf16.mxu0 %v3747
    %4425 = vmatpush2.bf16.msra.mxu0 %v3746
    %4426 = vmatprep.subr.bf16.mxu0 %v3743
    %4427 = vmatpush2.bf16.msra.mxu0 %v3742
    %4428 = vmatprep.subr.bf16.mxu0 %v3739
    %4429 = vmatpush2.bf16.msra.mxu0 %v3738
    %4430 = vmatprep.subr.bf16.mxu0 %v3735
    %4431 = vmatpush2.bf16.msra.mxu0 %v3734
    %4432 = vmatprep.subr.bf16.mxu0 %v3731
    %4433 = vmatpush2.bf16.msra.mxu0 %v3730
    %4434 = vmatprep.mubr.bf16.mxu0 %v2449
    %4435 = vmatmul.mubr.bf16.gmra.mxu0 %v2448
    %v4436 = vpop.f32.mrf.mxu0
    %v4437 = vadd.f32 %v4384, %v4436
    %v4438 = vpop.f32.mrf.mxu0
    %v4439 = vadd.f32 %v4386, %v4438
    %v4440 = vpop.f32.mrf.mxu0
    %v4441 = vadd.f32 %v4388, %v4440
    %v4442 = vpop.f32.mrf.mxu0
    %v4443 = vadd.f32 %v4390, %v4442
    %4444 = vmatprep.mubr.bf16.mxu0 %v2461
    %4445 = vmatmul.mubr.bf16.gmra.mxu0 %v2460
    %v4446 = vpop.f32.mrf.mxu0
    %v4447 = vadd.f32 %v4394, %v4446
    %v4448 = vpop.f32.mrf.mxu0
    %v4449 = vadd.f32 %v4396, %v4448
    %v4450 = vpop.f32.mrf.mxu0
    %v4451 = vadd.f32 %v4398, %v4450
    %v4452 = vpop.f32.mrf.mxu0
    %v4453 = vadd.f32 %v4400, %v4452
    %4454 = vdwg.mxu0
    %4455 = vmatprep.subr.bf16.mxu0 %v3791
    %4456 = vmatpush1.bf16.msra.mxu0 %v3790
    %4457 = vmatprep.subr.bf16.mxu0 %v3787
    %4458 = vmatpush1.bf16.msra.mxu0 %v3786
    %4459 = vmatprep.subr.bf16.mxu0 %v3783
    %4460 = vmatpush1.bf16.msra.mxu0 %v3782
    %4461 = vmatprep.subr.bf16.mxu0 %v3779
    %4462 = vmatpush1.bf16.msra.mxu0 %v3778
    %4463 = vmatprep.subr.bf16.mxu0 %v3775
    %4464 = vmatpush1.bf16.msra.mxu0 %v3774
    %4465 = vmatprep.subr.bf16.mxu0 %v3771
    %4466 = vmatpush1.bf16.msra.mxu0 %v3770
    %4467 = vmatprep.subr.bf16.mxu0 %v3767
    %4468 = vmatpush1.bf16.msra.mxu0 %v3766
    %4469 = vmatprep.subr.bf16.mxu0 %v3763
    %4470 = vmatpush1.bf16.msra.mxu0 %v3762
    %4471 = vmatprep.subr.bf16.mxu0 %v3823
    %4472 = vmatpush2.bf16.msra.mxu0 %v3822
    %4473 = vmatprep.subr.bf16.mxu0 %v3819
    %4474 = vmatpush2.bf16.msra.mxu0 %v3818
    %4475 = vmatprep.subr.bf16.mxu0 %v3815
    %4476 = vmatpush2.bf16.msra.mxu0 %v3814
    %4477 = vmatprep.subr.bf16.mxu0 %v3811
    %4478 = vmatpush2.bf16.msra.mxu0 %v3810
    %4479 = vmatprep.subr.bf16.mxu0 %v3807
    %4480 = vmatpush2.bf16.msra.mxu0 %v3806
    %4481 = vmatprep.subr.bf16.mxu0 %v3803
    %4482 = vmatpush2.bf16.msra.mxu0 %v3802
    %4483 = vmatprep.subr.bf16.mxu0 %v3799
    %4484 = vmatpush2.bf16.msra.mxu0 %v3798
    %4485 = vmatprep.subr.bf16.mxu0 %v3795
    %4486 = vmatpush2.bf16.msra.mxu0 %v3794
    %4487 = vmatprep.mubr.bf16.mxu0 %v2451
    %4488 = vmatmul.mubr.bf16.gmra.mxu0 %v2450
    %v4489 = vpop.f32.mrf.mxu0
    %v4490 = vadd.f32 %v4437, %v4489
    %v4491 = vpop.f32.mrf.mxu0
    %v4492 = vadd.f32 %v4439, %v4491
    %v4493 = vpop.f32.mrf.mxu0
    %v4494 = vadd.f32 %v4441, %v4493
    %v4495 = vpop.f32.mrf.mxu0
    %v4496 = vadd.f32 %v4443, %v4495
    %4497 = vmatprep.mubr.bf16.mxu0 %v2463
    %4498 = vmatmul.mubr.bf16.gmra.mxu0 %v2462
    %v4499 = vpop.f32.mrf.mxu0
    %v4500 = vadd.f32 %v4447, %v4499
    %v4501 = vpop.f32.mrf.mxu0
    %v4502 = vadd.f32 %v4449, %v4501
    %v4503 = vpop.f32.mrf.mxu0
    %v4504 = vadd.f32 %v4451, %v4503
    %v4505 = vpop.f32.mrf.mxu0
    %v4506 = vadd.f32 %v4453, %v4505
    %4507 = vdwg.mxu0
    %4508 = vmatprep.subr.bf16.mxu0 %v3855
    %4509 = vmatpush1.bf16.msra.mxu0 %v3854
    %4510 = vmatprep.subr.bf16.mxu0 %v3851
    %4511 = vmatpush1.bf16.msra.mxu0 %v3850
    %4512 = vmatprep.subr.bf16.mxu0 %v3847
    %4513 = vmatpush1.bf16.msra.mxu0 %v3846
    %4514 = vmatprep.subr.bf16.mxu0 %v3843
    %4515 = vmatpush1.bf16.msra.mxu0 %v3842
    %4516 = vmatprep.subr.bf16.mxu0 %v3839
    %4517 = vmatpush1.bf16.msra.mxu0 %v3838
    %4518 = vmatprep.subr.bf16.mxu0 %v3835
    %4519 = vmatpush1.bf16.msra.mxu0 %v3834
    %4520 = vmatprep.subr.bf16.mxu0 %v3831
    %4521 = vmatpush1.bf16.msra.mxu0 %v3830
    %4522 = vmatprep.subr.bf16.mxu0 %v3827
    %4523 = vmatpush1.bf16.msra.mxu0 %v3826
    %4524 = vmatprep.subr.bf16.mxu0 %v3887
    %4525 = vmatpush2.bf16.msra.mxu0 %v3886
    %4526 = vmatprep.subr.bf16.mxu0 %v3883
    %4527 = vmatpush2.bf16.msra.mxu0 %v3882
    %4528 = vmatprep.subr.bf16.mxu0 %v3879
    %4529 = vmatpush2.bf16.msra.mxu0 %v3878
    %4530 = vmatprep.subr.bf16.mxu0 %v3875
    %4531 = vmatpush2.bf16.msra.mxu0 %v3874
    %4532 = vmatprep.subr.bf16.mxu0 %v3871
    %4533 = vmatpush2.bf16.msra.mxu0 %v3870
    %4534 = vmatprep.subr.bf16.mxu0 %v3867
    %4535 = vmatpush2.bf16.msra.mxu0 %v3866
    %4536 = vmatprep.subr.bf16.mxu0 %v3863
    %4537 = vmatpush2.bf16.msra.mxu0 %v3862
    %4538 = vmatprep.subr.bf16.mxu0 %v3859
    %4539 = vmatpush2.bf16.msra.mxu0 %v3858
    %4540 = vmatprep.mubr.bf16.mxu0 %v2453
    %4541 = vmatmul.mubr.bf16.gmra.mxu0 %v2452
    %v4542 = vpop.f32.mrf.mxu0
    %v4543 = vadd.f32 %v4490, %v4542
    %v4544 = vpop.f32.mrf.mxu0
    %v4545 = vadd.f32 %v4492, %v4544
    %v4546 = vpop.f32.mrf.mxu0
    %v4547 = vadd.f32 %v4494, %v4546
    %v4548 = vpop.f32.mrf.mxu0
    %v4549 = vadd.f32 %v4496, %v4548
    %4550 = vmatprep.mubr.bf16.mxu0 %v2465
    %4551 = vmatmul.mubr.bf16.gmra.mxu0 %v2464
    %v4552 = vpop.f32.mrf.mxu0
    %v4553 = vadd.f32 %v4500, %v4552
    %v4554 = vpop.f32.mrf.mxu0
    %v4555 = vadd.f32 %v4502, %v4554
    %v4556 = vpop.f32.mrf.mxu0
    %v4557 = vadd.f32 %v4504, %v4556
    %v4558 = vpop.f32.mrf.mxu0
    %v4559 = vadd.f32 %v4506, %v4558
    %4560 = vdwg.mxu0
    %4561 = vmatprep.subr.bf16.mxu0 %v3919
    %4562 = vmatpush1.bf16.msra.mxu0 %v3918
    %4563 = vmatprep.subr.bf16.mxu0 %v3915
    %4564 = vmatpush1.bf16.msra.mxu0 %v3914
    %4565 = vmatprep.subr.bf16.mxu0 %v3911
    %4566 = vmatpush1.bf16.msra.mxu0 %v3910
    %4567 = vmatprep.subr.bf16.mxu0 %v3907
    %4568 = vmatpush1.bf16.msra.mxu0 %v3906
    %4569 = vmatprep.subr.bf16.mxu0 %v3903
    %4570 = vmatpush1.bf16.msra.mxu0 %v3902
    %4571 = vmatprep.subr.bf16.mxu0 %v3899
    %4572 = vmatpush1.bf16.msra.mxu0 %v3898
    %4573 = vmatprep.subr.bf16.mxu0 %v3895
    %4574 = vmatpush1.bf16.msra.mxu0 %v3894
    %4575 = vmatprep.subr.bf16.mxu0 %v3891
    %4576 = vmatpush1.bf16.msra.mxu0 %v3890
    %4577 = vmatprep.subr.bf16.mxu0 0
    %4578 = vmatpush2.bf16.msra.mxu0 0
    %4579 = vmatprep.subr.bf16.mxu0 0
    %4580 = vmatpush2.bf16.msra.mxu0 0
    %4581 = vmatprep.subr.bf16.mxu0 0
    %4582 = vmatpush2.bf16.msra.mxu0 0
    %4583 = vmatprep.subr.bf16.mxu0 0
    %4584 = vmatpush2.bf16.msra.mxu0 0
    %4585 = vmatprep.subr.bf16.mxu0 0
    %4586 = vmatpush2.bf16.msra.mxu0 0
    %4587 = vmatprep.subr.bf16.mxu0 0
    %4588 = vmatpush2.bf16.msra.mxu0 0
    %4589 = vmatprep.subr.bf16.mxu0 %v3927
    %4590 = vmatpush2.bf16.msra.mxu0 %v3926
    %4591 = vmatprep.subr.bf16.mxu0 %v3923
    %4592 = vmatpush2.bf16.msra.mxu0 %v3922
    %4593 = vmatprep.mubr.bf16.mxu0 %v4291
    %4594 = vmatmul.mubr.bf16.gmra.mxu0 %v2454
    %v4595 = vpop.f32.mrf.mxu0
    %v4596 = vadd.f32 %v4543, %v4595
    %v4597 = vpop.f32.mrf.mxu0
    %v4598 = vadd.f32 %v4545, %v4597
    %v4599 = vpop.f32.mrf.mxu0
    %v4600 = vadd.f32 %v4547, %v4599
    %v4601 = vpop.f32.mrf.mxu0
    %v4602 = vadd.f32 %v4549, %v4601
    %4603 = vmatprep.mubr.bf16.mxu0 %v4294
    %4604 = vmatmul.mubr.bf16.gmra.mxu0 %v2466
    %v4605 = vpop.f32.mrf.mxu0
    %v4606 = vadd.f32 %v4553, %v4605
    %v4607 = vpop.f32.mrf.mxu0
    %v4608 = vadd.f32 %v4555, %v4607
    %v4609 = vpop.f32.mrf.mxu0
    %v4610 = vadd.f32 %v4557, %v4609
    %v4611 = vpop.f32.mrf.mxu0
    %v4612 = vadd.f32 %v4559, %v4611
    %4613 = vdwg.mxu0
    %4614 = vmatprep.subr.bf16.mxu0 %v3601
    %4615 = vmatpush1.bf16.msra.mxu0 %v3600
    %4616 = vmatprep.subr.bf16.mxu0 %v3597
    %4617 = vmatpush1.bf16.msra.mxu0 %v3596
    %4618 = vmatprep.subr.bf16.mxu0 %v3593
    %4619 = vmatpush1.bf16.msra.mxu0 %v3592
    %4620 = vmatprep.subr.bf16.mxu0 %v3589
    %4621 = vmatpush1.bf16.msra.mxu0 %v3588
    %4622 = vmatprep.subr.bf16.mxu0 %v3585
    %4623 = vmatpush1.bf16.msra.mxu0 %v3584
    %4624 = vmatprep.subr.bf16.mxu0 %v3581
    %4625 = vmatpush1.bf16.msra.mxu0 %v3580
    %4626 = vmatprep.subr.bf16.mxu0 %v3577
    %4627 = vmatpush1.bf16.msra.mxu0 %v3576
    %4628 = vmatprep.subr.bf16.mxu0 %v3573
    %4629 = vmatpush1.bf16.msra.mxu0 %v3572
    %4630 = vmatprep.subr.bf16.mxu0 %v3633
    %4631 = vmatpush2.bf16.msra.mxu0 %v3632
    %4632 = vmatprep.subr.bf16.mxu0 %v3629
    %4633 = vmatpush2.bf16.msra.mxu0 %v3628
    %4634 = vmatprep.subr.bf16.mxu0 %v3625
    %4635 = vmatpush2.bf16.msra.mxu0 %v3624
    %4636 = vmatprep.subr.bf16.mxu0 %v3621
    %4637 = vmatpush2.bf16.msra.mxu0 %v3620
    %4638 = vmatprep.subr.bf16.mxu0 %v3617
    %4639 = vmatpush2.bf16.msra.mxu0 %v3616
    %4640 = vmatprep.subr.bf16.mxu0 %v3613
    %4641 = vmatpush2.bf16.msra.mxu0 %v3612
    %4642 = vmatprep.subr.bf16.mxu0 %v3609
    %4643 = vmatpush2.bf16.msra.mxu0 %v3608
    %4644 = vmatprep.subr.bf16.mxu0 %v3605
    %4645 = vmatpush2.bf16.msra.mxu0 %v3604
    %4646 = vmatprep.mubr.bf16.mxu0 %v2445
    %4647 = vmatmul.mubr.bf16.gmra.mxu0 %v2444
    %v4648 = vpop.f32.mrf.mxu0
    %v4649 = vadd.f32 %v2363, %v4648
    %v4650 = vpop.f32.mrf.mxu0
    %v4651 = vadd.f32 %v2367, %v4650
    %v4652 = vpop.f32.mrf.mxu0
    %v4653 = vadd.f32 %v2363, %v4652
    %v4654 = vpop.f32.mrf.mxu0
    %v4655 = vadd.f32 %v2367, %v4654
    %4656 = vmatprep.mubr.bf16.mxu0 %v2457
    %4657 = vmatmul.mubr.bf16.gmra.mxu0 %v2456
    %v4658 = vpop.f32.mrf.mxu0
    %v4659 = vadd.f32 %v2363, %v4658
    %v4660 = vpop.f32.mrf.mxu0
    %v4661 = vadd.f32 %v2367, %v4660
    %v4662 = vpop.f32.mrf.mxu0
    %v4663 = vadd.f32 %v2363, %v4662
    %v4664 = vpop.f32.mrf.mxu0
    %v4665 = vadd.f32 %v2367, %v4664
    %4666 = vdwg.mxu0
    %4667 = vmatprep.subr.bf16.mxu0 %v3665
    %4668 = vmatpush1.bf16.msra.mxu0 %v3664
    %4669 = vmatprep.subr.bf16.mxu0 %v3661
    %4670 = vmatpush1.bf16.msra.mxu0 %v3660
    %4671 = vmatprep.subr.bf16.mxu0 %v3657
    %4672 = vmatpush1.bf16.msra.mxu0 %v3656
    %4673 = vmatprep.subr.bf16.mxu0 %v3653
    %4674 = vmatpush1.bf16.msra.mxu0 %v3652
    %4675 = vmatprep.subr.bf16.mxu0 %v3649
    %4676 = vmatpush1.bf16.msra.mxu0 %v3648
    %4677 = vmatprep.subr.bf16.mxu0 %v3645
    %4678 = vmatpush1.bf16.msra.mxu0 %v3644
    %4679 = vmatprep.subr.bf16.mxu0 %v3641
    %4680 = vmatpush1.bf16.msra.mxu0 %v3640
    %4681 = vmatprep.subr.bf16.mxu0 %v3637
    %4682 = vmatpush1.bf16.msra.mxu0 %v3636
    %4683 = vmatprep.subr.bf16.mxu0 %v3697
    %4684 = vmatpush2.bf16.msra.mxu0 %v3696
    %4685 = vmatprep.subr.bf16.mxu0 %v3693
    %4686 = vmatpush2.bf16.msra.mxu0 %v3692
    %4687 = vmatprep.subr.bf16.mxu0 %v3689
    %4688 = vmatpush2.bf16.msra.mxu0 %v3688
    %4689 = vmatprep.subr.bf16.mxu0 %v3685
    %4690 = vmatpush2.bf16.msra.mxu0 %v3684
    %4691 = vmatprep.subr.bf16.mxu0 %v3681
    %4692 = vmatpush2.bf16.msra.mxu0 %v3680
    %4693 = vmatprep.subr.bf16.mxu0 %v3677
    %4694 = vmatpush2.bf16.msra.mxu0 %v3676
    %4695 = vmatprep.subr.bf16.mxu0 %v3673
    %4696 = vmatpush2.bf16.msra.mxu0 %v3672
    %4697 = vmatprep.subr.bf16.mxu0 %v3669
    %4698 = vmatpush2.bf16.msra.mxu0 %v3668
    %4699 = vmatprep.mubr.bf16.mxu0 %v2447
    %4700 = vmatmul.mubr.bf16.gmra.mxu0 %v2446
    %v4701 = vpop.f32.mrf.mxu0
    %v4702 = vadd.f32 %v4649, %v4701
    %v4703 = vpop.f32.mrf.mxu0
    %v4704 = vadd.f32 %v4651, %v4703
    %v4705 = vpop.f32.mrf.mxu0
    %v4706 = vadd.f32 %v4653, %v4705
    %v4707 = vpop.f32.mrf.mxu0
    %v4708 = vadd.f32 %v4655, %v4707
    %4709 = vmatprep.mubr.bf16.mxu0 %v2459
    %4710 = vmatmul.mubr.bf16.gmra.mxu0 %v2458
    %v4711 = vpop.f32.mrf.mxu0
    %v4712 = vadd.f32 %v4659, %v4711
    %v4713 = vpop.f32.mrf.mxu0
    %v4714 = vadd.f32 %v4661, %v4713
    %v4715 = vpop.f32.mrf.mxu0
    %v4716 = vadd.f32 %v4663, %v4715
    %v4717 = vpop.f32.mrf.mxu0
    %v4718 = vadd.f32 %v4665, %v4717
    %4719 = vdwg.mxu0
    %4720 = vmatprep.subr.bf16.mxu0 %v3729
    %4721 = vmatpush1.bf16.msra.mxu0 %v3728
    %4722 = vmatprep.subr.bf16.mxu0 %v3725
    %4723 = vmatpush1.bf16.msra.mxu0 %v3724
    %4724 = vmatprep.subr.bf16.mxu0 %v3721
    %4725 = vmatpush1.bf16.msra.mxu0 %v3720
    %4726 = vmatprep.subr.bf16.mxu0 %v3717
    %4727 = vmatpush1.bf16.msra.mxu0 %v3716
    %4728 = vmatprep.subr.bf16.mxu0 %v3713
    %4729 = vmatpush1.bf16.msra.mxu0 %v3712
    %4730 = vmatprep.subr.bf16.mxu0 %v3709
    %4731 = vmatpush1.bf16.msra.mxu0 %v3708
    %4732 = vmatprep.subr.bf16.mxu0 %v3705
    %4733 = vmatpush1.bf16.msra.mxu0 %v3704
    %4734 = vmatprep.subr.bf16.mxu0 %v3701
    %4735 = vmatpush1.bf16.msra.mxu0 %v3700
    %4736 = vmatprep.subr.bf16.mxu0 %v3761
    %4737 = vmatpush2.bf16.msra.mxu0 %v3760
    %4738 = vmatprep.subr.bf16.mxu0 %v3757
    %4739 = vmatpush2.bf16.msra.mxu0 %v3756
    %4740 = vmatprep.subr.bf16.mxu0 %v3753
    %4741 = vmatpush2.bf16.msra.mxu0 %v3752
    %4742 = vmatprep.subr.bf16.mxu0 %v3749
    %4743 = vmatpush2.bf16.msra.mxu0 %v3748
    %4744 = vmatprep.subr.bf16.mxu0 %v3745
    %4745 = vmatpush2.bf16.msra.mxu0 %v3744
    %4746 = vmatprep.subr.bf16.mxu0 %v3741
    %4747 = vmatpush2.bf16.msra.mxu0 %v3740
    %4748 = vmatprep.subr.bf16.mxu0 %v3737
    %4749 = vmatpush2.bf16.msra.mxu0 %v3736
    %4750 = vmatprep.subr.bf16.mxu0 %v3733
    %4751 = vmatpush2.bf16.msra.mxu0 %v3732
    %4752 = vmatprep.mubr.bf16.mxu0 %v2449
    %4753 = vmatmul.mubr.bf16.gmra.mxu0 %v2448
    %v4754 = vpop.f32.mrf.mxu0
    %v4755 = vadd.f32 %v4702, %v4754
    %v4756 = vpop.f32.mrf.mxu0
    %v4757 = vadd.f32 %v4704, %v4756
    %v4758 = vpop.f32.mrf.mxu0
    %v4759 = vadd.f32 %v4706, %v4758
    %v4760 = vpop.f32.mrf.mxu0
    %v4761 = vadd.f32 %v4708, %v4760
    %4762 = vmatprep.mubr.bf16.mxu0 %v2461
    %4763 = vmatmul.mubr.bf16.gmra.mxu0 %v2460
    %v4764 = vpop.f32.mrf.mxu0
    %v4765 = vadd.f32 %v4712, %v4764
    %v4766 = vpop.f32.mrf.mxu0
    %v4767 = vadd.f32 %v4714, %v4766
    %v4768 = vpop.f32.mrf.mxu0
    %v4769 = vadd.f32 %v4716, %v4768
    %v4770 = vpop.f32.mrf.mxu0
    %v4771 = vadd.f32 %v4718, %v4770
    %4772 = vdwg.mxu0
    %4773 = vmatprep.subr.bf16.mxu0 %v3793
    %4774 = vmatpush1.bf16.msra.mxu0 %v3792
    %4775 = vmatprep.subr.bf16.mxu0 %v3789
    %4776 = vmatpush1.bf16.msra.mxu0 %v3788
    %4777 = vmatprep.subr.bf16.mxu0 %v3785
    %4778 = vmatpush1.bf16.msra.mxu0 %v3784
    %4779 = vmatprep.subr.bf16.mxu0 %v3781
    %4780 = vmatpush1.bf16.msra.mxu0 %v3780
    %4781 = vmatprep.subr.bf16.mxu0 %v3777
    %4782 = vmatpush1.bf16.msra.mxu0 %v3776
    %4783 = vmatprep.subr.bf16.mxu0 %v3773
    %4784 = vmatpush1.bf16.msra.mxu0 %v3772
    %4785 = vmatprep.subr.bf16.mxu0 %v3769
    %4786 = vmatpush1.bf16.msra.mxu0 %v3768
    %4787 = vmatprep.subr.bf16.mxu0 %v3765
    %4788 = vmatpush1.bf16.msra.mxu0 %v3764
    %4789 = vmatprep.subr.bf16.mxu0 %v3825
    %4790 = vmatpush2.bf16.msra.mxu0 %v3824
    %4791 = vmatprep.subr.bf16.mxu0 %v3821
    %4792 = vmatpush2.bf16.msra.mxu0 %v3820
    %4793 = vmatprep.subr.bf16.mxu0 %v3817
    %4794 = vmatpush2.bf16.msra.mxu0 %v3816
    %4795 = vmatprep.subr.bf16.mxu0 %v3813
    %4796 = vmatpush2.bf16.msra.mxu0 %v3812
    %4797 = vmatprep.subr.bf16.mxu0 %v3809
    %4798 = vmatpush2.bf16.msra.mxu0 %v3808
    %4799 = vmatprep.subr.bf16.mxu0 %v3805
    %4800 = vmatpush2.bf16.msra.mxu0 %v3804
    %4801 = vmatprep.subr.bf16.mxu0 %v3801
    %4802 = vmatpush2.bf16.msra.mxu0 %v3800
    %4803 = vmatprep.subr.bf16.mxu0 %v3797
    %4804 = vmatpush2.bf16.msra.mxu0 %v3796
    %4805 = vmatprep.mubr.bf16.mxu0 %v2451
    %4806 = vmatmul.mubr.bf16.gmra.mxu0 %v2450
    %v4807 = vpop.f32.mrf.mxu0
    %v4808 = vadd.f32 %v4755, %v4807
    %v4809 = vpop.f32.mrf.mxu0
    %v4810 = vadd.f32 %v4757, %v4809
    %v4811 = vpop.f32.mrf.mxu0
    %v4812 = vadd.f32 %v4759, %v4811
    %v4813 = vpop.f32.mrf.mxu0
    %v4814 = vadd.f32 %v4761, %v4813
    %4815 = vmatprep.mubr.bf16.mxu0 %v2463
    %4816 = vmatmul.mubr.bf16.gmra.mxu0 %v2462
    %v4817 = vpop.f32.mrf.mxu0
    %v4818 = vadd.f32 %v4765, %v4817
    %v4819 = vpop.f32.mrf.mxu0
    %v4820 = vadd.f32 %v4767, %v4819
    %v4821 = vpop.f32.mrf.mxu0
    %v4822 = vadd.f32 %v4769, %v4821
    %v4823 = vpop.f32.mrf.mxu0
    %v4824 = vadd.f32 %v4771, %v4823
    %4825 = vdwg.mxu0
    %4826 = vmatprep.subr.bf16.mxu0 %v3857
    %4827 = vmatpush1.bf16.msra.mxu0 %v3856
    %4828 = vmatprep.subr.bf16.mxu0 %v3853
    %4829 = vmatpush1.bf16.msra.mxu0 %v3852
    %4830 = vmatprep.subr.bf16.mxu0 %v3849
    %4831 = vmatpush1.bf16.msra.mxu0 %v3848
    %4832 = vmatprep.subr.bf16.mxu0 %v3845
    %4833 = vmatpush1.bf16.msra.mxu0 %v3844
    %4834 = vmatprep.subr.bf16.mxu0 %v3841
    %4835 = vmatpush1.bf16.msra.mxu0 %v3840
    %4836 = vmatprep.subr.bf16.mxu0 %v3837
    %4837 = vmatpush1.bf16.msra.mxu0 %v3836
    %4838 = vmatprep.subr.bf16.mxu0 %v3833
    %4839 = vmatpush1.bf16.msra.mxu0 %v3832
    %4840 = vmatprep.subr.bf16.mxu0 %v3829
    %4841 = vmatpush1.bf16.msra.mxu0 %v3828
    %4842 = vmatprep.subr.bf16.mxu0 %v3889
    %4843 = vmatpush2.bf16.msra.mxu0 %v3888
    %4844 = vmatprep.subr.bf16.mxu0 %v3885
    %4845 = vmatpush2.bf16.msra.mxu0 %v3884
    %4846 = vmatprep.subr.bf16.mxu0 %v3881
    %4847 = vmatpush2.bf16.msra.mxu0 %v3880
    %4848 = vmatprep.subr.bf16.mxu0 %v3877
    %4849 = vmatpush2.bf16.msra.mxu0 %v3876
    %4850 = vmatprep.subr.bf16.mxu0 %v3873
    %4851 = vmatpush2.bf16.msra.mxu0 %v3872
    %4852 = vmatprep.subr.bf16.mxu0 %v3869
    %4853 = vmatpush2.bf16.msra.mxu0 %v3868
    %4854 = vmatprep.subr.bf16.mxu0 %v3865
    %4855 = vmatpush2.bf16.msra.mxu0 %v3864
    %4856 = vmatprep.subr.bf16.mxu0 %v3861
    %4857 = vmatpush2.bf16.msra.mxu0 %v3860
    %4858 = vmatprep.mubr.bf16.mxu0 %v2453
    %4859 = vmatmul.mubr.bf16.gmra.mxu0 %v2452
    %v4860 = vpop.f32.mrf.mxu0
    %v4861 = vadd.f32 %v4808, %v4860
    %v4862 = vpop.f32.mrf.mxu0
    %v4863 = vadd.f32 %v4810, %v4862
    %v4864 = vpop.f32.mrf.mxu0
    %v4865 = vadd.f32 %v4812, %v4864
    %v4866 = vpop.f32.mrf.mxu0
    %v4867 = vadd.f32 %v4814, %v4866
    %4868 = vmatprep.mubr.bf16.mxu0 %v2465
    %4869 = vmatmul.mubr.bf16.gmra.mxu0 %v2464
    %v4870 = vpop.f32.mrf.mxu0
    %v4871 = vadd.f32 %v4818, %v4870
    %v4872 = vpop.f32.mrf.mxu0
    %v4873 = vadd.f32 %v4820, %v4872
    %v4874 = vpop.f32.mrf.mxu0
    %v4875 = vadd.f32 %v4822, %v4874
    %v4876 = vpop.f32.mrf.mxu0
    %v4877 = vadd.f32 %v4824, %v4876
    %4878 = vdwg.mxu0
    %4879 = vmatprep.subr.bf16.mxu0 %v3921
    %4880 = vmatpush1.bf16.msra.mxu0 %v3920
    %4881 = vmatprep.subr.bf16.mxu0 %v3917
    %4882 = vmatpush1.bf16.msra.mxu0 %v3916
    %4883 = vmatprep.subr.bf16.mxu0 %v3913
    %4884 = vmatpush1.bf16.msra.mxu0 %v3912
    %4885 = vmatprep.subr.bf16.mxu0 %v3909
    %4886 = vmatpush1.bf16.msra.mxu0 %v3908
    %4887 = vmatprep.subr.bf16.mxu0 %v3905
    %4888 = vmatpush1.bf16.msra.mxu0 %v3904
    %4889 = vmatprep.subr.bf16.mxu0 %v3901
    %4890 = vmatpush1.bf16.msra.mxu0 %v3900
    %4891 = vmatprep.subr.bf16.mxu0 %v3897
    %4892 = vmatpush1.bf16.msra.mxu0 %v3896
    %4893 = vmatprep.subr.bf16.mxu0 %v3893
    %4894 = vmatpush1.bf16.msra.mxu0 %v3892
    %4895 = vmatprep.subr.bf16.mxu0 0
    %4896 = vmatpush2.bf16.msra.mxu0 0
    %4897 = vmatprep.subr.bf16.mxu0 0
    %4898 = vmatpush2.bf16.msra.mxu0 0
    %4899 = vmatprep.subr.bf16.mxu0 0
    %4900 = vmatpush2.bf16.msra.mxu0 0
    %4901 = vmatprep.subr.bf16.mxu0 0
    %4902 = vmatpush2.bf16.msra.mxu0 0
    %4903 = vmatprep.subr.bf16.mxu0 0
    %4904 = vmatpush2.bf16.msra.mxu0 0
    %4905 = vmatprep.subr.bf16.mxu0 0
    %4906 = vmatpush2.bf16.msra.mxu0 0
    %4907 = vmatprep.subr.bf16.mxu0 %v3929
    %4908 = vmatpush2.bf16.msra.mxu0 %v3928
    %4909 = vmatprep.subr.bf16.mxu0 %v3925
    %4910 = vmatpush2.bf16.msra.mxu0 %v3924
    %4911 = vmatprep.mubr.bf16.mxu0 %v4291
    %4912 = vmatmul.mubr.bf16.gmra.mxu0 %v2454
    %v4913 = vpop.f32.mrf.mxu0
    %v4914 = vadd.f32 %v4861, %v4913
    %v4915 = vpop.f32.mrf.mxu0
    %v4916 = vadd.f32 %v4863, %v4915
    %v4917 = vpop.f32.mrf.mxu0
    %v4918 = vadd.f32 %v4865, %v4917
    %v4919 = vpop.f32.mrf.mxu0
    %v4920 = vadd.f32 %v4867, %v4919
    %4921 = vmatprep.mubr.bf16.mxu0 %v4294
    %4922 = vmatmul.mubr.bf16.gmra.mxu0 %v2466
    %v4923 = vpop.f32.mrf.mxu0
    %v4924 = vadd.f32 %v4871, %v4923
    %v4925 = vpop.f32.mrf.mxu0
    %v4926 = vadd.f32 %v4873, %v4925
    %v4927 = vpop.f32.mrf.mxu0
    %v4928 = vadd.f32 %v4875, %v4927
    %v4929 = vpop.f32.mrf.mxu0
    %v4930 = vadd.f32 %v4877, %v4929
    %4931 = vdwg.mxu0
    %v4932 = vmax.f32 %v4596, 0.0
    %v4933 = vmax.f32 %v4598, 0.0
    %v4934 = vmax.f32 %v4914, 0.0
    %v4935 = vmax.f32 %v4916, 0.0
    %v4936 = vmax.f32 %v4600, 0.0
    %v4937 = vmax.f32 %v4602, 0.0
    %v4938 = vmax.f32 %v4918, 0.0
    %v4939 = vmax.f32 %v4920, 0.0
    %v4940 = vmax.f32 %v4606, 0.0
    %v4941 = vmax.f32 %v4608, 0.0
    %v4942 = vmax.f32 %v4924, 0.0
    %v4943 = vmax.f32 %v4926, 0.0
    %v4944 = vmax.f32 %v4610, 0.0
    %v4945 = vmax.f32 %v4612, 0.0
    %v4946 = vmax.f32 %v4928, 0.0
    %v4947 = vmax.f32 %v4930, 0.0
    %4960 = vrot.lane.b32.xlu0 %v4933, 32
    %v4961 = vpop.permute.xlu0 %4960
    %4962 = vrot.lane.b32.xlu0 %v4934, 32
    %v4963 = vpop.permute.xlu0 %4962
    %4964 = vrot.lane.b32.xlu0 %v4935, 32
    %v4965 = vpop.permute.xlu0 %4964
    %4966 = vrot.lane.b32.xlu0 %v4937, 32
    %v4967 = vpop.permute.xlu0 %4966
    %4968 = vrot.lane.b32.xlu0 %v4938, 32
    %v4969 = vpop.permute.xlu0 %4968
    %4970 = vrot.lane.b32.xlu0 %v4939, 32
    %v4971 = vpop.permute.xlu0 %4970
    %4972 = vrot.lane.b32.xlu0 %v4941, 32
    %v4973 = vpop.permute.xlu0 %4972
    %4974 = vrot.lane.b32.xlu0 %v4942, 32
    %v4975 = vpop.permute.xlu0 %4974
    %4976 = vrot.lane.b32.xlu0 %v4943, 32
    %v4977 = vpop.permute.xlu0 %4976
    %4978 = vrot.lane.b32.xlu0 %v4945, 32
    %v4979 = vpop.permute.xlu0 %4978
    %4980 = vrot.lane.b32.xlu0 %v4946, 32
    %v4981 = vpop.permute.xlu0 %4980
    %4982 = vrot.lane.b32.xlu0 %v4947, 32
    %v4983 = vpop.permute.xlu0 %4982
    %v4984 = vsel %vm730, %v4961, %v4963
    %v4985 = vsel %vm730, %v4963, %v4965
    %v4986 = vsel %vm730, %v4967, %v4969
    %v4987 = vsel %vm730, %v4969, %v4971
    %v4988 = vsel %vm730, %v4973, %v4975
    %v4989 = vsel %vm730, %v4975, %v4977
    %v4990 = vsel %vm730, %v4979, %v4981
    %v4991 = vsel %vm730, %v4981, %v4983
    %v5000 = vmax.f32 %v4932, %v4984
    %v5001 = vmax.f32 %v4933, %v4985
    %v5002 = vmax.f32 %v4936, %v4986
    %v5003 = vmax.f32 %v4937, %v4987
    %v5004 = vmax.f32 %v4940, %v4988
    %v5005 = vmax.f32 %v4941, %v4989
    %v5006 = vmax.f32 %v4944, %v4990
    %v5007 = vmax.f32 %v4945, %v4991
    %v5012 = vrot.slane %v5000, 1
    %v5013 = vrot.slane %v5001, 1
    %v5014 = vrot.slane %v5004, 1
    %v5015 = vrot.slane %v5005, 1
    %v5020 = vmax.f32 %v5000, %v5012
    %v5021 = vmax.f32 %v5001, %v5013
    %v5022 = vmax.f32 %v5004, %v5014
    %v5023 = vmax.f32 %v5005, %v5015
    %v5024 = vpack.c.bf16 %v5020, %v5020
    %v5025 = vpack.c.bf16 %v5021, %v5021
    %v5026 = vpack.c.bf16 %v5022, %v5022
    %v5027 = vpack.c.bf16 %v5023, %v5023
    %v5032 = vcombine.low %v5024, %v5025
    %v5034 = vunpack.c.l.s4 1966171168
    %v5035 = vunpack.c.0.s8 %v5034
    %v5036 = vlaneseq
    %v5037 = vshrl.u32 %v5036, 7
    %v5038 = vsub.s32 %v5035, %v5037
    %v5039 = vrot.slane %v5032, %v5038
    %v5041 = vunpack.c.l.s4 1966171168
    %v5042 = vunpack.c.0.s8 %v5041
    %v5043 = vlaneseq
    %v5044 = vshrl.u32 %v5043, 7
    %v5045 = vsub.s32 %v5042, %v5044
    %v5046 = vrot.slane %v5039, %v5045
    %v5047 = vcombine.low %v5026, %v5027
    %v5049 = vunpack.c.l.s4 1966171168
    %v5050 = vunpack.c.0.s8 %v5049
    %v5051 = vlaneseq
    %v5052 = vshrl.u32 %v5051, 7
    %v5053 = vsub.s32 %v5050, %v5052
    %v5054 = vrot.slane %v5047, %v5053
    %v5056 = vunpack.c.l.s4 1966171168
    %v5057 = vunpack.c.0.s8 %v5056
    %v5058 = vlaneseq
    %v5059 = vshrl.u32 %v5058, 7
    %v5060 = vsub.s32 %v5057, %v5059
    %v5061 = vrot.slane %v5054, %v5060
    %v5063 = vunpack.c.l.s4 1935823168
    %v5064 = vunpack.c.0.s8 %v5063
    %v5065 = vlaneseq
    %v5066 = vshrl.u32 %v5065, 7
    %v5067 = vsub.s32 %v5064, %v5066
    %v5068 = vrot.slane %v5046, %v5067
    %v5070 = vunpack.c.l.s4 1935823168
    %v5071 = vunpack.c.0.s8 %v5070
    %v5072 = vlaneseq
    %v5073 = vshrl.u32 %v5072, 7
    %v5074 = vsub.s32 %v5071, %v5073
    %v5075 = vrot.slane %v5068, %v5074
    %v5077 = vunpack.c.l.s4 1935823168
    %v5078 = vunpack.c.0.s8 %v5077
    %v5079 = vlaneseq
    %v5080 = vshrl.u32 %v5079, 7
    %v5081 = vsub.s32 %v5078, %v5080
    %v5082 = vrot.slane %v5061, %v5081
    %v5084 = vunpack.c.l.s4 1935823168
    %v5085 = vunpack.c.0.s8 %v5084
    %v5086 = vlaneseq
    %v5087 = vshrl.u32 %v5086, 7
    %v5088 = vsub.s32 %v5085, %v5087
    %v5089 = vrot.slane %v5082, %v5088
    %v5090 = vunpack.c.l.b16 %v5075
    %v5091 = vunpack.c.h.b16 %v5075
    %v5092 = vunpack.c.l.b16 %v5089
    %v5093 = vunpack.c.h.b16 %v5089
    %v5094 = vrot.slane %v5092, 7
    %vm5095 = vcmask 1041409
    %v5096 = vsel %vm5095, %v5094, %v5090
    %v5097 = vrot.slane %v5093, 7
    %v5098 = vsel %vm5095, %v5097, %v5091
    %v5099 = vpack.c.b16 %v5098, %v5096
    %v5101 = vunpack.c.l.s4 1966171168
    %v5102 = vunpack.c.0.s8 %v5101
    %v5103 = vlaneseq
    %v5104 = vshrl.u32 %v5103, 7
    %v5105 = vsub.s32 %v5102, %v5104
    %v5106 = vrot.slane %v5099, %v5105
    %v5108 = vunpack.c.l.s4 1966171168
    %v5109 = vunpack.c.0.s8 %v5108
    %v5110 = vlaneseq
    %v5111 = vshrl.u32 %v5110, 7
    %v5112 = vsub.s32 %v5109, %v5111
    %v5113 = vrot.slane %v5106, %v5112
    %vm5115 = vcmask 1040384
    %vm5116 = vcmask 779265
    %vm5117 = vmor %vm5116, %vm5115
    %5118 = vst.msk [vmem:[#allocation5] sm:$0x3] %vm5117, %v5113
    %v5119 = vcombine.high %v5039, %v5039
    %v5121 = vunpack.c.l.s4 1966171168
    %v5122 = vunpack.c.0.s8 %v5121
    %v5123 = vlaneseq
    %v5124 = vshrl.u32 %v5123, 7
    %v5125 = vsub.s32 %v5122, %v5124
    %v5126 = vrot.slane %v5119, %v5125
    %v5127 = vcombine.high %v5054, %v5054
    %v5129 = vunpack.c.l.s4 1966171168
    %v5130 = vunpack.c.0.s8 %v5129
    %v5131 = vlaneseq
    %v5132 = vshrl.u32 %v5131, 7
    %v5133 = vsub.s32 %v5130, %v5132
    %v5134 = vrot.slane %v5127, %v5133
    %v5136 = vunpack.c.l.s4 1935823168
    %v5137 = vunpack.c.0.s8 %v5136
    %v5138 = vlaneseq
    %v5139 = vshrl.u32 %v5138, 7
    %v5140 = vsub.s32 %v5137, %v5139
    %v5141 = vrot.slane %v5126, %v5140
    %v5143 = vunpack.c.l.s4 1935823168
    %v5144 = vunpack.c.0.s8 %v5143
    %v5145 = vlaneseq
    %v5146 = vshrl.u32 %v5145, 7
    %v5147 = vsub.s32 %v5144, %v5146
    %v5148 = vrot.slane %v5141, %v5147
    %v5150 = vunpack.c.l.s4 1935823168
    %v5151 = vunpack.c.0.s8 %v5150
    %v5152 = vlaneseq
    %v5153 = vshrl.u32 %v5152, 7
    %v5154 = vsub.s32 %v5151, %v5153
    %v5155 = vrot.slane %v5134, %v5154
    %v5157 = vunpack.c.l.s4 1935823168
    %v5158 = vunpack.c.0.s8 %v5157
    %v5159 = vlaneseq
    %v5160 = vshrl.u32 %v5159, 7
    %v5161 = vsub.s32 %v5158, %v5160
    %v5162 = vrot.slane %v5155, %v5161
    %v5163 = vunpack.c.l.b16 %v5148
    %v5164 = vunpack.c.h.b16 %v5148
    %v5165 = vunpack.c.l.b16 %v5162
    %v5166 = vunpack.c.h.b16 %v5162
    %v5167 = vrot.slane %v5165, 7
    %v5168 = vsel %vm5095, %v5167, %v5163
    %v5169 = vrot.slane %v5166, 7
    %v5170 = vsel %vm5095, %v5169, %v5164
    %v5171 = vpack.c.b16 %v5170, %v5168
    %v5173 = vunpack.c.l.s4 1966171168
    %v5174 = vunpack.c.0.s8 %v5173
    %v5175 = vlaneseq
    %v5176 = vshrl.u32 %v5175, 7
    %v5177 = vsub.s32 %v5174, %v5176
    %v5178 = vrot.slane %v5171, %v5177
    %v5180 = vunpack.c.l.s4 1966171168
    %v5181 = vunpack.c.0.s8 %v5180
    %v5182 = vlaneseq
    %v5183 = vshrl.u32 %v5182, 7
    %v5184 = vsub.s32 %v5181, %v5183
    %v5185 = vrot.slane %v5178, %v5184
    %5186 = vrot.lane.b32.xlu0 %v5185, 96
    %v5187 = vpop.permute.xlu0 %5186
    %v5188 = vrot.slane %v5187, 7
    %v5189 = vsel %vm1870, %v5188, %v5187
    %vm5191 = vcmask 1041152
    %vm5192 = vmor %vm5095, %vm5191
    %vm5193 = vcmask 518146
    %vm5194 = vmor %vm5193, %vm5192
    %5195 = vst.msk [vmem:[#allocation5 + $0x1] sm:$0x7] %vm5194, %v5189
    %v5196 = vcombine.high %v5046, %v5046
    %v5197 = vcombine.high %v5061, %v5061
    %v5199 = vunpack.c.l.s4 1935823168
    %v5200 = vunpack.c.0.s8 %v5199
    %v5201 = vlaneseq
    %v5202 = vshrl.u32 %v5201, 7
    %v5203 = vsub.s32 %v5200, %v5202
    %v5204 = vrot.slane %v5196, %v5203
    %v5206 = vunpack.c.l.s4 1935823168
    %v5207 = vunpack.c.0.s8 %v5206
    %v5208 = vlaneseq
    %v5209 = vshrl.u32 %v5208, 7
    %v5210 = vsub.s32 %v5207, %v5209
    %v5211 = vrot.slane %v5204, %v5210
    %v5213 = vunpack.c.l.s4 1935823168
    %v5214 = vunpack.c.0.s8 %v5213
    %v5215 = vlaneseq
    %v5216 = vshrl.u32 %v5215, 7
    %v5217 = vsub.s32 %v5214, %v5216
    %v5218 = vrot.slane %v5197, %v5217
    %v5220 = vunpack.c.l.s4 1935823168
    %v5221 = vunpack.c.0.s8 %v5220
    %v5222 = vlaneseq
    %v5223 = vshrl.u32 %v5222, 7
    %v5224 = vsub.s32 %v5221, %v5223
    %v5225 = vrot.slane %v5218, %v5224
    %v5226 = vunpack.c.l.b16 %v5211
    %v5227 = vunpack.c.h.b16 %v5211
    %v5228 = vunpack.c.l.b16 %v5225
    %v5229 = vunpack.c.h.b16 %v5225
    %v5230 = vrot.slane %v5228, 7
    %v5231 = vsel %vm5095, %v5230, %v5226
    %v5232 = vrot.slane %v5229, 7
    %v5233 = vsel %vm5095, %v5232, %v5227
    %v5234 = vpack.c.b16 %v5233, %v5231
    %v5236 = vunpack.c.l.s4 1966171168
    %v5237 = vunpack.c.0.s8 %v5236
    %v5238 = vlaneseq
    %v5239 = vshrl.u32 %v5238, 7
    %v5240 = vsub.s32 %v5237, %v5239
    %v5241 = vrot.slane %v5234, %v5240
    %v5243 = vunpack.c.l.s4 1966171168
    %v5244 = vunpack.c.0.s8 %v5243
    %v5245 = vlaneseq
    %v5246 = vshrl.u32 %v5245, 7
    %v5247 = vsub.s32 %v5244, %v5246
    %v5248 = vrot.slane %v5241, %v5247
    %5249 = vrot.lane.b32.xlu0 %v5248, 64
    %v5250 = vpop.permute.xlu0 %5249
    %v5251 = vrot.slane %v5250, 7
    %v5252 = vsel %vm1711, %v5251, %v5250
    %vm5254 = vcmask 1040896
    %vm5255 = vmor %vm5095, %vm5254
    %vm5256 = vcmask 256002
    %vm5257 = vmor %vm5256, %vm5255
    %5258 = vst.msk [vmem:[#allocation5 + $0x3] sm:$0x7] %vm5257, %v5252
    %v5259 = vcombine.high %v5126, %v5126
    %v5260 = vcombine.high %v5134, %v5134
    %v5262 = vunpack.c.l.s4 1935823168
    %v5263 = vunpack.c.0.s8 %v5262
    %v5264 = vlaneseq
    %v5265 = vshrl.u32 %v5264, 7
    %v5266 = vsub.s32 %v5263, %v5265
    %v5267 = vrot.slane %v5259, %v5266
    %v5269 = vunpack.c.l.s4 1935823168
    %v5270 = vunpack.c.0.s8 %v5269
    %v5271 = vlaneseq
    %v5272 = vshrl.u32 %v5271, 7
    %v5273 = vsub.s32 %v5270, %v5272
    %v5274 = vrot.slane %v5267, %v5273
    %v5276 = vunpack.c.l.s4 1935823168
    %v5277 = vunpack.c.0.s8 %v5276
    %v5278 = vlaneseq
    %v5279 = vshrl.u32 %v5278, 7
    %v5280 = vsub.s32 %v5277, %v5279
    %v5281 = vrot.slane %v5260, %v5280
    %v5283 = vunpack.c.l.s4 1935823168
    %v5284 = vunpack.c.0.s8 %v5283
    %v5285 = vlaneseq
    %v5286 = vshrl.u32 %v5285, 7
    %v5287 = vsub.s32 %v5284, %v5286
    %v5288 = vrot.slane %v5281, %v5287
    %v5289 = vunpack.c.l.b16 %v5274
    %v5290 = vunpack.c.h.b16 %v5274
    %v5291 = vunpack.c.l.b16 %v5288
    %v5292 = vunpack.c.h.b16 %v5288
    %v5293 = vrot.slane %v5291, 7
    %v5294 = vsel %vm5095, %v5293, %v5289
    %v5295 = vrot.slane %v5292, 7
    %v5296 = vsel %vm5095, %v5295, %v5290
    %v5297 = vpack.c.b16 %v5296, %v5294
    %v5299 = vunpack.c.l.s4 1966171168
    %v5300 = vunpack.c.0.s8 %v5299
    %v5301 = vlaneseq
    %v5302 = vshrl.u32 %v5301, 7
    %v5303 = vsub.s32 %v5300, %v5302
    %v5304 = vrot.slane %v5297, %v5303
    %v5306 = vunpack.c.l.s4 1966171168
    %v5307 = vunpack.c.0.s8 %v5306
    %v5308 = vlaneseq
    %v5309 = vshrl.u32 %v5308, 7
    %v5310 = vsub.s32 %v5307, %v5309
    %v5311 = vrot.slane %v5304, %v5310
    %5312 = vrot.lane.b32.xlu0 %v5311, 32
    %v5313 = vpop.permute.xlu0 %5312
    %v5314 = vrot.slane %v5313, 7
    %v5315 = vsel %vm1097, %v5314, %v5313
    %vm5317 = vcmask 1040640
    %vm5318 = vmor %vm5095, %vm5317
    %5319 = vst.msk [vmem:[#allocation5 + $0x5] sm:$0x3] %vm5318, %v5315
    %v5324 = vrot.slane %v5002, 1
    %v5325 = vrot.slane %v5003, 1
    %v5326 = vrot.slane %v5006, 1
    %v5327 = vrot.slane %v5007, 1
    %v5332 = vmax.f32 %v5002, %v5324
    %v5333 = vmax.f32 %v5003, %v5325
    %v5334 = vmax.f32 %v5006, %v5326
    %v5335 = vmax.f32 %v5007, %v5327
    %v5336 = vpack.c.bf16 %v5332, %v5332
    %v5337 = vpack.c.bf16 %v5333, %v5333
    %v5338 = vpack.c.bf16 %v5334, %v5334
    %v5339 = vpack.c.bf16 %v5335, %v5335
    %v5344 = vcombine.low %v5336, %v5337
    %v5346 = vunpack.c.l.s4 1966171168
    %v5347 = vunpack.c.0.s8 %v5346
    %v5348 = vlaneseq
    %v5349 = vshrl.u32 %v5348, 7
    %v5350 = vsub.s32 %v5347, %v5349
    %v5351 = vrot.slane %v5344, %v5350
    %v5353 = vunpack.c.l.s4 1966171168
    %v5354 = vunpack.c.0.s8 %v5353
    %v5355 = vlaneseq
    %v5356 = vshrl.u32 %v5355, 7
    %v5357 = vsub.s32 %v5354, %v5356
    %v5358 = vrot.slane %v5351, %v5357
    %v5359 = vcombine.low %v5338, %v5339
    %v5361 = vunpack.c.l.s4 1966171168
    %v5362 = vunpack.c.0.s8 %v5361
    %v5363 = vlaneseq
    %v5364 = vshrl.u32 %v5363, 7
    %v5365 = vsub.s32 %v5362, %v5364
    %v5366 = vrot.slane %v5359, %v5365
    %v5368 = vunpack.c.l.s4 1966171168
    %v5369 = vunpack.c.0.s8 %v5368
    %v5370 = vlaneseq
    %v5371 = vshrl.u32 %v5370, 7
    %v5372 = vsub.s32 %v5369, %v5371
    %v5373 = vrot.slane %v5366, %v5372
    %v5375 = vunpack.c.l.s4 1935823168
    %v5376 = vunpack.c.0.s8 %v5375
    %v5377 = vlaneseq
    %v5378 = vshrl.u32 %v5377, 7
    %v5379 = vsub.s32 %v5376, %v5378
    %v5380 = vrot.slane %v5358, %v5379
    %v5382 = vunpack.c.l.s4 1935823168
    %v5383 = vunpack.c.0.s8 %v5382
    %v5384 = vlaneseq
    %v5385 = vshrl.u32 %v5384, 7
    %v5386 = vsub.s32 %v5383, %v5385
    %v5387 = vrot.slane %v5380, %v5386
    %v5389 = vunpack.c.l.s4 1935823168
    %v5390 = vunpack.c.0.s8 %v5389
    %v5391 = vlaneseq
    %v5392 = vshrl.u32 %v5391, 7
    %v5393 = vsub.s32 %v5390, %v5392
    %v5394 = vrot.slane %v5373, %v5393
    %v5396 = vunpack.c.l.s4 1935823168
    %v5397 = vunpack.c.0.s8 %v5396
    %v5398 = vlaneseq
    %v5399 = vshrl.u32 %v5398, 7
    %v5400 = vsub.s32 %v5397, %v5399
    %v5401 = vrot.slane %v5394, %v5400
    %v5402 = vunpack.c.l.b16 %v5387
    %v5403 = vunpack.c.h.b16 %v5387
    %v5404 = vunpack.c.l.b16 %v5401
    %v5405 = vunpack.c.h.b16 %v5401
    %v5406 = vrot.slane %v5404, 7
    %v5407 = vsel %vm5095, %v5406, %v5402
    %v5408 = vrot.slane %v5405, 7
    %v5409 = vsel %vm5095, %v5408, %v5403
    %v5410 = vpack.c.b16 %v5409, %v5407
    %v5412 = vunpack.c.l.s4 1966171168
    %v5413 = vunpack.c.0.s8 %v5412
    %v5414 = vlaneseq
    %v5415 = vshrl.u32 %v5414, 7
    %v5416 = vsub.s32 %v5413, %v5415
    %v5417 = vrot.slane %v5410, %v5416
    %v5419 = vunpack.c.l.s4 1966171168
    %v5420 = vunpack.c.0.s8 %v5419
    %v5421 = vlaneseq
    %v5422 = vshrl.u32 %v5421, 7
    %v5423 = vsub.s32 %v5420, %v5422
    %v5424 = vrot.slane %v5417, %v5423
    %5426 = vst.msk [vmem:[#allocation5 + $0x7] sm:$0x3] %vm5117, %v5424
    %v5427 = vcombine.high %v5351, %v5351
    %v5429 = vunpack.c.l.s4 1966171168
    %v5430 = vunpack.c.0.s8 %v5429
    %v5431 = vlaneseq
    %v5432 = vshrl.u32 %v5431, 7
    %v5433 = vsub.s32 %v5430, %v5432
    %v5434 = vrot.slane %v5427, %v5433
    %v5435 = vcombine.high %v5366, %v5366
    %v5437 = vunpack.c.l.s4 1966171168
    %v5438 = vunpack.c.0.s8 %v5437
    %v5439 = vlaneseq
    %v5440 = vshrl.u32 %v5439, 7
    %v5441 = vsub.s32 %v5438, %v5440
    %v5442 = vrot.slane %v5435, %v5441
    %v5444 = vunpack.c.l.s4 1935823168
    %v5445 = vunpack.c.0.s8 %v5444
    %v5446 = vlaneseq
    %v5447 = vshrl.u32 %v5446, 7
    %v5448 = vsub.s32 %v5445, %v5447
    %v5449 = vrot.slane %v5434, %v5448
    %v5451 = vunpack.c.l.s4 1935823168
    %v5452 = vunpack.c.0.s8 %v5451
    %v5453 = vlaneseq
    %v5454 = vshrl.u32 %v5453, 7
    %v5455 = vsub.s32 %v5452, %v5454
    %v5456 = vrot.slane %v5449, %v5455
    %v5458 = vunpack.c.l.s4 1935823168
    %v5459 = vunpack.c.0.s8 %v5458
    %v5460 = vlaneseq
    %v5461 = vshrl.u32 %v5460, 7
    %v5462 = vsub.s32 %v5459, %v5461
    %v5463 = vrot.slane %v5442, %v5462
    %v5465 = vunpack.c.l.s4 1935823168
    %v5466 = vunpack.c.0.s8 %v5465
    %v5467 = vlaneseq
    %v5468 = vshrl.u32 %v5467, 7
    %v5469 = vsub.s32 %v5466, %v5468
    %v5470 = vrot.slane %v5463, %v5469
    %v5471 = vunpack.c.l.b16 %v5456
    %v5472 = vunpack.c.h.b16 %v5456
    %v5473 = vunpack.c.l.b16 %v5470
    %v5474 = vunpack.c.h.b16 %v5470
    %v5475 = vrot.slane %v5473, 7
    %v5476 = vsel %vm5095, %v5475, %v5471
    %v5477 = vrot.slane %v5474, 7
    %v5478 = vsel %vm5095, %v5477, %v5472
    %v5479 = vpack.c.b16 %v5478, %v5476
    %v5481 = vunpack.c.l.s4 1966171168
    %v5482 = vunpack.c.0.s8 %v5481
    %v5483 = vlaneseq
    %v5484 = vshrl.u32 %v5483, 7
    %v5485 = vsub.s32 %v5482, %v5484
    %v5486 = vrot.slane %v5479, %v5485
    %v5488 = vunpack.c.l.s4 1966171168
    %v5489 = vunpack.c.0.s8 %v5488
    %v5490 = vlaneseq
    %v5491 = vshrl.u32 %v5490, 7
    %v5492 = vsub.s32 %v5489, %v5491
    %v5493 = vrot.slane %v5486, %v5492
    %5494 = vrot.lane.b32.xlu0 %v5493, 96
    %v5495 = vpop.permute.xlu0 %5494
    %v5496 = vrot.slane %v5495, 7
    %v5497 = vsel %vm1870, %v5496, %v5495
    %5499 = vst.msk [vmem:[#allocation5 + $0x8] sm:$0x7] %vm5194, %v5497
    %v5500 = vcombine.high %v5358, %v5358
    %v5501 = vcombine.high %v5373, %v5373
    %v5503 = vunpack.c.l.s4 1935823168
    %v5504 = vunpack.c.0.s8 %v5503
    %v5505 = vlaneseq
    %v5506 = vshrl.u32 %v5505, 7
    %v5507 = vsub.s32 %v5504, %v5506
    %v5508 = vrot.slane %v5500, %v5507
    %v5510 = vunpack.c.l.s4 1935823168
    %v5511 = vunpack.c.0.s8 %v5510
    %v5512 = vlaneseq
    %v5513 = vshrl.u32 %v5512, 7
    %v5514 = vsub.s32 %v5511, %v5513
    %v5515 = vrot.slane %v5508, %v5514
    %v5517 = vunpack.c.l.s4 1935823168
    %v5518 = vunpack.c.0.s8 %v5517
    %v5519 = vlaneseq
    %v5520 = vshrl.u32 %v5519, 7
    %v5521 = vsub.s32 %v5518, %v5520
    %v5522 = vrot.slane %v5501, %v5521
    %v5524 = vunpack.c.l.s4 1935823168
    %v5525 = vunpack.c.0.s8 %v5524
    %v5526 = vlaneseq
    %v5527 = vshrl.u32 %v5526, 7
    %v5528 = vsub.s32 %v5525, %v5527
    %v5529 = vrot.slane %v5522, %v5528
    %v5530 = vunpack.c.l.b16 %v5515
    %v5531 = vunpack.c.h.b16 %v5515
    %v5532 = vunpack.c.l.b16 %v5529
    %v5533 = vunpack.c.h.b16 %v5529
    %v5534 = vrot.slane %v5532, 7
    %v5535 = vsel %vm5095, %v5534, %v5530
    %v5536 = vrot.slane %v5533, 7
    %v5537 = vsel %vm5095, %v5536, %v5531
    %v5538 = vpack.c.b16 %v5537, %v5535
    %v5540 = vunpack.c.l.s4 1966171168
    %v5541 = vunpack.c.0.s8 %v5540
    %v5542 = vlaneseq
    %v5543 = vshrl.u32 %v5542, 7
    %v5544 = vsub.s32 %v5541, %v5543
    %v5545 = vrot.slane %v5538, %v5544
    %v5547 = vunpack.c.l.s4 1966171168
    %v5548 = vunpack.c.0.s8 %v5547
    %v5549 = vlaneseq
    %v5550 = vshrl.u32 %v5549, 7
    %v5551 = vsub.s32 %v5548, %v5550
    %v5552 = vrot.slane %v5545, %v5551
    %5553 = vrot.lane.b32.xlu0 %v5552, 64
    %v5554 = vpop.permute.xlu0 %5553
    %v5555 = vrot.slane %v5554, 7
    %v5556 = vsel %vm1711, %v5555, %v5554
    %5558 = vst.msk [vmem:[#allocation5 + $0xa] sm:$0x7] %vm5257, %v5556
    %v5559 = vld [vmem:[#allocation5] sm:$0xff]
    %v5560 = vld [vmem:[#allocation5 + $0x8] sm:$0x1f]
    %v5561 = vld [vmem:[%s5] sm:$0xf]
    %v5562 = vld [vmem:[%s5 + $0x4] sm:$0xf]
    %v5563 = vld [vmem:[%s5 + $0x8] sm:$0xf]
    %v5564 = vld [vmem:[%s5 + $0xc] sm:$0xf]
    %v5565 = vld [vmem:[%s5 + $0x10] sm:$0xf]
    %v5566 = vld [vmem:[%s5 + $0x14] sm:$0xf]
    %v5567 = vld [vmem:[%s5 + $0x18] sm:$0xf]
    %v5568 = vld [vmem:[%s5 + $0x1c] sm:$0xf]
    %v5569 = vld [vmem:[%s5 + $0x20] sm:$0xf]
    %v5570 = vld [vmem:[%s5 + $0x24] sm:$0xf]
    %v5571 = vld [vmem:[%s5 + $0x28] sm:$0xf]
    %v5572 = vld [vmem:[%s5 + $0x2c] sm:$0xf]
    %v5573 = vld [vmem:[%s5 + $0x30] sm:$0xf]
    %v5574 = vld [vmem:[%s5 + $0x34] sm:$0xf]
    %v5575 = vld [vmem:[%s5 + $0x38] sm:$0xf]
    %v5576 = vld [vmem:[%s5 + $0x3c] sm:$0xf]
    %v5577 = vld [vmem:[%s5 + $0x40] sm:$0xf]
    %v5578 = vld [vmem:[%s5 + $0x44] sm:$0xf]
    %v5579 = vld [vmem:[%s5 + $0x48] sm:$0xf]
    %v5580 = vld [vmem:[%s5 + $0x4c] sm:$0xf]
    %v5581 = vld [vmem:[%s5 + $0x50] sm:$0xf]
    %v5582 = vld [vmem:[%s5 + $0x54] sm:$0xf]
    %v5583 = vld [vmem:[%s5 + $0x58] sm:$0xf]
    %v5584 = vld [vmem:[%s5 + $0x5c] sm:$0xf]
    %v5585 = vld [vmem:[%s5 + $0x60] sm:$0xf]
    %v5586 = vld [vmem:[%s5 + $0x64] sm:$0xf]
    %v5587 = vld [vmem:[%s5 + $0x68] sm:$0xf]
    %v5588 = vld [vmem:[%s5 + $0x6c] sm:$0xf]
    %v5589 = vld [vmem:[%s5 + $0x70] sm:$0xf]
    %v5590 = vld [vmem:[%s5 + $0x74] sm:$0xf]
    %v5591 = vld [vmem:[%s5 + $0x78] sm:$0xf]
    %v5592 = vld [vmem:[%s5 + $0x7c] sm:$0xf]
    %v5593 = vld [vmem:[%s5 + $0x80] sm:$0xf]
    %v5594 = vld [vmem:[%s5 + $0x84] sm:$0xf]
    %v5595 = vld [vmem:[%s5 + $0x88] sm:$0xf]
    %v5596 = vld [vmem:[%s5 + $0x8c] sm:$0xf]
    %v5597 = vld [vmem:[%s5 + $0x90] sm:$0xf]
    %v5598 = vld [vmem:[%s5 + $0x94] sm:$0xf]
    %v5599 = vld [vmem:[%s5 + $0x98] sm:$0xf]
    %v5600 = vld [vmem:[%s5 + $0x9c] sm:$0xf]
    %v5601 = vld [vmem:[%s5 + $0xa0] sm:$0xf]
    %v5602 = vld [vmem:[%s5 + $0xa4] sm:$0xf]
    %v5603 = vld [vmem:[%s5 + $0xa8] sm:$0xf]
    %v5604 = vld [vmem:[%s5 + $0xac] sm:$0xf]
    %v5605 = vld [vmem:[%s5 + $0xb0] sm:$0xf]
    %v5606 = vld [vmem:[%s5 + $0xb4] sm:$0xf]
    %v5607 = vld [vmem:[%s5 + $0xb8] sm:$0xf]
    %v5608 = vld [vmem:[%s5 + $0xbc] sm:$0xf]
    %v5609 = vld [vmem:[%s5 + $0xc0] sm:$0xf]
    %v5610 = vld [vmem:[%s5 + $0xc4] sm:$0xf]
    %v5611 = vld [vmem:[%s5 + $0xc8] sm:$0xf]
    %v5612 = vld [vmem:[%s5 + $0xcc] sm:$0xf]
    %v5613 = vld [vmem:[%s5 + $0xd0] sm:$0xf]
    %v5614 = vld [vmem:[%s5 + $0xd4] sm:$0xf]
    %v5615 = vld [vmem:[%s5 + $0xd8] sm:$0xf]
    %v5616 = vld [vmem:[%s5 + $0xdc] sm:$0xf]
    %v5617 = vld [vmem:[%s5 + $0xe0] sm:$0xf]
    %v5618 = vld [vmem:[%s5 + $0xe4] sm:$0xf]
    %v5619 = vld [vmem:[%s5 + $0xe8] sm:$0xf]
    %v5620 = vld [vmem:[%s5 + $0xec] sm:$0xf]
    %v5621 = vld [vmem:[%s5 + $0xf0] sm:$0xf]
    %v5622 = vld [vmem:[%s5 + $0xf4] sm:$0xf]
    %v5623 = vld [vmem:[%s5 + $0xf8] sm:$0xf]
    %v5624 = vld [vmem:[%s5 + $0xfc] sm:$0xf]
    %v5625 = vld [vmem:[%s5 + $0x100] sm:$0xf]
    %v5626 = vld [vmem:[%s5 + $0x104] sm:$0xf]
    %v5627 = vld [vmem:[%s5 + $0x108] sm:$0xf]
    %v5628 = vld [vmem:[%s5 + $0x10c] sm:$0xf]
    %v5629 = vld [vmem:[%s5 + $0x110] sm:$0xf]
    %v5630 = vld [vmem:[%s5 + $0x114] sm:$0xf]
    %v5631 = vld [vmem:[%s5 + $0x118] sm:$0xf]
    %v5632 = vld [vmem:[%s5 + $0x11c] sm:$0xf]
    %v5633 = vld [vmem:[%s5 + $0x120] sm:$0xf]
    %v5634 = vld [vmem:[%s5 + $0x124] sm:$0xf]
    %v5635 = vld [vmem:[%s5 + $0x128] sm:$0xf]
    %v5636 = vld [vmem:[%s5 + $0x12c] sm:$0xf]
    %v5637 = vld [vmem:[%s5 + $0x130] sm:$0xf]
    %v5638 = vld [vmem:[%s5 + $0x134] sm:$0xf]
    %v5639 = vld [vmem:[%s5 + $0x138] sm:$0xf]
    %v5640 = vld [vmem:[%s5 + $0x13c] sm:$0xf]
    %v5641 = vld [vmem:[%s5 + $0x140] sm:$0xf]
    %v5642 = vld [vmem:[%s5 + $0x144] sm:$0xf]
    %v5643 = vld [vmem:[%s5 + $0x148] sm:$0xf]
    %v5644 = vld [vmem:[%s5 + $0x14c] sm:$0xf]
    %v5645 = vld [vmem:[%s5 + $0x150] sm:$0xf]
    %v5646 = vld [vmem:[%s5 + $0x154] sm:$0xf]
    %v5647 = vld [vmem:[%s5 + $0x158] sm:$0xf]
    %v5648 = vld [vmem:[%s5 + $0x15c] sm:$0xf]
    %v5649 = vld [vmem:[%s5 + $0x160] sm:$0xf]
    %v5650 = vld [vmem:[%s5 + $0x164] sm:$0xf]
    %v5651 = vld [vmem:[%s5 + $0x168] sm:$0xf]
    %v5652 = vld [vmem:[%s5 + $0x16c] sm:$0xf]
    %v5653 = vld [vmem:[%s5 + $0x170] sm:$0xf]
    %v5654 = vld [vmem:[%s5 + $0x174] sm:$0xf]
    %v5655 = vld [vmem:[%s5 + $0x178] sm:$0xf]
    %v5656 = vld [vmem:[%s5 + $0x17c] sm:$0xf]
    %v5657 = vld [vmem:[%s5 + $0x180] sm:$0xf]
    %v5658 = vld [vmem:[%s5 + $0x184] sm:$0xf]
    %v5659 = vld [vmem:[%s5 + $0x188] sm:$0xf]
    %v5660 = vld [vmem:[%s5 + $0x18c] sm:$0xf]
    %v5661 = vld [vmem:[%s5 + $0x190] sm:$0xf]
    %v5662 = vld [vmem:[%s5 + $0x194] sm:$0xf]
    %v5663 = vld [vmem:[%s5 + $0x198] sm:$0xf]
    %v5664 = vld [vmem:[%s5 + $0x19c] sm:$0xf]
    %v5665 = vld [vmem:[%s5 + $0x1a0] sm:$0xf]
    %v5666 = vld [vmem:[%s5 + $0x1a4] sm:$0xf]
    %v5667 = vld [vmem:[%s5 + $0x1a8] sm:$0xf]
    %v5668 = vld [vmem:[%s5 + $0x1ac] sm:$0xf]
    %v5669 = vld [vmem:[%s5 + $0x1b0] sm:$0xf]
    %v5670 = vld [vmem:[%s5 + $0x1b4] sm:$0xf]
    %v5671 = vld [vmem:[%s5 + $0x1b8] sm:$0xf]
    %v5672 = vld [vmem:[%s5 + $0x1bc] sm:$0xf]
    %v5673 = vld [vmem:[%s5 + $0x1c0] sm:$0xf]
    %v5674 = vld [vmem:[%s5 + $0x1c4] sm:$0xf]
    %v5675 = vld [vmem:[%s5 + $0x1c8] sm:$0xf]
    %v5676 = vld [vmem:[%s5 + $0x1cc] sm:$0xf]
    %v5677 = vld [vmem:[%s5 + $0x1d0] sm:$0xf]
    %v5678 = vld [vmem:[%s5 + $0x1d4] sm:$0xf]
    %v5679 = vld [vmem:[%s5 + $0x1d8] sm:$0xf]
    %v5680 = vld [vmem:[%s5 + $0x1dc] sm:$0xf]
    %v5681 = vld [vmem:[%s5 + $0x1e0] sm:$0xf]
    %v5682 = vld [vmem:[%s5 + $0x1e4] sm:$0xf]
    %v5683 = vld [vmem:[%s5 + $0x1e8] sm:$0xf]
    %v5684 = vld [vmem:[%s5 + $0x1ec] sm:$0xf]
    %v5685 = vld [vmem:[%s5 + $0x1f0] sm:$0xf]
    %v5686 = vld [vmem:[%s5 + $0x1f4] sm:$0xf]
    %v5687 = vld [vmem:[%s5 + $0x1f8] sm:$0xf]
    %v5688 = vld [vmem:[%s5 + $0x1fc] sm:$0xf]
    %v5689 = vld [vmem:[%s5 + $0x200] sm:$0xf]
    %v5690 = vld [vmem:[%s5 + $0x204] sm:$0xf]
    %v5691 = vld [vmem:[%s5 + $0x208] sm:$0xf]
    %v5692 = vld [vmem:[%s5 + $0x20c] sm:$0xf]
    %v5693 = vld [vmem:[%s5 + $0x210] sm:$0xf]
    %v5694 = vld [vmem:[%s5 + $0x214] sm:$0xf]
    %v5695 = vld [vmem:[%s5 + $0x218] sm:$0xf]
    %v5696 = vld [vmem:[%s5 + $0x21c] sm:$0xf]
    %v5697 = vld [vmem:[%s5 + $0x220] sm:$0xf]
    %v5698 = vld [vmem:[%s5 + $0x224] sm:$0xf]
    %v5699 = vld [vmem:[%s5 + $0x228] sm:$0xf]
    %v5700 = vld [vmem:[%s5 + $0x22c] sm:$0xf]
    %v5701 = vld [vmem:[%s5 + $0x230] sm:$0xf]
    %v5702 = vld [vmem:[%s5 + $0x234] sm:$0xf]
    %v5703 = vld [vmem:[%s5 + $0x238] sm:$0xf]
    %v5704 = vld [vmem:[%s5 + $0x23c] sm:$0xf]
    %v5705 = vld [vmem:[%s5 + $0x240] sm:$0xf]
    %v5706 = vld [vmem:[%s5 + $0x244] sm:$0xf]
    %v5707 = vld [vmem:[%s5 + $0x248] sm:$0xf]
    %v5708 = vld [vmem:[%s5 + $0x24c] sm:$0xf]
    %v5709 = vld [vmem:[%s5 + $0x250] sm:$0xf]
    %v5710 = vld [vmem:[%s5 + $0x254] sm:$0xf]
    %v5711 = vld [vmem:[%s5 + $0x258] sm:$0xf]
    %v5712 = vld [vmem:[%s5 + $0x25c] sm:$0xf]
    %v5713 = vld [vmem:[%s5 + $0x260] sm:$0xf]
    %v5714 = vld [vmem:[%s5 + $0x264] sm:$0xf]
    %v5715 = vld [vmem:[%s5 + $0x268] sm:$0xf]
    %v5716 = vld [vmem:[%s5 + $0x26c] sm:$0xf]
    %v5717 = vld [vmem:[%s5 + $0x270] sm:$0xf]
    %v5718 = vld [vmem:[%s5 + $0x274] sm:$0xf]
    %v5719 = vld [vmem:[%s5 + $0x278] sm:$0xf]
    %v5720 = vld [vmem:[%s5 + $0x27c] sm:$0xf]
    %v5721 = vld [vmem:[%s5 + $0x280] sm:$0xf]
    %v5722 = vld [vmem:[%s5 + $0x284] sm:$0xf]
    %v5723 = vld [vmem:[%s5 + $0x288] sm:$0xf]
    %v5724 = vld [vmem:[%s5 + $0x28c] sm:$0xf]
    %v5725 = vld [vmem:[%s5 + $0x290] sm:$0xf]
    %v5726 = vld [vmem:[%s5 + $0x294] sm:$0xf]
    %v5727 = vld [vmem:[%s5 + $0x298] sm:$0xf]
    %v5728 = vld [vmem:[%s5 + $0x29c] sm:$0xf]
    %v5729 = vld [vmem:[%s5 + $0x2a0] sm:$0xf]
    %v5730 = vld [vmem:[%s5 + $0x2a4] sm:$0xf]
    %v5731 = vld [vmem:[%s5 + $0x2a8] sm:$0xf]
    %v5732 = vld [vmem:[%s5 + $0x2ac] sm:$0xf]
    %v5733 = vld [vmem:[%s5 + $0x2b0] sm:$0xf]
    %v5734 = vld [vmem:[%s5 + $0x2b4] sm:$0xf]
    %v5735 = vld [vmem:[%s5 + $0x2b8] sm:$0xf]
    %v5736 = vld [vmem:[%s5 + $0x2bc] sm:$0xf]
    %v5737 = vld [vmem:[%s5 + $0x2c0] sm:$0xf]
    %v5738 = vld [vmem:[%s5 + $0x2c4] sm:$0xf]
    %v5739 = vld [vmem:[%s5 + $0x2c8] sm:$0xf]
    %v5740 = vld [vmem:[%s5 + $0x2cc] sm:$0xf]
    %v5741 = vld [vmem:[%s5 + $0x2d0] sm:$0xf]
    %v5742 = vld [vmem:[%s5 + $0x2d4] sm:$0xf]
    %v5743 = vld [vmem:[%s5 + $0x2d8] sm:$0xf]
    %v5744 = vld [vmem:[%s5 + $0x2dc] sm:$0xf]
    %v5745 = vld [vmem:[%s5 + $0x2e0] sm:$0xf]
    %v5746 = vld [vmem:[%s5 + $0x2e4] sm:$0xf]
    %v5747 = vld [vmem:[%s5 + $0x2e8] sm:$0xf]
    %v5748 = vld [vmem:[%s5 + $0x2ec] sm:$0xf]
    %v5749 = vld [vmem:[%s5 + $0x2f0] sm:$0xf]
    %v5750 = vld [vmem:[%s5 + $0x2f4] sm:$0xf]
    %v5751 = vld [vmem:[%s5 + $0x2f8] sm:$0xf]
    %v5752 = vld [vmem:[%s5 + $0x2fc] sm:$0xf]
    %v5753 = vld [vmem:[%s5 + $0x300] sm:$0xf]
    %v5754 = vld [vmem:[%s5 + $0x304] sm:$0xf]
    %v5755 = vld [vmem:[%s5 + $0x308] sm:$0xf]
    %v5756 = vld [vmem:[%s5 + $0x30c] sm:$0xf]
    %v5757 = vld [vmem:[%s6] sm:$0x1]
    %v5759 = vlaneseq
    %v5760 = vshrl.u32 %v5759, 7
    %v5761 = vsub.s32 0, %v5760
    %v5762 = vrot.slane %v5757, %v5761
    %v5766 = vcombine.high %v5559, %v5559
    %v5768 = vunpack.c.l.s4 1966171168
    %v5769 = vunpack.c.0.s8 %v5768
    %v5770 = vlaneseq
    %v5771 = vshrl.u32 %v5770, 7
    %v5772 = vsub.s32 %v5769, %v5771
    %v5773 = vrot.slane %v5559, %v5772
    %v5775 = vunpack.c.l.s4 1966171168
    %v5776 = vunpack.c.0.s8 %v5775
    %v5777 = vlaneseq
    %v5778 = vshrl.u32 %v5777, 7
    %v5779 = vsub.s32 %v5776, %v5778
    %v5780 = vrot.slane %v5766, %v5779
    %v5781 = vcombine.high %v5773, %v5773
    %v5782 = vcombine.high %v5780, %v5780
    %v5784 = vunpack.c.l.s4 1966171168
    %v5785 = vunpack.c.0.s8 %v5784
    %v5786 = vlaneseq
    %v5787 = vshrl.u32 %v5786, 7
    %v5788 = vsub.s32 %v5785, %v5787
    %v5789 = vrot.slane %v5773, %v5788
    %v5791 = vunpack.c.l.s4 1966171168
    %v5792 = vunpack.c.0.s8 %v5791
    %v5793 = vlaneseq
    %v5794 = vshrl.u32 %v5793, 7
    %v5795 = vsub.s32 %v5792, %v5794
    %v5796 = vrot.slane %v5780, %v5795
    %v5798 = vunpack.c.l.s4 1966171168
    %v5799 = vunpack.c.0.s8 %v5798
    %v5800 = vlaneseq
    %v5801 = vshrl.u32 %v5800, 7
    %v5802 = vsub.s32 %v5799, %v5801
    %v5803 = vrot.slane %v5781, %v5802
    %v5805 = vunpack.c.l.s4 1966171168
    %v5806 = vunpack.c.0.s8 %v5805
    %v5807 = vlaneseq
    %v5808 = vshrl.u32 %v5807, 7
    %v5809 = vsub.s32 %v5806, %v5808
    %v5810 = vrot.slane %v5782, %v5809
    %v5811 = vcombine.high %v5789, %v5789
    %v5812 = vcombine.high %v5796, %v5796
    %v5813 = vcombine.high %v5803, %v5803
    %v5814 = vcombine.high %v5810, %v5810
    %v5815 = vcombine.high %v5560, %v5560
    %v5817 = vunpack.c.l.s4 1966171168
    %v5818 = vunpack.c.0.s8 %v5817
    %v5819 = vlaneseq
    %v5820 = vshrl.u32 %v5819, 7
    %v5821 = vsub.s32 %v5818, %v5820
    %v5822 = vrot.slane %v5560, %v5821
    %v5824 = vunpack.c.l.s4 1966171168
    %v5825 = vunpack.c.0.s8 %v5824
    %v5826 = vlaneseq
    %v5827 = vshrl.u32 %v5826, 7
    %v5828 = vsub.s32 %v5825, %v5827
    %v5829 = vrot.slane %v5815, %v5828
    %v5830 = vcombine.high %v5822, %v5822
    %v5832 = vunpack.c.l.s4 1966171168
    %v5833 = vunpack.c.0.s8 %v5832
    %v5834 = vlaneseq
    %v5835 = vshrl.u32 %v5834, 7
    %v5836 = vsub.s32 %v5833, %v5835
    %v5837 = vrot.slane %v5822, %v5836
    %v5839 = vunpack.c.l.s4 1966171168
    %v5840 = vunpack.c.0.s8 %v5839
    %v5841 = vlaneseq
    %v5842 = vshrl.u32 %v5841, 7
    %v5843 = vsub.s32 %v5840, %v5842
    %v5844 = vrot.slane %v5829, %v5843
    %v5846 = vunpack.c.l.s4 1966171168
    %v5847 = vunpack.c.0.s8 %v5846
    %v5848 = vlaneseq
    %v5849 = vshrl.u32 %v5848, 7
    %v5850 = vsub.s32 %v5847, %v5849
    %v5851 = vrot.slane %v5830, %v5850
    %v5852 = vcombine.high %v5837, %v5837
    %v5853 = vcombine.high %v5851, %v5851
    %v6062 = vunpack.c.l.b16 %v5561
    %v6063 = vunpack.c.l.b16 %v5562
    %v6064 = vunpack.c.l.b16 %v5563
    %v6065 = vunpack.c.l.b16 %v5564
    %v6066 = vunpack.c.l.b16 %v5565
    %v6067 = vunpack.c.l.b16 %v5566
    %v6068 = vunpack.c.l.b16 %v5567
    %v6069 = vunpack.c.l.b16 %v5568
    %v6070 = vunpack.c.l.b16 %v5569
    %v6071 = vunpack.c.l.b16 %v5570
    %v6072 = vunpack.c.l.b16 %v5571
    %v6073 = vunpack.c.l.b16 %v5572
    %v6074 = vunpack.c.l.b16 %v5573
    %v6075 = vunpack.c.l.b16 %v5574
    %v6076 = vunpack.c.l.b16 %v5575
    %v6077 = vunpack.c.l.b16 %v5576
    %v6078 = vunpack.c.l.b16 %v5577
    %v6079 = vunpack.c.l.b16 %v5578
    %v6080 = vunpack.c.l.b16 %v5579
    %v6081 = vunpack.c.l.b16 %v5580
    %v6082 = vunpack.c.l.b16 %v5581
    %v6083 = vunpack.c.l.b16 %v5582
    %v6084 = vunpack.c.l.b16 %v5583
    %v6085 = vunpack.c.l.b16 %v5584
    %v6086 = vunpack.c.l.b16 %v5585
    %v6087 = vunpack.c.l.b16 %v5586
    %v6088 = vunpack.c.l.b16 %v5587
    %v6089 = vunpack.c.l.b16 %v5588
    %v6090 = vunpack.c.l.b16 %v5589
    %v6091 = vunpack.c.l.b16 %v5590
    %v6092 = vunpack.c.l.b16 %v5591
    %v6093 = vunpack.c.l.b16 %v5592
    %v6094 = vunpack.c.l.b16 %v5593
    %v6095 = vunpack.c.l.b16 %v5594
    %v6096 = vunpack.c.l.b16 %v5595
    %v6097 = vunpack.c.l.b16 %v5596
    %v6098 = vunpack.c.l.b16 %v5597
    %v6099 = vunpack.c.l.b16 %v5598
    %v6100 = vunpack.c.l.b16 %v5599
    %v6101 = vunpack.c.l.b16 %v5600
    %v6102 = vunpack.c.l.b16 %v5601
    %v6103 = vunpack.c.l.b16 %v5602
    %v6104 = vunpack.c.l.b16 %v5603
    %v6105 = vunpack.c.l.b16 %v5604
    %v6106 = vunpack.c.l.b16 %v5605
    %v6107 = vunpack.c.l.b16 %v5606
    %v6108 = vunpack.c.l.b16 %v5607
    %v6109 = vunpack.c.l.b16 %v5608
    %v6110 = vunpack.c.l.b16 %v5609
    %v6111 = vunpack.c.l.b16 %v5610
    %v6112 = vunpack.c.l.b16 %v5611
    %v6113 = vunpack.c.l.b16 %v5612
    %v6114 = vunpack.c.l.b16 %v5613
    %v6115 = vunpack.c.l.b16 %v5614
    %v6116 = vunpack.c.l.b16 %v5615
    %v6117 = vunpack.c.l.b16 %v5616
    %v6118 = vunpack.c.l.b16 %v5617
    %v6119 = vunpack.c.l.b16 %v5618
    %v6120 = vunpack.c.l.b16 %v5619
    %v6121 = vunpack.c.l.b16 %v5620
    %v6122 = vunpack.c.l.b16 %v5621
    %v6123 = vunpack.c.l.b16 %v5622
    %v6124 = vunpack.c.l.b16 %v5623
    %v6125 = vunpack.c.l.b16 %v5624
    %v6126 = vunpack.c.l.b16 %v5625
    %v6127 = vunpack.c.l.b16 %v5626
    %v6128 = vunpack.c.l.b16 %v5627
    %v6129 = vunpack.c.l.b16 %v5628
    %v6130 = vunpack.c.l.b16 %v5629
    %v6131 = vunpack.c.l.b16 %v5630
    %v6132 = vunpack.c.l.b16 %v5631
    %v6133 = vunpack.c.l.b16 %v5632
    %v6134 = vunpack.c.l.b16 %v5633
    %v6135 = vunpack.c.l.b16 %v5634
    %v6136 = vunpack.c.l.b16 %v5635
    %v6137 = vunpack.c.l.b16 %v5636
    %v6138 = vunpack.c.l.b16 %v5637
    %v6139 = vunpack.c.l.b16 %v5638
    %v6140 = vunpack.c.l.b16 %v5639
    %v6141 = vunpack.c.l.b16 %v5640
    %v6142 = vunpack.c.l.b16 %v5641
    %v6143 = vunpack.c.l.b16 %v5642
    %v6144 = vunpack.c.l.b16 %v5643
    %v6145 = vunpack.c.l.b16 %v5644
    %v6146 = vunpack.c.l.b16 %v5645
    %v6147 = vunpack.c.l.b16 %v5646
    %v6148 = vunpack.c.l.b16 %v5647
    %v6149 = vunpack.c.l.b16 %v5648
    %v6150 = vunpack.c.l.b16 %v5649
    %v6151 = vunpack.c.l.b16 %v5650
    %v6152 = vunpack.c.l.b16 %v5651
    %v6153 = vunpack.c.l.b16 %v5652
    %v6154 = vunpack.c.l.b16 %v5653
    %v6155 = vunpack.c.l.b16 %v5654
    %v6156 = vunpack.c.l.b16 %v5655
    %v6157 = vunpack.c.l.b16 %v5656
    %v6158 = vunpack.c.l.b16 %v5657
    %v6159 = vunpack.c.l.b16 %v5658
    %v6160 = vunpack.c.l.b16 %v5659
    %v6161 = vunpack.c.l.b16 %v5660
    %v6162 = vunpack.c.l.b16 %v5661
    %v6163 = vunpack.c.l.b16 %v5662
    %v6164 = vunpack.c.l.b16 %v5663
    %v6165 = vunpack.c.l.b16 %v5664
    %v6166 = vunpack.c.l.b16 %v5665
    %v6167 = vunpack.c.l.b16 %v5666
    %v6168 = vunpack.c.l.b16 %v5667
    %v6169 = vunpack.c.l.b16 %v5668
    %v6170 = vunpack.c.l.b16 %v5669
    %v6171 = vunpack.c.l.b16 %v5670
    %v6172 = vunpack.c.l.b16 %v5671
    %v6173 = vunpack.c.l.b16 %v5672
    %v6174 = vunpack.c.l.b16 %v5673
    %v6175 = vunpack.c.l.b16 %v5674
    %v6176 = vunpack.c.l.b16 %v5675
    %v6177 = vunpack.c.l.b16 %v5676
    %v6178 = vunpack.c.l.b16 %v5677
    %v6179 = vunpack.c.l.b16 %v5678
    %v6180 = vunpack.c.l.b16 %v5679
    %v6181 = vunpack.c.l.b16 %v5680
    %v6182 = vunpack.c.l.b16 %v5681
    %v6183 = vunpack.c.l.b16 %v5682
    %v6184 = vunpack.c.l.b16 %v5683
    %v6185 = vunpack.c.l.b16 %v5684
    %v6186 = vunpack.c.l.b16 %v5685
    %v6187 = vunpack.c.l.b16 %v5686
    %v6188 = vunpack.c.l.b16 %v5687
    %v6189 = vunpack.c.l.b16 %v5688
    %v6190 = vunpack.c.l.b16 %v5689
    %v6191 = vunpack.c.l.b16 %v5690
    %v6192 = vunpack.c.l.b16 %v5691
    %v6193 = vunpack.c.l.b16 %v5692
    %v6194 = vunpack.c.l.b16 %v5693
    %v6195 = vunpack.c.l.b16 %v5694
    %v6196 = vunpack.c.l.b16 %v5695
    %v6197 = vunpack.c.l.b16 %v5696
    %v6198 = vunpack.c.l.b16 %v5697
    %v6199 = vunpack.c.l.b16 %v5698
    %v6200 = vunpack.c.l.b16 %v5699
    %v6201 = vunpack.c.l.b16 %v5700
    %v6202 = vunpack.c.l.b16 %v5701
    %v6203 = vunpack.c.l.b16 %v5702
    %v6204 = vunpack.c.l.b16 %v5703
    %v6205 = vunpack.c.l.b16 %v5704
    %v6206 = vunpack.c.l.b16 %v5705
    %v6207 = vunpack.c.l.b16 %v5706
    %v6208 = vunpack.c.l.b16 %v5707
    %v6209 = vunpack.c.l.b16 %v5708
    %v6210 = vunpack.c.l.b16 %v5709
    %v6211 = vunpack.c.l.b16 %v5710
    %v6212 = vunpack.c.l.b16 %v5711
    %v6213 = vunpack.c.l.b16 %v5712
    %v6214 = vunpack.c.l.b16 %v5713
    %v6215 = vunpack.c.l.b16 %v5714
    %v6216 = vunpack.c.l.b16 %v5715
    %v6217 = vunpack.c.l.b16 %v5716
    %v6218 = vunpack.c.l.b16 %v5717
    %v6219 = vunpack.c.l.b16 %v5718
    %v6220 = vunpack.c.l.b16 %v5719
    %v6221 = vunpack.c.l.b16 %v5720
    %v6222 = vunpack.c.l.b16 %v5721
    %v6223 = vunpack.c.l.b16 %v5722
    %v6224 = vunpack.c.l.b16 %v5723
    %v6225 = vunpack.c.l.b16 %v5724
    %v6226 = vunpack.c.l.b16 %v5725
    %v6227 = vunpack.c.l.b16 %v5726
    %v6228 = vunpack.c.l.b16 %v5727
    %v6229 = vunpack.c.l.b16 %v5728
    %v6230 = vunpack.c.l.b16 %v5729
    %v6231 = vunpack.c.l.b16 %v5730
    %v6232 = vunpack.c.l.b16 %v5731
    %v6233 = vunpack.c.l.b16 %v5732
    %v6234 = vunpack.c.l.b16 %v5733
    %v6235 = vunpack.c.l.b16 %v5734
    %v6236 = vunpack.c.l.b16 %v5735
    %v6237 = vunpack.c.l.b16 %v5736
    %v6238 = vunpack.c.l.b16 %v5737
    %v6239 = vunpack.c.l.b16 %v5738
    %v6240 = vunpack.c.l.b16 %v5739
    %v6241 = vunpack.c.l.b16 %v5740
    %v6242 = vunpack.c.l.b16 %v5741
    %v6243 = vunpack.c.l.b16 %v5742
    %v6244 = vunpack.c.l.b16 %v5743
    %v6245 = vunpack.c.l.b16 %v5744
    %v6246 = vunpack.c.l.b16 %v5745
    %v6247 = vunpack.c.l.b16 %v5746
    %v6248 = vunpack.c.l.b16 %v5747
    %v6249 = vunpack.c.l.b16 %v5748
    %v6250 = vunpack.c.l.b16 %v5749
    %v6251 = vunpack.c.l.b16 %v5750
    %v6252 = vunpack.c.l.b16 %v5751
    %v6253 = vunpack.c.l.b16 %v5752
    %v6254 = vunpack.c.l.b16 %v5753
    %v6255 = vunpack.c.l.b16 %v5754
    %v6256 = vunpack.c.l.b16 %v5755
    %v6257 = vunpack.c.l.b16 %v5756
    %v6258 = vpack.c.b16 %v6063, %v6062
    %v6259 = vpack.c.b16 %v6065, %v6064
    %v6260 = vpack.c.b16 %v6067, %v6066
    %v6261 = vpack.c.b16 %v6069, %v6068
    %v6262 = vpack.c.b16 %v6071, %v6070
    %v6263 = vpack.c.b16 %v6073, %v6072
    %v6264 = vpack.c.b16 %v6075, %v6074
    %v6265 = vpack.c.b16 %v6077, %v6076
    %v6266 = vpack.c.b16 %v6079, %v6078
    %v6267 = vpack.c.b16 %v6081, %v6080
    %v6268 = vpack.c.b16 %v6083, %v6082
    %v6269 = vpack.c.b16 %v6085, %v6084
    %v6270 = vpack.c.b16 %v6087, %v6086
    %v6271 = vpack.c.b16 %v6089, %v6088
    %v6272 = vpack.c.b16 %v6091, %v6090
    %v6273 = vpack.c.b16 %v6093, %v6092
    %v6274 = vpack.c.b16 %v6095, %v6094
    %v6275 = vpack.c.b16 %v6097, %v6096
    %v6276 = vpack.c.b16 %v6099, %v6098
    %v6277 = vpack.c.b16 %v6101, %v6100
    %v6278 = vpack.c.b16 %v6103, %v6102
    %v6279 = vpack.c.b16 %v6105, %v6104
    %v6280 = vpack.c.b16 %v6107, %v6106
    %v6281 = vpack.c.b16 %v6109, %v6108
    %v6282 = vpack.c.b16 %v6111, %v6110
    %v6283 = vpack.c.b16 %v6113, %v6112
    %v6284 = vpack.c.b16 %v6115, %v6114
    %v6285 = vpack.c.b16 %v6117, %v6116
    %v6286 = vpack.c.b16 %v6119, %v6118
    %v6287 = vpack.c.b16 %v6121, %v6120
    %v6288 = vpack.c.b16 %v6123, %v6122
    %v6289 = vpack.c.b16 %v6125, %v6124
    %v6290 = vpack.c.b16 %v6127, %v6126
    %v6291 = vpack.c.b16 %v6129, %v6128
    %v6292 = vpack.c.b16 %v6131, %v6130
    %v6293 = vpack.c.b16 %v6133, %v6132
    %v6294 = vpack.c.b16 %v6135, %v6134
    %v6295 = vpack.c.b16 %v6137, %v6136
    %v6296 = vpack.c.b16 %v6139, %v6138
    %v6297 = vpack.c.b16 %v6141, %v6140
    %v6298 = vpack.c.b16 %v6143, %v6142
    %v6299 = vpack.c.b16 %v6145, %v6144
    %v6300 = vpack.c.b16 %v6147, %v6146
    %v6301 = vpack.c.b16 %v6149, %v6148
    %v6302 = vpack.c.b16 %v6151, %v6150
    %v6303 = vpack.c.b16 %v6153, %v6152
    %v6304 = vpack.c.b16 %v6155, %v6154
    %v6305 = vpack.c.b16 %v6157, %v6156
    %v6306 = vpack.c.b16 %v6159, %v6158
    %v6307 = vpack.c.b16 %v6161, %v6160
    %v6308 = vpack.c.b16 %v6163, %v6162
    %v6309 = vpack.c.b16 %v6165, %v6164
    %v6310 = vpack.c.b16 %v6167, %v6166
    %v6311 = vpack.c.b16 %v6169, %v6168
    %v6312 = vpack.c.b16 %v6171, %v6170
    %v6313 = vpack.c.b16 %v6173, %v6172
    %v6314 = vpack.c.b16 %v6175, %v6174
    %v6315 = vpack.c.b16 %v6177, %v6176
    %v6316 = vpack.c.b16 %v6179, %v6178
    %v6317 = vpack.c.b16 %v6181, %v6180
    %v6318 = vpack.c.b16 %v6183, %v6182
    %v6319 = vpack.c.b16 %v6185, %v6184
    %v6320 = vpack.c.b16 %v6187, %v6186
    %v6321 = vpack.c.b16 %v6189, %v6188
    %v6322 = vpack.c.b16 %v6191, %v6190
    %v6323 = vpack.c.b16 %v6193, %v6192
    %v6324 = vpack.c.b16 %v6195, %v6194
    %v6325 = vpack.c.b16 %v6197, %v6196
    %v6326 = vpack.c.b16 %v6199, %v6198
    %v6327 = vpack.c.b16 %v6201, %v6200
    %v6328 = vpack.c.b16 %v6203, %v6202
    %v6329 = vpack.c.b16 %v6205, %v6204
    %v6330 = vpack.c.b16 %v6207, %v6206
    %v6331 = vpack.c.b16 %v6209, %v6208
    %v6332 = vpack.c.b16 %v6211, %v6210
    %v6333 = vpack.c.b16 %v6213, %v6212
    %v6334 = vpack.c.b16 %v6215, %v6214
    %v6335 = vpack.c.b16 %v6217, %v6216
    %v6336 = vpack.c.b16 %v6219, %v6218
    %v6337 = vpack.c.b16 %v6221, %v6220
    %v6338 = vpack.c.b16 %v6223, %v6222
    %v6339 = vpack.c.b16 %v6225, %v6224
    %v6340 = vpack.c.b16 %v6227, %v6226
    %v6341 = vpack.c.b16 %v6229, %v6228
    %v6342 = vpack.c.b16 %v6231, %v6230
    %v6343 = vpack.c.b16 %v6233, %v6232
    %v6344 = vpack.c.b16 %v6235, %v6234
    %v6345 = vpack.c.b16 %v6237, %v6236
    %v6346 = vpack.c.b16 %v6239, %v6238
    %v6347 = vpack.c.b16 %v6241, %v6240
    %v6348 = vpack.c.b16 %v6243, %v6242
    %v6349 = vpack.c.b16 %v6245, %v6244
    %v6350 = vpack.c.b16 %v6247, %v6246
    %v6351 = vpack.c.b16 %v6249, %v6248
    %v6352 = vpack.c.b16 %v6251, %v6250
    %v6353 = vpack.c.b16 %v6253, %v6252
    %v6354 = vpack.c.b16 %v6255, %v6254
    %v6355 = vpack.c.b16 %v6257, %v6256
    %v6455 = vsel %vm730, %v5844, 0
    %6457 = vmatprep.subr.bf16.mxu0 0
    %6458 = vmatpush1.bf16.msra.mxu0 %v6265
    %6459 = vmatprep.subr.bf16.mxu0 0
    %6460 = vmatpush1.bf16.msra.mxu0 %v6264
    %6461 = vmatprep.subr.bf16.mxu0 0
    %6462 = vmatpush1.bf16.msra.mxu0 %v6263
    %6463 = vmatprep.subr.bf16.mxu0 0
    %6464 = vmatpush1.bf16.msra.mxu0 %v6262
    %6465 = vmatprep.subr.bf16.mxu0 0
    %6466 = vmatpush1.bf16.msra.mxu0 %v6261
    %6467 = vmatprep.subr.bf16.mxu0 0
    %6468 = vmatpush1.bf16.msra.mxu0 %v6260
    %6469 = vmatprep.subr.bf16.mxu0 0
    %6470 = vmatpush1.bf16.msra.mxu0 %v6259
    %6471 = vmatprep.subr.bf16.mxu0 0
    %6472 = vmatpush1.bf16.msra.mxu0 %v6258
    %6473 = vmatprep.subr.bf16.mxu0 0
    %6474 = vmatpush2.bf16.msra.mxu0 %v6273
    %6475 = vmatprep.subr.bf16.mxu0 0
    %6476 = vmatpush2.bf16.msra.mxu0 %v6272
    %6477 = vmatprep.subr.bf16.mxu0 0
    %6478 = vmatpush2.bf16.msra.mxu0 %v6271
    %6479 = vmatprep.subr.bf16.mxu0 0
    %6480 = vmatpush2.bf16.msra.mxu0 %v6270
    %6481 = vmatprep.subr.bf16.mxu0 0
    %6482 = vmatpush2.bf16.msra.mxu0 %v6269
    %6483 = vmatprep.subr.bf16.mxu0 0
    %6484 = vmatpush2.bf16.msra.mxu0 %v6268
    %6485 = vmatprep.subr.bf16.mxu0 0
    %6486 = vmatpush2.bf16.msra.mxu0 %v6267
    %6487 = vmatprep.subr.bf16.mxu0 0
    %6488 = vmatpush2.bf16.msra.mxu0 %v6266
    %6489 = vmatprep.mubr.bf16.mxu0 %v5803
    %6490 = vmatmul.mubr.bf16.gmra.mxu0 %v5789
    %v6491 = vpop.f32.mrf.mxu0
    %v6492 = vadd.f32 %v5762, %v6491
    %v6493 = vpop.f32.mrf.mxu0
    %v6494 = vpop.f32.mrf.mxu0
    %v6495 = vpop.f32.mrf.mxu0
    %6496 = vdwg.mxu0
    %6497 = vmatprep.subr.bf16.mxu0 0
    %6498 = vmatpush1.bf16.msra.mxu0 %v6281
    %6499 = vmatprep.subr.bf16.mxu0 0
    %6500 = vmatpush1.bf16.msra.mxu0 %v6280
    %6501 = vmatprep.subr.bf16.mxu0 0
    %6502 = vmatpush1.bf16.msra.mxu0 %v6279
    %6503 = vmatprep.subr.bf16.mxu0 0
    %6504 = vmatpush1.bf16.msra.mxu0 %v6278
    %6505 = vmatprep.subr.bf16.mxu0 0
    %6506 = vmatpush1.bf16.msra.mxu0 %v6277
    %6507 = vmatprep.subr.bf16.mxu0 0
    %6508 = vmatpush1.bf16.msra.mxu0 %v6276
    %6509 = vmatprep.subr.bf16.mxu0 0
    %6510 = vmatpush1.bf16.msra.mxu0 %v6275
    %6511 = vmatprep.subr.bf16.mxu0 0
    %6512 = vmatpush1.bf16.msra.mxu0 %v6274
    %6513 = vmatprep.subr.bf16.mxu0 0
    %6514 = vmatpush2.bf16.msra.mxu0 %v6289
    %6515 = vmatprep.subr.bf16.mxu0 0
    %6516 = vmatpush2.bf16.msra.mxu0 %v6288
    %6517 = vmatprep.subr.bf16.mxu0 0
    %6518 = vmatpush2.bf16.msra.mxu0 %v6287
    %6519 = vmatprep.subr.bf16.mxu0 0
    %6520 = vmatpush2.bf16.msra.mxu0 %v6286
    %6521 = vmatprep.subr.bf16.mxu0 0
    %6522 = vmatpush2.bf16.msra.mxu0 %v6285
    %6523 = vmatprep.subr.bf16.mxu0 0
    %6524 = vmatpush2.bf16.msra.mxu0 %v6284
    %6525 = vmatprep.subr.bf16.mxu0 0
    %6526 = vmatpush2.bf16.msra.mxu0 %v6283
    %6527 = vmatprep.subr.bf16.mxu0 0
    %6528 = vmatpush2.bf16.msra.mxu0 %v6282
    %6529 = vmatprep.mubr.bf16.mxu0 %v5813
    %6530 = vmatmul.mubr.bf16.gmra.mxu0 %v5811
    %v6531 = vpop.f32.mrf.mxu0
    %v6532 = vadd.f32 %v6492, %v6531
    %v6533 = vpop.f32.mrf.mxu0
    %v6534 = vpop.f32.mrf.mxu0
    %v6535 = vpop.f32.mrf.mxu0
    %6536 = vdwg.mxu0
    %6537 = vmatprep.subr.bf16.mxu0 0
    %6538 = vmatpush1.bf16.msra.mxu0 %v6297
    %6539 = vmatprep.subr.bf16.mxu0 0
    %6540 = vmatpush1.bf16.msra.mxu0 %v6296
    %6541 = vmatprep.subr.bf16.mxu0 0
    %6542 = vmatpush1.bf16.msra.mxu0 %v6295
    %6543 = vmatprep.subr.bf16.mxu0 0
    %6544 = vmatpush1.bf16.msra.mxu0 %v6294
    %6545 = vmatprep.subr.bf16.mxu0 0
    %6546 = vmatpush1.bf16.msra.mxu0 %v6293
    %6547 = vmatprep.subr.bf16.mxu0 0
    %6548 = vmatpush1.bf16.msra.mxu0 %v6292
    %6549 = vmatprep.subr.bf16.mxu0 0
    %6550 = vmatpush1.bf16.msra.mxu0 %v6291
    %6551 = vmatprep.subr.bf16.mxu0 0
    %6552 = vmatpush1.bf16.msra.mxu0 %v6290
    %6553 = vmatprep.subr.bf16.mxu0 0
    %6554 = vmatpush2.bf16.msra.mxu0 %v6305
    %6555 = vmatprep.subr.bf16.mxu0 0
    %6556 = vmatpush2.bf16.msra.mxu0 %v6304
    %6557 = vmatprep.subr.bf16.mxu0 0
    %6558 = vmatpush2.bf16.msra.mxu0 %v6303
    %6559 = vmatprep.subr.bf16.mxu0 0
    %6560 = vmatpush2.bf16.msra.mxu0 %v6302
    %6561 = vmatprep.subr.bf16.mxu0 0
    %6562 = vmatpush2.bf16.msra.mxu0 %v6301
    %6563 = vmatprep.subr.bf16.mxu0 0
    %6564 = vmatpush2.bf16.msra.mxu0 %v6300
    %6565 = vmatprep.subr.bf16.mxu0 0
    %6566 = vmatpush2.bf16.msra.mxu0 %v6299
    %6567 = vmatprep.subr.bf16.mxu0 0
    %6568 = vmatpush2.bf16.msra.mxu0 %v6298
    %6569 = vmatprep.mubr.bf16.mxu0 %v5810
    %6570 = vmatmul.mubr.bf16.gmra.mxu0 %v5796
    %v6571 = vpop.f32.mrf.mxu0
    %v6572 = vadd.f32 %v6532, %v6571
    %v6573 = vpop.f32.mrf.mxu0
    %v6574 = vpop.f32.mrf.mxu0
    %v6575 = vpop.f32.mrf.mxu0
    %6576 = vdwg.mxu0
    %6577 = vmatprep.subr.bf16.mxu0 0
    %6578 = vmatpush1.bf16.msra.mxu0 %v6313
    %6579 = vmatprep.subr.bf16.mxu0 0
    %6580 = vmatpush1.bf16.msra.mxu0 %v6312
    %6581 = vmatprep.subr.bf16.mxu0 0
    %6582 = vmatpush1.bf16.msra.mxu0 %v6311
    %6583 = vmatprep.subr.bf16.mxu0 0
    %6584 = vmatpush1.bf16.msra.mxu0 %v6310
    %6585 = vmatprep.subr.bf16.mxu0 0
    %6586 = vmatpush1.bf16.msra.mxu0 %v6309
    %6587 = vmatprep.subr.bf16.mxu0 0
    %6588 = vmatpush1.bf16.msra.mxu0 %v6308
    %6589 = vmatprep.subr.bf16.mxu0 0
    %6590 = vmatpush1.bf16.msra.mxu0 %v6307
    %6591 = vmatprep.subr.bf16.mxu0 0
    %6592 = vmatpush1.bf16.msra.mxu0 %v6306
    %6593 = vmatprep.subr.bf16.mxu0 0
    %6594 = vmatpush2.bf16.msra.mxu0 %v6321
    %6595 = vmatprep.subr.bf16.mxu0 0
    %6596 = vmatpush2.bf16.msra.mxu0 %v6320
    %6597 = vmatprep.subr.bf16.mxu0 0
    %6598 = vmatpush2.bf16.msra.mxu0 %v6319
    %6599 = vmatprep.subr.bf16.mxu0 0
    %6600 = vmatpush2.bf16.msra.mxu0 %v6318
    %6601 = vmatprep.subr.bf16.mxu0 0
    %6602 = vmatpush2.bf16.msra.mxu0 %v6317
    %6603 = vmatprep.subr.bf16.mxu0 0
    %6604 = vmatpush2.bf16.msra.mxu0 %v6316
    %6605 = vmatprep.subr.bf16.mxu0 0
    %6606 = vmatpush2.bf16.msra.mxu0 %v6315
    %6607 = vmatprep.subr.bf16.mxu0 0
    %6608 = vmatpush2.bf16.msra.mxu0 %v6314
    %6609 = vmatprep.mubr.bf16.mxu0 %v5814
    %6610 = vmatmul.mubr.bf16.gmra.mxu0 %v5812
    %v6611 = vpop.f32.mrf.mxu0
    %v6612 = vadd.f32 %v6572, %v6611
    %v6613 = vpop.f32.mrf.mxu0
    %v6614 = vpop.f32.mrf.mxu0
    %v6615 = vpop.f32.mrf.mxu0
    %6616 = vdwg.mxu0
    %6617 = vmatprep.subr.bf16.mxu0 0
    %6618 = vmatpush1.bf16.msra.mxu0 %v6329
    %6619 = vmatprep.subr.bf16.mxu0 0
    %6620 = vmatpush1.bf16.msra.mxu0 %v6328
    %6621 = vmatprep.subr.bf16.mxu0 0
    %6622 = vmatpush1.bf16.msra.mxu0 %v6327
    %6623 = vmatprep.subr.bf16.mxu0 0
    %6624 = vmatpush1.bf16.msra.mxu0 %v6326
    %6625 = vmatprep.subr.bf16.mxu0 0
    %6626 = vmatpush1.bf16.msra.mxu0 %v6325
    %6627 = vmatprep.subr.bf16.mxu0 0
    %6628 = vmatpush1.bf16.msra.mxu0 %v6324
    %6629 = vmatprep.subr.bf16.mxu0 0
    %6630 = vmatpush1.bf16.msra.mxu0 %v6323
    %6631 = vmatprep.subr.bf16.mxu0 0
    %6632 = vmatpush1.bf16.msra.mxu0 %v6322
    %6633 = vmatprep.subr.bf16.mxu0 0
    %6634 = vmatpush2.bf16.msra.mxu0 %v6337
    %6635 = vmatprep.subr.bf16.mxu0 0
    %6636 = vmatpush2.bf16.msra.mxu0 %v6336
    %6637 = vmatprep.subr.bf16.mxu0 0
    %6638 = vmatpush2.bf16.msra.mxu0 %v6335
    %6639 = vmatprep.subr.bf16.mxu0 0
    %6640 = vmatpush2.bf16.msra.mxu0 %v6334
    %6641 = vmatprep.subr.bf16.mxu0 0
    %6642 = vmatpush2.bf16.msra.mxu0 %v6333
    %6643 = vmatprep.subr.bf16.mxu0 0
    %6644 = vmatpush2.bf16.msra.mxu0 %v6332
    %6645 = vmatprep.subr.bf16.mxu0 0
    %6646 = vmatpush2.bf16.msra.mxu0 %v6331
    %6647 = vmatprep.subr.bf16.mxu0 0
    %6648 = vmatpush2.bf16.msra.mxu0 %v6330
    %6649 = vmatprep.mubr.bf16.mxu0 %v5851
    %6650 = vmatmul.mubr.bf16.gmra.mxu0 %v5837
    %v6651 = vpop.f32.mrf.mxu0
    %v6652 = vadd.f32 %v6612, %v6651
    %v6653 = vpop.f32.mrf.mxu0
    %v6654 = vpop.f32.mrf.mxu0
    %v6655 = vpop.f32.mrf.mxu0
    %6656 = vdwg.mxu0
    %6657 = vmatprep.subr.bf16.mxu0 0
    %6658 = vmatpush1.bf16.msra.mxu0 %v6345
    %6659 = vmatprep.subr.bf16.mxu0 0
    %6660 = vmatpush1.bf16.msra.mxu0 %v6344
    %6661 = vmatprep.subr.bf16.mxu0 0
    %6662 = vmatpush1.bf16.msra.mxu0 %v6343
    %6663 = vmatprep.subr.bf16.mxu0 0
    %6664 = vmatpush1.bf16.msra.mxu0 %v6342
    %6665 = vmatprep.subr.bf16.mxu0 0
    %6666 = vmatpush1.bf16.msra.mxu0 %v6341
    %6667 = vmatprep.subr.bf16.mxu0 0
    %6668 = vmatpush1.bf16.msra.mxu0 %v6340
    %6669 = vmatprep.subr.bf16.mxu0 0
    %6670 = vmatpush1.bf16.msra.mxu0 %v6339
    %6671 = vmatprep.subr.bf16.mxu0 0
    %6672 = vmatpush1.bf16.msra.mxu0 %v6338
    %6673 = vmatprep.subr.bf16.mxu0 0
    %6674 = vmatpush2.bf16.msra.mxu0 %v6353
    %6675 = vmatprep.subr.bf16.mxu0 0
    %6676 = vmatpush2.bf16.msra.mxu0 %v6352
    %6677 = vmatprep.subr.bf16.mxu0 0
    %6678 = vmatpush2.bf16.msra.mxu0 %v6351
    %6679 = vmatprep.subr.bf16.mxu0 0
    %6680 = vmatpush2.bf16.msra.mxu0 %v6350
    %6681 = vmatprep.subr.bf16.mxu0 0
    %6682 = vmatpush2.bf16.msra.mxu0 %v6349
    %6683 = vmatprep.subr.bf16.mxu0 0
    %6684 = vmatpush2.bf16.msra.mxu0 %v6348
    %6685 = vmatprep.subr.bf16.mxu0 0
    %6686 = vmatpush2.bf16.msra.mxu0 %v6347
    %6687 = vmatprep.subr.bf16.mxu0 0
    %6688 = vmatpush2.bf16.msra.mxu0 %v6346
    %6689 = vmatprep.mubr.bf16.mxu0 %v5853
    %6690 = vmatmul.mubr.bf16.gmra.mxu0 %v5852
    %v6691 = vpop.f32.mrf.mxu0
    %v6692 = vadd.f32 %v6652, %v6691
    %v6693 = vpop.f32.mrf.mxu0
    %v6694 = vpop.f32.mrf.mxu0
    %v6695 = vpop.f32.mrf.mxu0
    %6696 = vdwg.mxu0
    %6697 = vmatprep.subr.bf16.mxu0 0
    %6698 = vmatpush1.bf16.msra.mxu0 0
    %6699 = vmatprep.subr.bf16.mxu0 0
    %6700 = vmatpush1.bf16.msra.mxu0 0
    %6701 = vmatprep.subr.bf16.mxu0 0
    %6702 = vmatpush1.bf16.msra.mxu0 0
    %6703 = vmatprep.subr.bf16.mxu0 0
    %6704 = vmatpush1.bf16.msra.mxu0 0
    %6705 = vmatprep.subr.bf16.mxu0 0
    %6706 = vmatpush1.bf16.msra.mxu0 0
    %6707 = vmatprep.subr.bf16.mxu0 0
    %6708 = vmatpush1.bf16.msra.mxu0 0
    %6709 = vmatprep.subr.bf16.mxu0 0
    %6710 = vmatpush1.bf16.msra.mxu0 %v6355
    %6711 = vmatprep.subr.bf16.mxu0 0
    %6712 = vmatpush1.bf16.msra.mxu0 %v6354
    %6713 = vmatprep.subr.bf16.mxu0 0
    %6714 = vmatpush2.bf16.msra.mxu0 0
    %6715 = vmatprep.subr.bf16.mxu0 0
    %6716 = vmatpush2.bf16.msra.mxu0 0
    %6717 = vmatprep.subr.bf16.mxu0 0
    %6718 = vmatpush2.bf16.msra.mxu0 0
    %6719 = vmatprep.subr.bf16.mxu0 0
    %6720 = vmatpush2.bf16.msra.mxu0 0
    %6721 = vmatprep.subr.bf16.mxu0 0
    %6722 = vmatpush2.bf16.msra.mxu0 0
    %6723 = vmatprep.subr.bf16.mxu0 0
    %6724 = vmatpush2.bf16.msra.mxu0 0
    %6725 = vmatprep.subr.bf16.mxu0 0
    %6726 = vmatpush2.bf16.msra.mxu0 0
    %6727 = vmatprep.subr.bf16.mxu0 0
    %6728 = vmatpush2.bf16.msra.mxu0 0
    %6729 = vmatprep.mubr.bf16.mxu0 0
    %6730 = vmatmul.mubr.bf16.gmra.mxu0 %v6455
    %v6731 = vpop.f32.mrf.mxu0
    %v6732 = vadd.f32 %v6692, %v6731
    %v6733 = vpop.f32.mrf.mxu0
    %v6734 = vpop.f32.mrf.mxu0
    %v6735 = vpop.f32.mrf.mxu0
    %6736 = vdwg.mxu0
    %6737 = vst [vmem:[#allocation6] sm:$0x3] %v6732
    // Predicated region
    $region30: #{cnn_forward.1} parent=1 // pred_check
      _
    $region31: #{cnn_forward.1} parent=1 // pred_check_branch
      %6739 = sbr.rel (0) target = $region33
    $region32: #{cnn_forward.1} parent=1 // pred_region
      %s6741 = ssub.s32 32, 32
      %6742 = vsyncadd [#allocation7], %s6741
      %s6744 = sshll.u32 [#allocation6], 4
      %s6745 = int_to_ptr.vmem [resolvable:$true] %s6744
      %6747 = dma.vmem_to_hbm [thread:$0]  %s6745, 32, %s7, [#allocation7]
    $region33: #{cnn_forward.1} parent=1 // pred_fallthru
      _
    // Predicated region
    $region34: #{cnn_forward.1} parent=1 // pred_check
      _
    $region35: #{cnn_forward.1} parent=1 // pred_check_branch
      %6749 = sbr.rel (0) target = $region37
    $region36: #{cnn_forward.1} parent=1 // pred_region
      %6750 = dma.done [#allocation7], 32
    $region37: #{cnn_forward.1} parent=1 // pred_fallthru
      _
    %6751 = vsyncpa [#allocation7], 1

</llo_original>
